<compile_context>
chip_gen: v6e
topology: v6e:2x2x1
jax: 0.10.0
libtpu: 0.0.40
codegen_flags: <defaults>
</compile_context>

<pallas_src>
import math
import functools

import numpy as np
import jax
import jax.numpy as jnp
from jax.experimental import pallas as pl
from jax.experimental.pallas import tpu as pltpu

_F32_MIN = float(np.finfo(np.float32).min)
_LN_EPS = 1e-5


def _cross_mha_kernel(q_ref, k_ref, v_ref, m_ref, w_ref, vec_ref, o_ref,
                      *, n_head, d_k, bt, t1, t2):
    """Processes `bt` batch elements per grid step.

    Block shapes (n_feat == F):
      q_ref             : (bt*t1, F)  bfloat16
      k_ref/v_ref       : (bt*t2, F)  bfloat16
      m_ref             : (bt*t1, 1)  float32   (query-row mask, 0 == masked)
      w_ref             : (4, F, F)   bfloat16  rows = [Wq, Wk, Wv, Wo], stored (in, out)
      vec_ref           : (6, F)      float32   rows = [bq, bk, bv, bo, gamma, beta]
      o_ref             : (bt*t1, F)  out dtype (bf16 by default)
    """
    f32 = jnp.float32
    bf16 = jnp.bfloat16
    n_feat = n_head * d_k

    wq, wk, wv, wo = w_ref[0], w_ref[1], w_ref[2], w_ref[3]     # (F, F) bf16
    bq = vec_ref[0:1, :]
    bk = vec_ref[1:2, :]
    bv = vec_ref[2:3, :]
    bo = vec_ref[3:4, :]
    gamma = vec_ref[4:5, :]
    beta = vec_ref[5:6, :]

    # ---- input projections: one full-F-contraction matmul each over bt*T rows ----
    scale = jnp.float32(1.0 / math.sqrt(d_k))                   # folded into q
    q = (jnp.dot(q_ref[...], wq, preferred_element_type=f32) + bq) * scale
    k = jnp.dot(k_ref[...], wk, preferred_element_type=f32) + bk
    v = jnp.dot(v_ref[...], wv, preferred_element_type=f32) + bv

    # (bt*T, F) -> (bt, T, F): leading-dim expand (layout-free, f32), cast once.
    q3 = q.reshape(bt, t1, n_feat).astype(bf16)
    k3 = k.reshape(bt, t2, n_feat).astype(bf16)
    v3 = v.reshape(bt, t2, n_feat).astype(bf16)

    # ---- attention: static head loop, each head batched over the bt batch dim ----
    ctx_parts = []
    for h in range(n_head):
        lo = h * d_k
        qh = q3[:, :, lo:lo + d_k]
        kh = k3[:, :, lo:lo + d_k]
        vh = v3[:, :, lo:lo + d_k]
        s = jnp.einsum("bqd,bkd->bqk", qh, kh,
                       preferred_element_type=f32)              # (bt, t1, t2)
        s = s - jnp.max(s, axis=-1, keepdims=True)              # scores - max
        e = jnp.exp(s)                                          # f32 (v5e: no bf16 EUP)
        p = e * pl.reciprocal(jnp.sum(e, axis=-1, keepdims=True),
                              approx=True)                      # softmax (EUP rcp)
        # dropout: identity (eval mode)
        ctx_parts.append(jnp.einsum("bqk,bkd->bqd", p.astype(bf16), vh,
                                    preferred_element_type=f32))  # (bt, t1, d_k)

    ctx = jnp.concatenate(ctx_parts, axis=-1)                   # (bt, t1, F) f32
    ctx2d = ctx.reshape(bt * t1, n_feat)                        # leading-dim collapse

    # Query-row masking: in the reference, a masked query row has its entire
    # attention row zeroed, which is exactly equivalent to zeroing the context
    # row here (so the float32-min score pre-fill is dropped entirely).
    is_masked = m_ref[...] == 0.0                               # (bt*t1, 1)
    ctx2d = jnp.where(is_masked, 0.0, ctx2d)

    # ---- single full-F output projection; residual is zeros_like(query) ----
    x = jnp.dot(ctx2d.astype(bf16), wo, preferred_element_type=f32) + bo

    # ---- LayerNorm over features (eps = 1e-5, affine), all in f32 ----
    mean = jnp.mean(x, axis=-1, keepdims=True)
    var = jnp.mean((x - mean) ** 2, axis=-1, keepdims=True)
    y = (x - mean) * jax.lax.rsqrt(var + _LN_EPS)
    y = y * gamma + beta

    o_ref[...] = y.astype(o_ref.dtype)                          # one lane-dense store


def _pick_batch_block(batch, t1, t2, n_feat, n_head, out_bytes,
                      min_rows=256, vmem_budget_bytes=40 * 1024 * 1024):
    """Batch elements per grid step.

    Targets >= 256 rows/step (fills the MXU M dim on v6e/v7x, amortizes the
    ~0.35us/step grid overhead), clamped by a per-step VMEM estimate (v7x has
    only 64 MiB physical VMEM) and keeping >= 2 grid steps so the 'parallel'
    batch axis can shard across v7x's two TensorCores."""

    def step_bytes(bt):
        io = 2 * (2 * bt * t1 * n_feat            # bf16 q block (double-buffered)
                  + 2 * 2 * bt * t2 * n_feat      # bf16 k, v blocks
                  + out_bytes * bt * t1 * n_feat  # out block
                  + 4 * bt * t1)                  # f32 mask block
        wts = 2 * (4 * n_feat * n_feat * 2 + 6 * n_feat * 4)    # <= 2 weight buffers
        live = 4 * (3 * bt * max(t1, t2) * n_feat               # f32 q/k/v projections
                    + bt * t1 * n_feat                          # f32 ctx
                    + 3 * bt * t1 * t2)                         # one head's scores/exp/p
        return io + wts + live

    best = 1
    for bt in range(1, batch + 1):
        if batch % bt:
            continue
        if batch > 1 and batch // bt < 2:
            break                                  # keep >= 2 grid steps
        if step_bytes(bt) > vmem_budget_bytes:
            break
        best = bt
        if bt * t1 >= min_rows:
            break                                  # hit the row target
    return best


def _build_call(B, T1, T2, F, n_head, bt, out_dtype, single_buffer_weights):
    rows_q = bt * T1
    rows_kv = bt * T2
    kernel = functools.partial(_cross_mha_kernel, n_head=n_head, d_k=F // n_head,
                               bt=bt, t1=T1, t2=T2)

    const_kw = {}
    if single_buffer_weights:
        # Constant index_map -> a second pipeline buffer is dead VMEM.
        const_kw = dict(pipeline_mode=pl.Buffered(1))

    in_specs = [
        pl.BlockSpec((rows_q, F), lambda i: (i, 0)),            # query rows (bf16)
        pl.BlockSpec((rows_kv, F), lambda i: (i, 0)),           # key rows (bf16)
        pl.BlockSpec((rows_kv, F), lambda i: (i, 0)),           # value rows (bf16)
        pl.BlockSpec((rows_q, 1), lambda i: (i, 0)),            # query-row mask (f32)
        pl.BlockSpec((4, F, F), lambda i: (0, 0, 0), **const_kw),   # packed weights
        pl.BlockSpec((6, F), lambda i: (0, 0), **const_kw),         # packed bias/LN vecs
    ]
    out_specs = pl.BlockSpec((rows_q, F), lambda i: (i, 0))

    out_bytes = jnp.dtype(out_dtype).itemsize
    flops = int(B * (8 * T1 * F * F + 4 * T1 * T2 * F))
    transcendentals = int(B * n_head * T1 * T2 + B * n_head * T1 + B * T1)
    bytes_accessed = int(2 * B * T1 * F + 2 * 2 * B * T2 * F
                         + out_bytes * B * T1 * F + 4 * B * T1
                         + 2 * 4 * F * F + 4 * 6 * F)

    return pl.pallas_call(
        kernel,
        out_shape=jax.ShapeDtypeStruct((B * T1, F), out_dtype),
        grid=(B // bt,),
        in_specs=in_specs,
        out_specs=out_specs,
        compiler_params=pltpu.CompilerParams(
            dimension_semantics=("parallel",),
            vmem_limit_bytes=48 * 1024 * 1024),                 # < 64 MiB (v7x-safe)
        cost_estimate=pl.CostEstimate(flops=flops,
                                      transcendentals=transcendentals,
                                      bytes_accessed=bytes_accessed),
    )


def cross_mha_pallas(query, key, value, mask, params, n_head, *,
                     batch_block=None, out_dtype=jnp.bfloat16):
    B, T1, F = query.shape
    _, T2, _ = key.shape
    assert F % n_head == 0
    assert T1 == T2, "mask broadcast in the reference module requires time1 == time2"

    if batch_block is None:
        batch_block = _pick_batch_block(B, T1, T2, F, n_head,
                                        jnp.dtype(out_dtype).itemsize)
    assert B % batch_block == 0

    # bf16 I/O (halves dominant HBM traffic; MXU wants bf16 anyway) and wrapper-side
    # flatten to lane/sublane-dense (B*T, F) row slabs (free XLA reshapes).
    q2 = query.reshape(B * T1, F).astype(jnp.bfloat16)
    k2 = key.reshape(B * T2, F).astype(jnp.bfloat16)
    v2 = value.reshape(B * T2, F).astype(jnp.bfloat16)
    # (B, 1, T2) mask -> per-query-row mask (B*T1, 1): faithful to the module's
    # mask.unsqueeze(-1) broadcast (masks along the query time axis).
    mask_rows = mask.astype(jnp.float32).reshape(B * T2, 1)

    # Pack the four FxF weights into one bf16 operand and the six (1,F) vectors
    # into one f32 operand (fewer DMA descriptors/args, bf16 feeds the MXU natively).
    w_stack = jnp.stack([params["wq"], params["wk"], params["wv"], params["wo"]],
                        axis=0).astype(jnp.bfloat16)
    vec_stack = jnp.concatenate(
        [params["bq"], params["bk"], params["bv"], params["bo"],
         params["gamma"], params["beta"]], axis=0).astype(jnp.float32)

    args = (q2, k2, v2, mask_rows, w_stack, vec_stack)
    try:
        out = _build_call(B, T1, T2, F, n_head, batch_block, out_dtype,
                          single_buffer_weights=True)(*args)
    except Exception:
        # TODO(synk): pl.Buffered(1) single-buffering of the constant weight blocks
        # is not supported on this jax version; fall back to default double buffering.
        out = _build_call(B, T1, T2, F, n_head, batch_block, out_dtype,
                          single_buffer_weights=False)(*args)
    return out.reshape(B, T1, F)


def cross_mha_reference(query, key, value, mask, params, n_head):
    """Pure-JAX reference mirroring the PyTorch forward pass (including the
    float32-min pre-fill).  Matmul inputs are cast to bf16 with f32 accumulation
    (mirrors the kernel's MXU precision); softmax / LayerNorm stay in f32."""
    B, T1, F = query.shape
    T2 = key.shape[1]
    d_k = F // n_head
    c = lambda x: x.astype(jnp.bfloat16)

    q = jnp.einsum("btf,fg->btg", c(query), c(params["wq"]),
                   preferred_element_type=jnp.float32) + params["bq"]
    k = jnp.einsum("btf,fg->btg", c(key), c(params["wk"]),
                   preferred_element_type=jnp.float32) + params["bk"]
    v = jnp.einsum("btf,fg->btg", c(value), c(params["wv"]),
                   preferred_element_type=jnp.float32) + params["bv"]
    q = q * (1.0 / math.sqrt(d_k))

    def split(x, T):
        return x.reshape(B, T, n_head, d_k).transpose(0, 2, 1, 3)   # (B,H,T,dk)

    q, k, v = split(q, T1), split(k, T2), split(v, T2)
    scores = jnp.einsum("bhqd,bhkd->bhqk", c(q), c(k),
                        preferred_element_type=jnp.float32)

    maskb = (mask[:, :, :, None] == 0)                # (B,1,T2,1) — torch broadcast
    scores = jnp.where(maskb, _F32_MIN, scores)
    scores = scores - jnp.max(scores, axis=-1, keepdims=True)
    attn = jax.nn.softmax(scores, axis=-1)
    attn = jnp.where(maskb, 0.0, attn)

    x = jnp.einsum("bhqk,bhkd->bhqd", c(attn), c(v),
                   preferred_element_type=jnp.float32)
    x = x.transpose(0, 2, 1, 3).reshape(B, T1, F)
    x = jnp.einsum("btf,fg->btg", c(x), c(params["wo"]),
                   preferred_element_type=jnp.float32) + params["bo"]   # residual = 0

    mean = jnp.mean(x, axis=-1, keepdims=True)
    var = jnp.mean((x - mean) ** 2, axis=-1, keepdims=True)
    y = (x - mean) * jax.lax.rsqrt(var + _LN_EPS)
    return y * params["gamma"] + params["beta"]


def init_params(key, n_feat):
    """Deterministic synthetic parameters.  Linear weights stored as (in, out),
    i.e. already transposed relative to torch's (out, in), so y = x @ W + b."""
    ks = jax.random.split(key, 10)
    s = 1.0 / math.sqrt(n_feat)
    mk_w = lambda k: jax.random.uniform(k, (n_feat, n_feat), jnp.float32,
                                        minval=-s, maxval=s)
    mk_b = lambda k: jax.random.uniform(k, (1, n_feat), jnp.float32,
                                        minval=-s, maxval=s)
    return {
        "wq": mk_w(ks[0]), "bq": mk_b(ks[1]),
        "wk": mk_w(ks[2]), "bk": mk_b(ks[3]),
        "wv": mk_w(ks[4]), "bv": mk_b(ks[5]),
        "wo": mk_w(ks[6]), "bo": mk_b(ks[7]),
        "gamma": 1.0 + 0.1 * jax.random.normal(ks[8], (1, n_feat), jnp.float32),
        "beta": 0.1 * jax.random.normal(ks[9], (1, n_feat), jnp.float32),
    }


if __name__ == "__main__":
    B, T, n_feat, n_head = 4, 8, 32, 4   # d_k = 8; batch_block=2 -> grid=(2,)

    root = jax.random.PRNGKey(0)
    kq, kk, kv, kp = jax.random.split(root, 4)

    query = jax.random.normal(kq, (B, T, n_feat), jnp.float32)
    key_ = jax.random.normal(kk, (B, T, n_feat), jnp.float32)
    value = jax.random.normal(kv, (B, T, n_feat), jnp.float32)

    # (B, 1, T2) mask: batches 0/3 fully valid; batch 1 masks its last 3 query
    # rows; batch 2 masks its first 2 query rows.
    mask = jnp.ones((B, 1, T), jnp.float32)
    mask = mask.at[1, 0, T - 3:].set(0.0)
    mask = mask.at[2, 0, :2].set(0.0)

    params = init_params(kp, n_feat)

    out = cross_mha_pallas(query, key_, value, mask, params, n_head)
    out = jax.block_until_ready(out)

    ref = cross_mha_reference(query, key_, value, mask, params, n_head)
    # Tolerance covers bf16 MXU inputs, the approximate (EUP) softmax reciprocal
    # and the bf16 output store.
    np.testing.assert_allclose(np.asarray(out.astype(jnp.float32)),
                               np.asarray(ref), rtol=2e-2, atol=2e-2)

    print("KERNEL_OK")
</pallas_src>

<mosaic_0001>
module attributes {stable_mosaic.version = 11 : i64} {
  func.func @_cross_mha_kernel(%arg0: i32, %arg1: memref<16x32xbf16, #tpu.memory_space<vmem>>, %arg2: memref<16x32xbf16, #tpu.memory_space<vmem>>, %arg3: memref<16x32xbf16, #tpu.memory_space<vmem>>, %arg4: memref<16x1xf32, #tpu.memory_space<vmem>>, %arg5: memref<4x32x32xbf16, #tpu.memory_space<vmem>>, %arg6: memref<6x32xf32, #tpu.memory_space<vmem>>, %arg7: memref<16x32xbf16, #tpu.memory_space<vmem>>) attributes {dimension_semantics = [#tpu.dimension_semantics<parallel>], iteration_bounds = array<i64: 2>, scalar_prefetch = 0 : i64, scratch_operands = 0 : i64, tpu.core_type = #tpu.core_type<tc>, window_params = [{transform_indices = @transform_0, window_bounds = array<i64: 16, 32>}, {transform_indices = @transform_1, window_bounds = array<i64: 16, 32>}, {transform_indices = @transform_2, window_bounds = array<i64: 16, 32>}, {transform_indices = @transform_3, window_bounds = array<i64: 16, 1>}, {pipeline_mode = #tpu.pipeline_mode<synchronous>, transform_indices = @transform_4, window_bounds = array<i64: 4, 32, 32>}, {pipeline_mode = #tpu.pipeline_mode<synchronous>, transform_indices = @transform_5, window_bounds = array<i64: 6, 32>}, {transform_indices = @transform_6, window_bounds = array<i64: 16, 32>}]} {
    %c0 = arith.constant 0 : index
    %c0_0 = arith.constant 0 : index
    %c0_1 = arith.constant 0 : index
    %0 = vector.load %arg5[%c0, %c0_0, %c0_1] : memref<4x32x32xbf16, #tpu.memory_space<vmem>>, vector<1x32x32xbf16>
    %1 = vector.shape_cast %0 : vector<1x32x32xbf16> to vector<32x32xbf16>
    %c1 = arith.constant 1 : index
    %c0_2 = arith.constant 0 : index
    %c0_3 = arith.constant 0 : index
    %2 = vector.load %arg5[%c1, %c0_2, %c0_3] : memref<4x32x32xbf16, #tpu.memory_space<vmem>>, vector<1x32x32xbf16>
    %3 = vector.shape_cast %2 : vector<1x32x32xbf16> to vector<32x32xbf16>
    %c2 = arith.constant 2 : index
    %c0_4 = arith.constant 0 : index
    %c0_5 = arith.constant 0 : index
    %4 = vector.load %arg5[%c2, %c0_4, %c0_5] : memref<4x32x32xbf16, #tpu.memory_space<vmem>>, vector<1x32x32xbf16>
    %5 = vector.shape_cast %4 : vector<1x32x32xbf16> to vector<32x32xbf16>
    %c3 = arith.constant 3 : index
    %c0_6 = arith.constant 0 : index
    %c0_7 = arith.constant 0 : index
    %6 = vector.load %arg5[%c3, %c0_6, %c0_7] : memref<4x32x32xbf16, #tpu.memory_space<vmem>>, vector<1x32x32xbf16>
    %7 = vector.shape_cast %6 : vector<1x32x32xbf16> to vector<32x32xbf16>
    %c0_8 = arith.constant 0 : index
    %c0_9 = arith.constant 0 : index
    %8 = vector.load %arg6[%c0_8, %c0_9] : memref<6x32xf32, #tpu.memory_space<vmem>>, vector<1x32xf32>
    %c1_10 = arith.constant 1 : index
    %c0_11 = arith.constant 0 : index
    %9 = vector.load %arg6[%c1_10, %c0_11] : memref<6x32xf32, #tpu.memory_space<vmem>>, vector<1x32xf32>
    %c2_12 = arith.constant 2 : index
    %c0_13 = arith.constant 0 : index
    %10 = vector.load %arg6[%c2_12, %c0_13] : memref<6x32xf32, #tpu.memory_space<vmem>>, vector<1x32xf32>
    %c3_14 = arith.constant 3 : index
    %c0_15 = arith.constant 0 : index
    %11 = vector.load %arg6[%c3_14, %c0_15] : memref<6x32xf32, #tpu.memory_space<vmem>>, vector<1x32xf32>
    %c4 = arith.constant 4 : index
    %c0_16 = arith.constant 0 : index
    %12 = vector.load %arg6[%c4, %c0_16] : memref<6x32xf32, #tpu.memory_space<vmem>>, vector<1x32xf32>
    %c5 = arith.constant 5 : index
    %c0_17 = arith.constant 0 : index
    %13 = vector.load %arg6[%c5, %c0_17] : memref<6x32xf32, #tpu.memory_space<vmem>>, vector<1x32xf32>
    %c0_18 = arith.constant 0 : index
    %c0_19 = arith.constant 0 : index
    %14 = vector.load %arg1[%c0_18, %c0_19] : memref<16x32xbf16, #tpu.memory_space<vmem>>, vector<16x32xbf16>
    %cst = arith.constant dense<0.000000e+00> : vector<16x32xf32>
    %15 = tpu.matmul %14, %1, %cst {dimension_numbers = #tpu.dot_dimension_numbers<[1], [0], [0], [1], [0, 0, 1, 1], [], []>} : vector<16x32xbf16>, vector<32x32xbf16>, vector<16x32xf32> -> vector<16x32xf32>
    %16 = vector.broadcast %8 : vector<1x32xf32> to vector<16x32xf32>
    %17 = arith.addf %15, %16 : vector<16x32xf32>
    %cst_20 = arith.constant 0.353553385 : f32
    %18 = vector.broadcast %cst_20 : f32 to vector<16x32xf32>
    %19 = arith.mulf %17, %18 : vector<16x32xf32>
    %c0_21 = arith.constant 0 : index
    %c0_22 = arith.constant 0 : index
    %20 = vector.load %arg2[%c0_21, %c0_22] : memref<16x32xbf16, #tpu.memory_space<vmem>>, vector<16x32xbf16>
    %cst_23 = arith.constant dense<0.000000e+00> : vector<16x32xf32>
    %21 = tpu.matmul %20, %3, %cst_23 {dimension_numbers = #tpu.dot_dimension_numbers<[1], [0], [0], [1], [0, 0, 1, 1], [], []>} : vector<16x32xbf16>, vector<32x32xbf16>, vector<16x32xf32> -> vector<16x32xf32>
    %22 = vector.broadcast %9 : vector<1x32xf32> to vector<16x32xf32>
    %23 = arith.addf %21, %22 : vector<16x32xf32>
    %c0_24 = arith.constant 0 : index
    %c0_25 = arith.constant 0 : index
    %24 = vector.load %arg3[%c0_24, %c0_25] : memref<16x32xbf16, #tpu.memory_space<vmem>>, vector<16x32xbf16>
    %cst_26 = arith.constant dense<0.000000e+00> : vector<16x32xf32>
    %25 = tpu.matmul %24, %5, %cst_26 {dimension_numbers = #tpu.dot_dimension_numbers<[1], [0], [0], [1], [0, 0, 1, 1], [], []>} : vector<16x32xbf16>, vector<32x32xbf16>, vector<16x32xf32> -> vector<16x32xf32>
    %26 = vector.broadcast %10 : vector<1x32xf32> to vector<16x32xf32>
    %27 = arith.addf %25, %26 : vector<16x32xf32>
    %28 = vector.shape_cast %19 : vector<16x32xf32> to vector<2x8x32xf32>
    %29 = arith.truncf %28 : vector<2x8x32xf32> to vector<2x8x32xbf16>
    %30 = vector.shape_cast %23 : vector<16x32xf32> to vector<2x8x32xf32>
    %31 = arith.truncf %30 : vector<2x8x32xf32> to vector<2x8x32xbf16>
    %32 = vector.shape_cast %27 : vector<16x32xf32> to vector<2x8x32xf32>
    %33 = arith.truncf %32 : vector<2x8x32xf32> to vector<2x8x32xbf16>
    %34 = vector.extract_strided_slice %29 {offsets = [0, 0, 0], sizes = [2, 8, 8], strides = [1, 1, 1]} : vector<2x8x32xbf16> to vector<2x8x8xbf16>
    %35 = vector.extract_strided_slice %31 {offsets = [0, 0, 0], sizes = [2, 8, 8], strides = [1, 1, 1]} : vector<2x8x32xbf16> to vector<2x8x8xbf16>
    %36 = vector.extract_strided_slice %33 {offsets = [0, 0, 0], sizes = [2, 8, 8], strides = [1, 1, 1]} : vector<2x8x32xbf16> to vector<2x8x8xbf16>
    "tpu.trace_start"() <{level = 10 : i32, message = "bqd,bkd->bqk"}> : () -> ()
    %cst_27 = arith.constant dense<0.000000e+00> : vector<2x8x8xf32>
    %37 = tpu.matmul %34, %35, %cst_27 {dimension_numbers = #tpu.dot_dimension_numbers<[2], [2], [1], [1], [0, 0, 0, 1, 1, 1], [0], [0]>} : vector<2x8x8xbf16>, vector<2x8x8xbf16>, vector<2x8x8xf32> -> vector<2x8x8xf32>
    "tpu.trace_stop"() : () -> ()
    %cst_28 = arith.constant dense<0xFF800000> : vector<2x8xf32>
    %38 = vector.multi_reduction <maximumf>, %37, %cst_28 [2] : vector<2x8x8xf32> to vector<2x8xf32>
    %39 = vector.shape_cast %38 : vector<2x8xf32> to vector<2x8x1xf32>
    %40 = vector.broadcast %39 : vector<2x8x1xf32> to vector<2x8x8xf32>
    %41 = arith.subf %37, %40 : vector<2x8x8xf32>
    %42 = math.exp %41 : vector<2x8x8xf32>
    %cst_29 = arith.constant dense<0.000000e+00> : vector<2x8xf32>
    %43 = vector.multi_reduction <add>, %42, %cst_29 [2] : vector<2x8x8xf32> to vector<2x8xf32>
    %44 = vector.shape_cast %43 : vector<2x8xf32> to vector<2x8x1xf32>
    %45 = tpu.reciprocal %44 {approx = true} : vector<2x8x1xf32> -> vector<2x8x1xf32>
    %46 = vector.broadcast %45 : vector<2x8x1xf32> to vector<2x8x8xf32>
    %47 = arith.mulf %42, %46 : vector<2x8x8xf32>
    %48 = arith.truncf %47 : vector<2x8x8xf32> to vector<2x8x8xbf16>
    "tpu.trace_start"() <{level = 10 : i32, message = "bqk,bkd->bqd"}> : () -> ()
    %cst_30 = arith.constant dense<0.000000e+00> : vector<2x8x8xf32>
    %49 = tpu.matmul %48, %36, %cst_30 {dimension_numbers = #tpu.dot_dimension_numbers<[2], [1], [1], [2], [0, 0, 0, 1, 1, 2], [0], [0]>} : vector<2x8x8xbf16>, vector<2x8x8xbf16>, vector<2x8x8xf32> -> vector<2x8x8xf32>
    "tpu.trace_stop"() : () -> ()
    %50 = vector.extract_strided_slice %29 {offsets = [0, 0, 8], sizes = [2, 8, 8], strides = [1, 1, 1]} : vector<2x8x32xbf16> to vector<2x8x8xbf16>
    %51 = vector.extract_strided_slice %31 {offsets = [0, 0, 8], sizes = [2, 8, 8], strides = [1, 1, 1]} : vector<2x8x32xbf16> to vector<2x8x8xbf16>
    %52 = vector.extract_strided_slice %33 {offsets = [0, 0, 8], sizes = [2, 8, 8], strides = [1, 1, 1]} : vector<2x8x32xbf16> to vector<2x8x8xbf16>
    "tpu.trace_start"() <{level = 10 : i32, message = "bqd,bkd->bqk"}> : () -> ()
    %cst_31 = arith.constant dense<0.000000e+00> : vector<2x8x8xf32>
    %53 = tpu.matmul %50, %51, %cst_31 {dimension_numbers = #tpu.dot_dimension_numbers<[2], [2], [1], [1], [0, 0, 0, 1, 1, 1], [0], [0]>} : vector<2x8x8xbf16>, vector<2x8x8xbf16>, vector<2x8x8xf32> -> vector<2x8x8xf32>
    "tpu.trace_stop"() : () -> ()
    %cst_32 = arith.constant dense<0xFF800000> : vector<2x8xf32>
    %54 = vector.multi_reduction <maximumf>, %53, %cst_32 [2] : vector<2x8x8xf32> to vector<2x8xf32>
    %55 = vector.shape_cast %54 : vector<2x8xf32> to vector<2x8x1xf32>
    %56 = vector.broadcast %55 : vector<2x8x1xf32> to vector<2x8x8xf32>
    %57 = arith.subf %53, %56 : vector<2x8x8xf32>
    %58 = math.exp %57 : vector<2x8x8xf32>
    %cst_33 = arith.constant dense<0.000000e+00> : vector<2x8xf32>
    %59 = vector.multi_reduction <add>, %58, %cst_33 [2] : vector<2x8x8xf32> to vector<2x8xf32>
    %60 = vector.shape_cast %59 : vector<2x8xf32> to vector<2x8x1xf32>
    %61 = tpu.reciprocal %60 {approx = true} : vector<2x8x1xf32> -> vector<2x8x1xf32>
    %62 = vector.broadcast %61 : vector<2x8x1xf32> to vector<2x8x8xf32>
    %63 = arith.mulf %58, %62 : vector<2x8x8xf32>
    %64 = arith.truncf %63 : vector<2x8x8xf32> to vector<2x8x8xbf16>
    "tpu.trace_start"() <{level = 10 : i32, message = "bqk,bkd->bqd"}> : () -> ()
    %cst_34 = arith.constant dense<0.000000e+00> : vector<2x8x8xf32>
    %65 = tpu.matmul %64, %52, %cst_34 {dimension_numbers = #tpu.dot_dimension_numbers<[2], [1], [1], [2], [0, 0, 0, 1, 1, 2], [0], [0]>} : vector<2x8x8xbf16>, vector<2x8x8xbf16>, vector<2x8x8xf32> -> vector<2x8x8xf32>
    "tpu.trace_stop"() : () -> ()
    %66 = vector.extract_strided_slice %29 {offsets = [0, 0, 16], sizes = [2, 8, 8], strides = [1, 1, 1]} : vector<2x8x32xbf16> to vector<2x8x8xbf16>
    %67 = vector.extract_strided_slice %31 {offsets = [0, 0, 16], sizes = [2, 8, 8], strides = [1, 1, 1]} : vector<2x8x32xbf16> to vector<2x8x8xbf16>
    %68 = vector.extract_strided_slice %33 {offsets = [0, 0, 16], sizes = [2, 8, 8], strides = [1, 1, 1]} : vector<2x8x32xbf16> to vector<2x8x8xbf16>
    "tpu.trace_start"() <{level = 10 : i32, message = "bqd,bkd->bqk"}> : () -> ()
    %cst_35 = arith.constant dense<0.000000e+00> : vector<2x8x8xf32>
    %69 = tpu.matmul %66, %67, %cst_35 {dimension_numbers = #tpu.dot_dimension_numbers<[2], [2], [1], [1], [0, 0, 0, 1, 1, 1], [0], [0]>} : vector<2x8x8xbf16>, vector<2x8x8xbf16>, vector<2x8x8xf32> -> vector<2x8x8xf32>
    "tpu.trace_stop"() : () -> ()
    %cst_36 = arith.constant dense<0xFF800000> : vector<2x8xf32>
    %70 = vector.multi_reduction <maximumf>, %69, %cst_36 [2] : vector<2x8x8xf32> to vector<2x8xf32>
    %71 = vector.shape_cast %70 : vector<2x8xf32> to vector<2x8x1xf32>
    %72 = vector.broadcast %71 : vector<2x8x1xf32> to vector<2x8x8xf32>
    %73 = arith.subf %69, %72 : vector<2x8x8xf32>
    %74 = math.exp %73 : vector<2x8x8xf32>
    %cst_37 = arith.constant dense<0.000000e+00> : vector<2x8xf32>
    %75 = vector.multi_reduction <add>, %74, %cst_37 [2] : vector<2x8x8xf32> to vector<2x8xf32>
    %76 = vector.shape_cast %75 : vector<2x8xf32> to vector<2x8x1xf32>
    %77 = tpu.reciprocal %76 {approx = true} : vector<2x8x1xf32> -> vector<2x8x1xf32>
    %78 = vector.broadcast %77 : vector<2x8x1xf32> to vector<2x8x8xf32>
    %79 = arith.mulf %74, %78 : vector<2x8x8xf32>
    %80 = arith.truncf %79 : vector<2x8x8xf32> to vector<2x8x8xbf16>
    "tpu.trace_start"() <{level = 10 : i32, message = "bqk,bkd->bqd"}> : () -> ()
    %cst_38 = arith.constant dense<0.000000e+00> : vector<2x8x8xf32>
    %81 = tpu.matmul %80, %68, %cst_38 {dimension_numbers = #tpu.dot_dimension_numbers<[2], [1], [1], [2], [0, 0, 0, 1, 1, 2], [0], [0]>} : vector<2x8x8xbf16>, vector<2x8x8xbf16>, vector<2x8x8xf32> -> vector<2x8x8xf32>
    "tpu.trace_stop"() : () -> ()
    %82 = vector.extract_strided_slice %29 {offsets = [0, 0, 24], sizes = [2, 8, 8], strides = [1, 1, 1]} : vector<2x8x32xbf16> to vector<2x8x8xbf16>
    %83 = vector.extract_strided_slice %31 {offsets = [0, 0, 24], sizes = [2, 8, 8], strides = [1, 1, 1]} : vector<2x8x32xbf16> to vector<2x8x8xbf16>
    %84 = vector.extract_strided_slice %33 {offsets = [0, 0, 24], sizes = [2, 8, 8], strides = [1, 1, 1]} : vector<2x8x32xbf16> to vector<2x8x8xbf16>
    "tpu.trace_start"() <{level = 10 : i32, message = "bqd,bkd->bqk"}> : () -> ()
    %cst_39 = arith.constant dense<0.000000e+00> : vector<2x8x8xf32>
    %85 = tpu.matmul %82, %83, %cst_39 {dimension_numbers = #tpu.dot_dimension_numbers<[2], [2], [1], [1], [0, 0, 0, 1, 1, 1], [0], [0]>} : vector<2x8x8xbf16>, vector<2x8x8xbf16>, vector<2x8x8xf32> -> vector<2x8x8xf32>
    "tpu.trace_stop"() : () -> ()
    %cst_40 = arith.constant dense<0xFF800000> : vector<2x8xf32>
    %86 = vector.multi_reduction <maximumf>, %85, %cst_40 [2] : vector<2x8x8xf32> to vector<2x8xf32>
    %87 = vector.shape_cast %86 : vector<2x8xf32> to vector<2x8x1xf32>
    %88 = vector.broadcast %87 : vector<2x8x1xf32> to vector<2x8x8xf32>
    %89 = arith.subf %85, %88 : vector<2x8x8xf32>
    %90 = math.exp %89 : vector<2x8x8xf32>
    %cst_41 = arith.constant dense<0.000000e+00> : vector<2x8xf32>
    %91 = vector.multi_reduction <add>, %90, %cst_41 [2] : vector<2x8x8xf32> to vector<2x8xf32>
    %92 = vector.shape_cast %91 : vector<2x8xf32> to vector<2x8x1xf32>
    %93 = tpu.reciprocal %92 {approx = true} : vector<2x8x1xf32> -> vector<2x8x1xf32>
    %94 = vector.broadcast %93 : vector<2x8x1xf32> to vector<2x8x8xf32>
    %95 = arith.mulf %90, %94 : vector<2x8x8xf32>
    %96 = arith.truncf %95 : vector<2x8x8xf32> to vector<2x8x8xbf16>
    "tpu.trace_start"() <{level = 10 : i32, message = "bqk,bkd->bqd"}> : () -> ()
    %cst_42 = arith.constant dense<0.000000e+00> : vector<2x8x8xf32>
    %97 = tpu.matmul %96, %84, %cst_42 {dimension_numbers = #tpu.dot_dimension_numbers<[2], [1], [1], [2], [0, 0, 0, 1, 1, 2], [0], [0]>} : vector<2x8x8xbf16>, vector<2x8x8xbf16>, vector<2x8x8xf32> -> vector<2x8x8xf32>
    "tpu.trace_stop"() : () -> ()
    %98 = tpu.concatenate %49, %65, %81, %97 in 2 : vector<2x8x8xf32>, vector<2x8x8xf32>, vector<2x8x8xf32>, vector<2x8x8xf32> -> vector<2x8x32xf32>
    %99 = vector.shape_cast %98 : vector<2x8x32xf32> to vector<16x32xf32>
    %c0_43 = arith.constant 0 : index
    %c0_44 = arith.constant 0 : index
    %100 = vector.load %arg4[%c0_43, %c0_44] : memref<16x1xf32, #tpu.memory_space<vmem>>, vector<16x1xf32>
    %cst_45 = arith.constant 0.000000e+00 : f32
    %101 = vector.broadcast %cst_45 : f32 to vector<16x1xf32>
    %102 = arith.cmpf oeq, %100, %101 : vector<16x1xf32>
    %cst_46 = arith.constant 0.000000e+00 : f32
    %103 = vector.shape_cast %102 : vector<16x1xi1> to vector<16x1xi1>
    %104 = vector.broadcast %103 : vector<16x1xi1> to vector<16x32xi1>
    %105 = vector.broadcast %cst_46 : f32 to vector<16x32xf32>
    %106 = arith.select %104, %105, %99 : vector<16x32xi1>, vector<16x32xf32>
    %107 = arith.truncf %106 : vector<16x32xf32> to vector<16x32xbf16>
    %cst_47 = arith.constant dense<0.000000e+00> : vector<16x32xf32>
    %108 = tpu.matmul %107, %7, %cst_47 {dimension_numbers = #tpu.dot_dimension_numbers<[1], [0], [0], [1], [0, 0, 1, 1], [], []>} : vector<16x32xbf16>, vector<32x32xbf16>, vector<16x32xf32> -> vector<16x32xf32>
    %109 = vector.broadcast %11 : vector<1x32xf32> to vector<16x32xf32>
    %110 = arith.addf %108, %109 : vector<16x32xf32>
    %cst_48 = arith.constant dense<0.000000e+00> : vector<16xf32>
    %111 = vector.multi_reduction <add>, %110, %cst_48 [1] : vector<16x32xf32> to vector<16xf32>
    %112 = vector.shape_cast %111 : vector<16xf32> to vector<16x1xf32>
    %cst_49 = arith.constant 3.200000e+01 : f32
    %113 = vector.broadcast %cst_49 : f32 to vector<16x1xf32>
    %114 = arith.divf %112, %113 : vector<16x1xf32>
    %115 = vector.broadcast %114 : vector<16x1xf32> to vector<16x32xf32>
    %116 = arith.subf %110, %115 : vector<16x32xf32>
    %117 = arith.mulf %116, %116 : vector<16x32xf32>
    %cst_50 = arith.constant dense<0.000000e+00> : vector<16xf32>
    %118 = vector.multi_reduction <add>, %117, %cst_50 [1] : vector<16x32xf32> to vector<16xf32>
    %119 = vector.shape_cast %118 : vector<16xf32> to vector<16x1xf32>
    %cst_51 = arith.constant 3.200000e+01 : f32
    %120 = vector.broadcast %cst_51 : f32 to vector<16x1xf32>
    %121 = arith.divf %119, %120 : vector<16x1xf32>
    %122 = vector.broadcast %114 : vector<16x1xf32> to vector<16x32xf32>
    %123 = arith.subf %110, %122 : vector<16x32xf32>
    %cst_52 = arith.constant 9.99999974E-6 : f32
    %124 = vector.broadcast %cst_52 : f32 to vector<16x1xf32>
    %125 = arith.addf %121, %124 : vector<16x1xf32>
    %126 = math.rsqrt %125 : vector<16x1xf32>
    %127 = vector.broadcast %126 : vector<16x1xf32> to vector<16x32xf32>
    %128 = arith.mulf %123, %127 : vector<16x32xf32>
    %129 = vector.broadcast %12 : vector<1x32xf32> to vector<16x32xf32>
    %130 = arith.mulf %128, %129 : vector<16x32xf32>
    %131 = vector.broadcast %13 : vector<1x32xf32> to vector<16x32xf32>
    %132 = arith.addf %130, %131 : vector<16x32xf32>
    %133 = arith.truncf %132 : vector<16x32xf32> to vector<16x32xbf16>
    %c0_53 = arith.constant 0 : index
    %c0_54 = arith.constant 0 : index
    %134 = vector.load %arg7[%c0_53, %c0_54] : memref<16x32xbf16, #tpu.memory_space<vmem>>, vector<16x32xbf16>
    tpu.vector_store %arg7[%c0_53, %c0_54], %133 {strides = array<i32>} : memref<16x32xbf16, #tpu.memory_space<vmem>>, vector<16x32xbf16>,
    return
  }
  func.func @transform_0(%arg0: i32) -> (i32, i32) {
    %c0_i32 = arith.constant 0 : i32
    %c0_i32_0 = arith.constant 0 : i32
    return %arg0, %c0_i32 : i32, i32
  }
  func.func @transform_1(%arg0: i32) -> (i32, i32) {
    %c0_i32 = arith.constant 0 : i32
    %c0_i32_0 = arith.constant 0 : i32
    return %arg0, %c0_i32 : i32, i32
  }
  func.func @transform_2(%arg0: i32) -> (i32, i32) {
    %c0_i32 = arith.constant 0 : i32
    %c0_i32_0 = arith.constant 0 : i32
    return %arg0, %c0_i32 : i32, i32
  }
  func.func @transform_3(%arg0: i32) -> (i32, i32) {
    %c0_i32 = arith.constant 0 : i32
    %c0_i32_0 = arith.constant 0 : i32
    return %arg0, %c0_i32 : i32, i32
  }
  func.func @transform_4(%arg0: i32) -> (i32, i32, i32) {
    %c0_i32 = arith.constant 0 : i32
    %c0_i32_0 = arith.constant 0 : i32
    %c0_i32_1 = arith.constant 0 : i32
    %c0_i32_2 = arith.constant 0 : i32
    return %c0_i32, %c0_i32_0, %c0_i32_1 : i32, i32, i32
  }
  func.func @transform_5(%arg0: i32) -> (i32, i32) {
    %c0_i32 = arith.constant 0 : i32
    %c0_i32_0 = arith.constant 0 : i32
    %c0_i32_1 = arith.constant 0 : i32
    return %c0_i32, %c0_i32_0 : i32, i32
  }
  func.func @transform_6(%arg0: i32) -> (i32, i32) {
    %c0_i32 = arith.constant 0 : i32
    %c0_i32_0 = arith.constant 0 : i32
    return %arg0, %c0_i32 : i32, i32
  }
}

module attributes {stable_mosaic.version = 11 : i64} {
  func.func @_cross_mha_kernel(%arg0: i32, %arg1: memref<16x32xbf16, #tpu.memory_space<vmem>>, %arg2: memref<16x32xbf16, #tpu.memory_space<vmem>>, %arg3: memref<16x32xbf16, #tpu.memory_space<vmem>>, %arg4: memref<16x1xf32, #tpu.memory_space<vmem>>, %arg5: memref<4x32x32xbf16, #tpu.memory_space<vmem>>, %arg6: memref<6x32xf32, #tpu.memory_space<vmem>>, %arg7: memref<16x32xbf16, #tpu.memory_space<vmem>>) attributes {dimension_semantics = [#tpu.dimension_semantics<parallel>], iteration_bounds = array<i64: 2>, scalar_prefetch = 0 : i64, scratch_operands = 0 : i64, tpu.core_type = #tpu.core_type<tc>, window_params = [{transform_indices = @transform_0, window_bounds = array<i64: 16, 32>}, {transform_indices = @transform_1, window_bounds = array<i64: 16, 32>}, {transform_indices = @transform_2, window_bounds = array<i64: 16, 32>}, {transform_indices = @transform_3, window_bounds = array<i64: 16, 1>}, {pipeline_mode = #tpu.pipeline_mode<synchronous>, transform_indices = @transform_4, window_bounds = array<i64: 4, 32, 32>}, {pipeline_mode = #tpu.pipeline_mode<synchronous>, transform_indices = @transform_5, window_bounds = array<i64: 6, 32>}, {transform_indices = @transform_6, window_bounds = array<i64: 16, 32>}]} {
    %c0 = arith.constant 0 : index
    %c0_0 = arith.constant 0 : index
    %c0_1 = arith.constant 0 : index
    %0 = vector.load %arg5[%c0, %c0_0, %c0_1] : memref<4x32x32xbf16, #tpu.memory_space<vmem>>, vector<1x32x32xbf16>
    %1 = vector.shape_cast %0 : vector<1x32x32xbf16> to vector<32x32xbf16>
    %c1 = arith.constant 1 : index
    %c0_2 = arith.constant 0 : index
    %c0_3 = arith.constant 0 : index
    %2 = vector.load %arg5[%c1, %c0_2, %c0_3] : memref<4x32x32xbf16, #tpu.memory_space<vmem>>, vector<1x32x32xbf16>
    %3 = vector.shape_cast %2 : vector<1x32x32xbf16> to vector<32x32xbf16>
    %c2 = arith.constant 2 : index
    %c0_4 = arith.constant 0 : index
    %c0_5 = arith.constant 0 : index
    %4 = vector.load %arg5[%c2, %c0_4, %c0_5] : memref<4x32x32xbf16, #tpu.memory_space<vmem>>, vector<1x32x32xbf16>
    %5 = vector.shape_cast %4 : vector<1x32x32xbf16> to vector<32x32xbf16>
    %c3 = arith.constant 3 : index
    %c0_6 = arith.constant 0 : index
    %c0_7 = arith.constant 0 : index
    %6 = vector.load %arg5[%c3, %c0_6, %c0_7] : memref<4x32x32xbf16, #tpu.memory_space<vmem>>, vector<1x32x32xbf16>
    %7 = vector.shape_cast %6 : vector<1x32x32xbf16> to vector<32x32xbf16>
    %c0_8 = arith.constant 0 : index
    %c0_9 = arith.constant 0 : index
    %8 = vector.load %arg6[%c0_8, %c0_9] : memref<6x32xf32, #tpu.memory_space<vmem>>, vector<1x32xf32>
    %c1_10 = arith.constant 1 : index
    %c0_11 = arith.constant 0 : index
    %9 = vector.load %arg6[%c1_10, %c0_11] : memref<6x32xf32, #tpu.memory_space<vmem>>, vector<1x32xf32>
    %c2_12 = arith.constant 2 : index
    %c0_13 = arith.constant 0 : index
    %10 = vector.load %arg6[%c2_12, %c0_13] : memref<6x32xf32, #tpu.memory_space<vmem>>, vector<1x32xf32>
    %c3_14 = arith.constant 3 : index
    %c0_15 = arith.constant 0 : index
    %11 = vector.load %arg6[%c3_14, %c0_15] : memref<6x32xf32, #tpu.memory_space<vmem>>, vector<1x32xf32>
    %c4 = arith.constant 4 : index
    %c0_16 = arith.constant 0 : index
    %12 = vector.load %arg6[%c4, %c0_16] : memref<6x32xf32, #tpu.memory_space<vmem>>, vector<1x32xf32>
    %c5 = arith.constant 5 : index
    %c0_17 = arith.constant 0 : index
    %13 = vector.load %arg6[%c5, %c0_17] : memref<6x32xf32, #tpu.memory_space<vmem>>, vector<1x32xf32>
    %c0_18 = arith.constant 0 : index
    %c0_19 = arith.constant 0 : index
    %14 = vector.load %arg1[%c0_18, %c0_19] : memref<16x32xbf16, #tpu.memory_space<vmem>>, vector<16x32xbf16>
    %cst = arith.constant dense<0.000000e+00> : vector<16x32xf32>
    %15 = tpu.matmul %14, %1, %cst {dimension_numbers = #tpu.dot_dimension_numbers<[1], [0], [0], [1], [0, 0, 1, 1], [], []>} : vector<16x32xbf16>, vector<32x32xbf16>, vector<16x32xf32> -> vector<16x32xf32>
    %16 = vector.broadcast %8 : vector<1x32xf32> to vector<16x32xf32>
    %17 = arith.addf %15, %16 : vector<16x32xf32>
    %cst_20 = arith.constant 0.353553385 : f32
    %18 = vector.broadcast %cst_20 : f32 to vector<16x32xf32>
    %19 = arith.mulf %17, %18 : vector<16x32xf32>
    %c0_21 = arith.constant 0 : index
    %c0_22 = arith.constant 0 : index
    %20 = vector.load %arg2[%c0_21, %c0_22] : memref<16x32xbf16, #tpu.memory_space<vmem>>, vector<16x32xbf16>
    %cst_23 = arith.constant dense<0.000000e+00> : vector<16x32xf32>
    %21 = tpu.matmul %20, %3, %cst_23 {dimension_numbers = #tpu.dot_dimension_numbers<[1], [0], [0], [1], [0, 0, 1, 1], [], []>} : vector<16x32xbf16>, vector<32x32xbf16>, vector<16x32xf32> -> vector<16x32xf32>
    %22 = vector.broadcast %9 : vector<1x32xf32> to vector<16x32xf32>
    %23 = arith.addf %21, %22 : vector<16x32xf32>
    %c0_24 = arith.constant 0 : index
    %c0_25 = arith.constant 0 : index
    %24 = vector.load %arg3[%c0_24, %c0_25] : memref<16x32xbf16, #tpu.memory_space<vmem>>, vector<16x32xbf16>
    %cst_26 = arith.constant dense<0.000000e+00> : vector<16x32xf32>
    %25 = tpu.matmul %24, %5, %cst_26 {dimension_numbers = #tpu.dot_dimension_numbers<[1], [0], [0], [1], [0, 0, 1, 1], [], []>} : vector<16x32xbf16>, vector<32x32xbf16>, vector<16x32xf32> -> vector<16x32xf32>
    %26 = vector.broadcast %10 : vector<1x32xf32> to vector<16x32xf32>
    %27 = arith.addf %25, %26 : vector<16x32xf32>
    %28 = vector.shape_cast %19 : vector<16x32xf32> to vector<2x8x32xf32>
    %29 = arith.truncf %28 : vector<2x8x32xf32> to vector<2x8x32xbf16>
    %30 = vector.shape_cast %23 : vector<16x32xf32> to vector<2x8x32xf32>
    %31 = arith.truncf %30 : vector<2x8x32xf32> to vector<2x8x32xbf16>
    %32 = vector.shape_cast %27 : vector<16x32xf32> to vector<2x8x32xf32>
    %33 = arith.truncf %32 : vector<2x8x32xf32> to vector<2x8x32xbf16>
    %34 = vector.extract_strided_slice %29 {offsets = [0, 0, 0], sizes = [2, 8, 8], strides = [1, 1, 1]} : vector<2x8x32xbf16> to vector<2x8x8xbf16>
    %35 = vector.extract_strided_slice %31 {offsets = [0, 0, 0], sizes = [2, 8, 8], strides = [1, 1, 1]} : vector<2x8x32xbf16> to vector<2x8x8xbf16>
    %36 = vector.extract_strided_slice %33 {offsets = [0, 0, 0], sizes = [2, 8, 8], strides = [1, 1, 1]} : vector<2x8x32xbf16> to vector<2x8x8xbf16>
    "tpu.trace_start"() <{level = 10 : i32, message = "bqd,bkd->bqk"}> : () -> ()
    %cst_27 = arith.constant dense<0.000000e+00> : vector<2x8x8xf32>
    %37 = tpu.matmul %34, %35, %cst_27 {dimension_numbers = #tpu.dot_dimension_numbers<[2], [2], [1], [1], [0, 0, 0, 1, 1, 1], [0], [0]>} : vector<2x8x8xbf16>, vector<2x8x8xbf16>, vector<2x8x8xf32> -> vector<2x8x8xf32>
    "tpu.trace_stop"() : () -> ()
    %cst_28 = arith.constant dense<0xFF800000> : vector<2x8xf32>
    %38 = vector.multi_reduction <maximumf>, %37, %cst_28 [2] : vector<2x8x8xf32> to vector<2x8xf32>
    %39 = vector.shape_cast %38 : vector<2x8xf32> to vector<2x8x1xf32>
    %40 = vector.broadcast %39 : vector<2x8x1xf32> to vector<2x8x8xf32>
    %41 = arith.subf %37, %40 : vector<2x8x8xf32>
    %42 = math.exp %41 : vector<2x8x8xf32>
    %cst_29 = arith.constant dense<0.000000e+00> : vector<2x8xf32>
    %43 = vector.multi_reduction <add>, %42, %cst_29 [2] : vector<2x8x8xf32> to vector<2x8xf32>
    %44 = vector.shape_cast %43 : vector<2x8xf32> to vector<2x8x1xf32>
    %45 = tpu.reciprocal %44 {approx = true} : vector<2x8x1xf32> -> vector<2x8x1xf32>
    %46 = vector.broadcast %45 : vector<2x8x1xf32> to vector<2x8x8xf32>
    %47 = arith.mulf %42, %46 : vector<2x8x8xf32>
    %48 = arith.truncf %47 : vector<2x8x8xf32> to vector<2x8x8xbf16>
    "tpu.trace_start"() <{level = 10 : i32, message = "bqk,bkd->bqd"}> : () -> ()
    %cst_30 = arith.constant dense<0.000000e+00> : vector<2x8x8xf32>
    %49 = tpu.matmul %48, %36, %cst_30 {dimension_numbers = #tpu.dot_dimension_numbers<[2], [1], [1], [2], [0, 0, 0, 1, 1, 2], [0], [0]>} : vector<2x8x8xbf16>, vector<2x8x8xbf16>, vector<2x8x8xf32> -> vector<2x8x8xf32>
    "tpu.trace_stop"() : () -> ()
    %50 = vector.extract_strided_slice %29 {offsets = [0, 0, 8], sizes = [2, 8, 8], strides = [1, 1, 1]} : vector<2x8x32xbf16> to vector<2x8x8xbf16>
    %51 = vector.extract_strided_slice %31 {offsets = [0, 0, 8], sizes = [2, 8, 8], strides = [1, 1, 1]} : vector<2x8x32xbf16> to vector<2x8x8xbf16>
    %52 = vector.extract_strided_slice %33 {offsets = [0, 0, 8], sizes = [2, 8, 8], strides = [1, 1, 1]} : vector<2x8x32xbf16> to vector<2x8x8xbf16>
    "tpu.trace_start"() <{level = 10 : i32, message = "bqd,bkd->bqk"}> : () -> ()
    %cst_31 = arith.constant dense<0.000000e+00> : vector<2x8x8xf32>
    %53 = tpu.matmul %50, %51, %cst_31 {dimension_numbers = #tpu.dot_dimension_numbers<[2], [2], [1], [1], [0, 0, 0, 1, 1, 1], [0], [0]>} : vector<2x8x8xbf16>, vector<2x8x8xbf16>, vector<2x8x8xf32> -> vector<2x8x8xf32>
    "tpu.trace_stop"() : () -> ()
    %cst_32 = arith.constant dense<0xFF800000> : vector<2x8xf32>
    %54 = vector.multi_reduction <maximumf>, %53, %cst_32 [2] : vector<2x8x8xf32> to vector<2x8xf32>
    %55 = vector.shape_cast %54 : vector<2x8xf32> to vector<2x8x1xf32>
    %56 = vector.broadcast %55 : vector<2x8x1xf32> to vector<2x8x8xf32>
    %57 = arith.subf %53, %56 : vector<2x8x8xf32>
    %58 = math.exp %57 : vector<2x8x8xf32>
    %cst_33 = arith.constant dense<0.000000e+00> : vector<2x8xf32>
    %59 = vector.multi_reduction <add>, %58, %cst_33 [2] : vector<2x8x8xf32> to vector<2x8xf32>
    %60 = vector.shape_cast %59 : vector<2x8xf32> to vector<2x8x1xf32>
    %61 = tpu.reciprocal %60 {approx = true} : vector<2x8x1xf32> -> vector<2x8x1xf32>
    %62 = vector.broadcast %61 : vector<2x8x1xf32> to vector<2x8x8xf32>
    %63 = arith.mulf %58, %62 : vector<2x8x8xf32>
    %64 = arith.truncf %63 : vector<2x8x8xf32> to vector<2x8x8xbf16>
    "tpu.trace_start"() <{level = 10 : i32, message = "bqk,bkd->bqd"}> : () -> ()
    %cst_34 = arith.constant dense<0.000000e+00> : vector<2x8x8xf32>
    %65 = tpu.matmul %64, %52, %cst_34 {dimension_numbers = #tpu.dot_dimension_numbers<[2], [1], [1], [2], [0, 0, 0, 1, 1, 2], [0], [0]>} : vector<2x8x8xbf16>, vector<2x8x8xbf16>, vector<2x8x8xf32> -> vector<2x8x8xf32>
    "tpu.trace_stop"() : () -> ()
    %66 = vector.extract_strided_slice %29 {offsets = [0, 0, 16], sizes = [2, 8, 8], strides = [1, 1, 1]} : vector<2x8x32xbf16> to vector<2x8x8xbf16>
    %67 = vector.extract_strided_slice %31 {offsets = [0, 0, 16], sizes = [2, 8, 8], strides = [1, 1, 1]} : vector<2x8x32xbf16> to vector<2x8x8xbf16>
    %68 = vector.extract_strided_slice %33 {offsets = [0, 0, 16], sizes = [2, 8, 8], strides = [1, 1, 1]} : vector<2x8x32xbf16> to vector<2x8x8xbf16>
    "tpu.trace_start"() <{level = 10 : i32, message = "bqd,bkd->bqk"}> : () -> ()
    %cst_35 = arith.constant dense<0.000000e+00> : vector<2x8x8xf32>
    %69 = tpu.matmul %66, %67, %cst_35 {dimension_numbers = #tpu.dot_dimension_numbers<[2], [2], [1], [1], [0, 0, 0, 1, 1, 1], [0], [0]>} : vector<2x8x8xbf16>, vector<2x8x8xbf16>, vector<2x8x8xf32> -> vector<2x8x8xf32>
    "tpu.trace_stop"() : () -> ()
    %cst_36 = arith.constant dense<0xFF800000> : vector<2x8xf32>
    %70 = vector.multi_reduction <maximumf>, %69, %cst_36 [2] : vector<2x8x8xf32> to vector<2x8xf32>
    %71 = vector.shape_cast %70 : vector<2x8xf32> to vector<2x8x1xf32>
    %72 = vector.broadcast %71 : vector<2x8x1xf32> to vector<2x8x8xf32>
    %73 = arith.subf %69, %72 : vector<2x8x8xf32>
    %74 = math.exp %73 : vector<2x8x8xf32>
    %cst_37 = arith.constant dense<0.000000e+00> : vector<2x8xf32>
    %75 = vector.multi_reduction <add>, %74, %cst_37 [2] : vector<2x8x8xf32> to vector<2x8xf32>
    %76 = vector.shape_cast %75 : vector<2x8xf32> to vector<2x8x1xf32>
    %77 = tpu.reciprocal %76 {approx = true} : vector<2x8x1xf32> -> vector<2x8x1xf32>
    %78 = vector.broadcast %77 : vector<2x8x1xf32> to vector<2x8x8xf32>
    %79 = arith.mulf %74, %78 : vector<2x8x8xf32>
    %80 = arith.truncf %79 : vector<2x8x8xf32> to vector<2x8x8xbf16>
    "tpu.trace_start"() <{level = 10 : i32, message = "bqk,bkd->bqd"}> : () -> ()
    %cst_38 = arith.constant dense<0.000000e+00> : vector<2x8x8xf32>
    %81 = tpu.matmul %80, %68, %cst_38 {dimension_numbers = #tpu.dot_dimension_numbers<[2], [1], [1], [2], [0, 0, 0, 1, 1, 2], [0], [0]>} : vector<2x8x8xbf16>, vector<2x8x8xbf16>, vector<2x8x8xf32> -> vector<2x8x8xf32>
    "tpu.trace_stop"() : () -> ()
    %82 = vector.extract_strided_slice %29 {offsets = [0, 0, 24], sizes = [2, 8, 8], strides = [1, 1, 1]} : vector<2x8x32xbf16> to vector<2x8x8xbf16>
    %83 = vector.extract_strided_slice %31 {offsets = [0, 0, 24], sizes = [2, 8, 8], strides = [1, 1, 1]} : vector<2x8x32xbf16> to vector<2x8x8xbf16>
    %84 = vector.extract_strided_slice %33 {offsets = [0, 0, 24], sizes = [2, 8, 8], strides = [1, 1, 1]} : vector<2x8x32xbf16> to vector<2x8x8xbf16>
    "tpu.trace_start"() <{level = 10 : i32, message = "bqd,bkd->bqk"}> : () -> ()
    %cst_39 = arith.constant dense<0.000000e+00> : vector<2x8x8xf32>
    %85 = tpu.matmul %82, %83, %cst_39 {dimension_numbers = #tpu.dot_dimension_numbers<[2], [2], [1], [1], [0, 0, 0, 1, 1, 1], [0], [0]>} : vector<2x8x8xbf16>, vector<2x8x8xbf16>, vector<2x8x8xf32> -> vector<2x8x8xf32>
    "tpu.trace_stop"() : () -> ()
    %cst_40 = arith.constant dense<0xFF800000> : vector<2x8xf32>
    %86 = vector.multi_reduction <maximumf>, %85, %cst_40 [2] : vector<2x8x8xf32> to vector<2x8xf32>
    %87 = vector.shape_cast %86 : vector<2x8xf32> to vector<2x8x1xf32>
    %88 = vector.broadcast %87 : vector<2x8x1xf32> to vector<2x8x8xf32>
    %89 = arith.subf %85, %88 : vector<2x8x8xf32>
    %90 = math.exp %89 : vector<2x8x8xf32>
    %cst_41 = arith.constant dense<0.000000e+00> : vector<2x8xf32>
    %91 = vector.multi_reduction <add>, %90, %cst_41 [2] : vector<2x8x8xf32> to vector<2x8xf32>
    %92 = vector.shape_cast %91 : vector<2x8xf32> to vector<2x8x1xf32>
    %93 = tpu.reciprocal %92 {approx = true} : vector<2x8x1xf32> -> vector<2x8x1xf32>
    %94 = vector.broadcast %93 : vector<2x8x1xf32> to vector<2x8x8xf32>
    %95 = arith.mulf %90, %94 : vector<2x8x8xf32>
    %96 = arith.truncf %95 : vector<2x8x8xf32> to vector<2x8x8xbf16>
    "tpu.trace_start"() <{level = 10 : i32, message = "bqk,bkd->bqd"}> : () -> ()
    %cst_42 = arith.constant dense<0.000000e+00> : vector<2x8x8xf32>
    %97 = tpu.matmul %96, %84, %cst_42 {dimension_numbers = #tpu.dot_dimension_numbers<[2], [1], [1], [2], [0, 0, 0, 1, 1, 2], [0], [0]>} : vector<2x8x8xbf16>, vector<2x8x8xbf16>, vector<2x8x8xf32> -> vector<2x8x8xf32>
    "tpu.trace_stop"() : () -> ()
    %98 = tpu.concatenate %49, %65, %81, %97 in 2 : vector<2x8x8xf32>, vector<2x8x8xf32>, vector<2x8x8xf32>, vector<2x8x8xf32> -> vector<2x8x32xf32>
    %99 = vector.shape_cast %98 : vector<2x8x32xf32> to vector<16x32xf32>
    %c0_43 = arith.constant 0 : index
    %c0_44 = arith.constant 0 : index
    %100 = vector.load %arg4[%c0_43, %c0_44] : memref<16x1xf32, #tpu.memory_space<vmem>>, vector<16x1xf32>
    %cst_45 = arith.constant 0.000000e+00 : f32
    %101 = vector.broadcast %cst_45 : f32 to vector<16x1xf32>
    %102 = arith.cmpf oeq, %100, %101 : vector<16x1xf32>
    %cst_46 = arith.constant 0.000000e+00 : f32
    %103 = vector.shape_cast %102 : vector<16x1xi1> to vector<16x1xi1>
    %104 = vector.broadcast %103 : vector<16x1xi1> to vector<16x32xi1>
    %105 = vector.broadcast %cst_46 : f32 to vector<16x32xf32>
    %106 = arith.select %104, %105, %99 : vector<16x32xi1>, vector<16x32xf32>
    %107 = arith.truncf %106 : vector<16x32xf32> to vector<16x32xbf16>
    %cst_47 = arith.constant dense<0.000000e+00> : vector<16x32xf32>
    %108 = tpu.matmul %107, %7, %cst_47 {dimension_numbers = #tpu.dot_dimension_numbers<[1], [0], [0], [1], [0, 0, 1, 1], [], []>} : vector<16x32xbf16>, vector<32x32xbf16>, vector<16x32xf32> -> vector<16x32xf32>
    %109 = vector.broadcast %11 : vector<1x32xf32> to vector<16x32xf32>
    %110 = arith.addf %108, %109 : vector<16x32xf32>
    %cst_48 = arith.constant dense<0.000000e+00> : vector<16xf32>
    %111 = vector.multi_reduction <add>, %110, %cst_48 [1] : vector<16x32xf32> to vector<16xf32>
    %112 = vector.shape_cast %111 : vector<16xf32> to vector<16x1xf32>
    %cst_49 = arith.constant 3.200000e+01 : f32
    %113 = vector.broadcast %cst_49 : f32 to vector<16x1xf32>
    %114 = arith.divf %112, %113 : vector<16x1xf32>
    %115 = vector.broadcast %114 : vector<16x1xf32> to vector<16x32xf32>
    %116 = arith.subf %110, %115 : vector<16x32xf32>
    %117 = arith.mulf %116, %116 : vector<16x32xf32>
    %cst_50 = arith.constant dense<0.000000e+00> : vector<16xf32>
    %118 = vector.multi_reduction <add>, %117, %cst_50 [1] : vector<16x32xf32> to vector<16xf32>
    %119 = vector.shape_cast %118 : vector<16xf32> to vector<16x1xf32>
    %cst_51 = arith.constant 3.200000e+01 : f32
    %120 = vector.broadcast %cst_51 : f32 to vector<16x1xf32>
    %121 = arith.divf %119, %120 : vector<16x1xf32>
    %122 = vector.broadcast %114 : vector<16x1xf32> to vector<16x32xf32>
    %123 = arith.subf %110, %122 : vector<16x32xf32>
    %cst_52 = arith.constant 9.99999974E-6 : f32
    %124 = vector.broadcast %cst_52 : f32 to vector<16x1xf32>
    %125 = arith.addf %121, %124 : vector<16x1xf32>
    %126 = math.rsqrt %125 : vector<16x1xf32>
    %127 = vector.broadcast %126 : vector<16x1xf32> to vector<16x32xf32>
    %128 = arith.mulf %123, %127 : vector<16x32xf32>
    %129 = vector.broadcast %12 : vector<1x32xf32> to vector<16x32xf32>
    %130 = arith.mulf %128, %129 : vector<16x32xf32>
    %131 = vector.broadcast %13 : vector<1x32xf32> to vector<16x32xf32>
    %132 = arith.addf %130, %131 : vector<16x32xf32>
    %133 = arith.truncf %132 : vector<16x32xf32> to vector<16x32xbf16>
    %c0_53 = arith.constant 0 : index
    %c0_54 = arith.constant 0 : index
    %134 = vector.load %arg7[%c0_53, %c0_54] : memref<16x32xbf16, #tpu.memory_space<vmem>>, vector<16x32xbf16>
    tpu.vector_store %arg7[%c0_53, %c0_54], %133 {strides = array<i32>} : memref<16x32xbf16, #tpu.memory_space<vmem>>, vector<16x32xbf16>,
    return
  }
  func.func @transform_0(%arg0: i32) -> (i32, i32) {
    %c0_i32 = arith.constant 0 : i32
    %c0_i32_0 = arith.constant 0 : i32
    return %arg0, %c0_i32 : i32, i32
  }
  func.func @transform_1(%arg0: i32) -> (i32, i32) {
    %c0_i32 = arith.constant 0 : i32
    %c0_i32_0 = arith.constant 0 : i32
    return %arg0, %c0_i32 : i32, i32
  }
  func.func @transform_2(%arg0: i32) -> (i32, i32) {
    %c0_i32 = arith.constant 0 : i32
    %c0_i32_0 = arith.constant 0 : i32
    return %arg0, %c0_i32 : i32, i32
  }
  func.func @transform_3(%arg0: i32) -> (i32, i32) {
    %c0_i32 = arith.constant 0 : i32
    %c0_i32_0 = arith.constant 0 : i32
    return %arg0, %c0_i32 : i32, i32
  }
  func.func @transform_4(%arg0: i32) -> (i32, i32, i32) {
    %c0_i32 = arith.constant 0 : i32
    %c0_i32_0 = arith.constant 0 : i32
    %c0_i32_1 = arith.constant 0 : i32
    %c0_i32_2 = arith.constant 0 : i32
    return %c0_i32, %c0_i32_0, %c0_i32_1 : i32, i32, i32
  }
  func.func @transform_5(%arg0: i32) -> (i32, i32) {
    %c0_i32 = arith.constant 0 : i32
    %c0_i32_0 = arith.constant 0 : i32
    %c0_i32_1 = arith.constant 0 : i32
    return %c0_i32, %c0_i32_0 : i32, i32
  }
  func.func @transform_6(%arg0: i32) -> (i32, i32) {
    %c0_i32 = arith.constant 0 : i32
    %c0_i32_0 = arith.constant 0 : i32
    return %arg0, %c0_i32 : i32, i32
  }
}

</mosaic_0001>

<llo_original>
// kernel: tpu_custom_call.1
$region0: #{tpu_custom_call.1}
  #allocation0 [shape = 'u32[]', space=smem, size = 0x4, offset = 0x4, fixed_abs, tag = 'smem constant byte address 0x4 - core index']
  #allocation1 [shape = 'u32[144,128]{1,0:T(1,128)}', space=vmem, size = 0x12000, scoped, tag = 'internal scratch']
  %s0 = inlined_call_operand.vmem [shape: bf16[32,32], index: 0, kind: input, shape index: {}]
  %s1 = inlined_call_operand.vmem [shape: bf16[32,32], index: 1, kind: input, shape index: {}]
  %s2 = inlined_call_operand.hbm [shape: bf16[32,32], index: 2, kind: input, shape index: {}]
  %s3 = inlined_call_operand.vmem [shape: f32[32,1], index: 3, kind: input, shape index: {}]
  %s4 = inlined_call_operand.hbm [shape: bf16[4,32,32], index: 4, kind: input, shape index: {}]
  %s5 = inlined_call_operand.vmem [shape: f32[6,32], index: 5, kind: input, shape index: {}]
  %s6 = inlined_call_operand.hbm [shape: bf16[32,32], index: 6, kind: output, shape index: {}]
  %s7 = sld [smem:[#allocation0]]
  $region65: #{tpu_custom_call.1} parent=0
    _
  %s9 = ssub.s32 1, %s7
  %s10 = scalar_select 0, %s9, %s7
  $region1: #{tpu_custom_call.1} parent=0
    #allocation2 [shape = 'u8[8192]{0}', space=vmem, size = 0x2000, scoped, tag = 'input window, operand 2']
    #allocation3 [shape = 's32[2]{0}', space=sflag, size = 0x8, scoped, tag = 'scoped memory for tpu_custom_call.1']
    #allocation4 [shape = 's32[2]{0}', space=sflag, size = 0x8, scoped, tag = 'scoped memory for tpu_custom_call.1']
    #allocation5 [shape = 'u8[32768]{0}', space=vmem, size = 0x8000, scoped, tag = 'input window, operand 4, single buffered']
    #allocation6 [shape = 's32[1]{0}', space=sflag, size = 0x4, scoped, tag = 'scoped memory for tpu_custom_call.1']
    #allocation7 [shape = 'u8[8192]{0}', space=vmem, size = 0x2000, scoped, tag = 'output window, operand 0']
    %11 = vsyncpa [#allocation3], 0
    %s12 = scalar_lea.sflag [#allocation3], 1
    %13 = vsyncpa %s12, 0
    %14 = vsyncpa [#allocation6], 0
    %15 = vsyncpa [#allocation4], 0
    %s16 = scalar_lea.sflag [#allocation4], 1
    %17 = vsyncpa %s16, 0
    loop: start=0, step=1, limit=4
    $region2: #{tpu_custom_call.1} parent=1 // loop_pre_header
      _
    $region3: #{tpu_custom_call.1} parent=1 // loop_header
      %s19 = sphi 0, %s23
      %p20 = scmp.ge.s32.totalorder %s19, 4
      %s29 = sphi 0, %s31
      %s32 = sphi 0, %s29
      %s33 = sphi 0, %s32
      %s49 = sphi 0, %s33
      %s55 = sphi 0, %s57
      %s58 = sphi 0, %s55
      %s59 = sphi 0, %s58
      %s75 = sphi 0, %s59
      %s81 = sphi 0, %s83
      %s84 = sphi 0, %s81
      %s85 = sphi 0, %s84
      %s101 = sphi 0, %s85
      %s107 = sphi 0, %s109
      %s110 = sphi 0, %s107
      %s111 = sphi 0, %s110
      %s127 = sphi 0, %s111
      %s131 = sphi 0, %s131
      %s133 = sphi 0, %s131
      %s134 = sphi 0, %s133
      %s148 = sphi 0, %s134
      %s152 = sphi 0, %s152
      %s154 = sphi 0, %s152
      %s155 = sphi 0, %s154
      %s169 = sphi 0, %s155
      %s175 = sphi 0, %s177
      %s178 = sphi 0, %s175
      %s179 = sphi 0, %s178
      %s195 = sphi 0, %s179
    $region4: #{tpu_custom_call.1} parent=1 // loop_header_branch
      %22 = sbr.rel (%p20) target = $region8
    $region5: #{tpu_custom_call.1} parent=1 // loop_body
      %s24 = ssub.s32 %s19, 1
      %s25 = ssub.s32 %s19, 2
      %s26 = sadd.s32 %s19, 1
      %s27 = ssub.s32 %s19, %s26
      %p28 = scmp.eq.s32.totalorder %s27, 0
      %s30 = sadd.s32 %s29, 1
      %s31 = scalar_select %p28, %s29, %s30
      %p34 = pneg %p28
      %p35 = scmp.eq.s32.totalorder %s19, 1
      %p36 = por %p34, %p35
      %p37 = scmp.ne.s32.totalorder %s29, %s32
      %p38 = scmp.eq.s32.totalorder %s19, 0
      %p39 = por %p37, %p38
      %p40 = scmp.ne.s32.totalorder %s29, %s32
      %p41 = scmp.eq.s32.totalorder %s24, 1
      %p42 = por %p40, %p41
      %p43 = scmp.ne.s32.totalorder %s32, %s33
      %p44 = scmp.eq.s32.totalorder %s24, 0
      %p45 = por %p43, %p44
      %p46 = scmp.ne.s32.totalorder %s32, %s33
      %p47 = scmp.eq.s32.totalorder %s25, 1
      %p48 = por %p46, %p47
      %p50 = scmp.ne.s32.totalorder %s33, %s49
      %p51 = scmp.eq.s32.totalorder %s25, 0
      %p52 = por %p50, %p51
      %s53 = ssub.s32 %s19, %s26
      %p54 = scmp.eq.s32.totalorder %s53, 0
      %s56 = sadd.s32 %s55, 1
      %s57 = scalar_select %p54, %s55, %s56
      %p60 = pneg %p54
      %p61 = scmp.eq.s32.totalorder %s19, 1
      %p62 = por %p60, %p61
      %p63 = scmp.ne.s32.totalorder %s55, %s58
      %p64 = scmp.eq.s32.totalorder %s19, 0
      %p65 = por %p63, %p64
      %p66 = scmp.ne.s32.totalorder %s55, %s58
      %p67 = scmp.eq.s32.totalorder %s24, 1
      %p68 = por %p66, %p67
      %p69 = scmp.ne.s32.totalorder %s58, %s59
      %p70 = scmp.eq.s32.totalorder %s24, 0
      %p71 = por %p69, %p70
      %p72 = scmp.ne.s32.totalorder %s58, %s59
      %p73 = scmp.eq.s32.totalorder %s25, 1
      %p74 = por %p72, %p73
      %p76 = scmp.ne.s32.totalorder %s59, %s75
      %p77 = scmp.eq.s32.totalorder %s25, 0
      %p78 = por %p76, %p77
      %s79 = ssub.s32 %s19, %s26
      %p80 = scmp.eq.s32.totalorder %s79, 0
      %s82 = sadd.s32 %s81, 1
      %s83 = scalar_select %p80, %s81, %s82
      %p86 = pneg %p80
      %p87 = scmp.eq.s32.totalorder %s19, 1
      %p88 = por %p86, %p87
      %p89 = scmp.ne.s32.totalorder %s81, %s84
      %p90 = scmp.eq.s32.totalorder %s19, 0
      %p91 = por %p89, %p90
      %p92 = scmp.ne.s32.totalorder %s81, %s84
      %p93 = scmp.eq.s32.totalorder %s24, 1
      %p94 = por %p92, %p93
      %p95 = scmp.ne.s32.totalorder %s84, %s85
      %p96 = scmp.eq.s32.totalorder %s24, 0
      %p97 = por %p95, %p96
      %p98 = scmp.ne.s32.totalorder %s84, %s85
      %p99 = scmp.eq.s32.totalorder %s25, 1
      %p100 = por %p98, %p99
      %p102 = scmp.ne.s32.totalorder %s85, %s101
      %p103 = scmp.eq.s32.totalorder %s25, 0
      %p104 = por %p102, %p103
      %s105 = ssub.s32 %s19, %s26
      %p106 = scmp.eq.s32.totalorder %s105, 0
      %s108 = sadd.s32 %s107, 1
      %s109 = scalar_select %p106, %s107, %s108
      %p112 = pneg %p106
      %p113 = scmp.eq.s32.totalorder %s19, 1
      %p114 = por %p112, %p113
      %p115 = scmp.ne.s32.totalorder %s107, %s110
      %p116 = scmp.eq.s32.totalorder %s19, 0
      %p117 = por %p115, %p116
      %p118 = scmp.ne.s32.totalorder %s107, %s110
      %p119 = scmp.eq.s32.totalorder %s24, 1
      %p120 = por %p118, %p119
      %p121 = scmp.ne.s32.totalorder %s110, %s111
      %p122 = scmp.eq.s32.totalorder %s24, 0
      %p123 = por %p121, %p122
      %p124 = scmp.ne.s32.totalorder %s110, %s111
      %p125 = scmp.eq.s32.totalorder %s25, 1
      %p126 = por %p124, %p125
      %p128 = scmp.ne.s32.totalorder %s111, %s127
      %p129 = scmp.eq.s32.totalorder %s25, 0
      %p130 = por %p128, %p129
      %s132 = sadd.s32 %s131, 1
      %p135 = scmp.eq.s32.totalorder %s19, 1
      %p136 = scmp.ne.s32.totalorder %s131, %s133
      %p137 = scmp.eq.s32.totalorder %s19, 0
      %p138 = por %p136, %p137
      %p139 = scmp.ne.s32.totalorder %s131, %s133
      %p140 = scmp.eq.s32.totalorder %s24, 1
      %p141 = por %p139, %p140
      %p142 = scmp.ne.s32.totalorder %s133, %s134
      %p143 = scmp.eq.s32.totalorder %s24, 0
      %p144 = por %p142, %p143
      %p145 = scmp.ne.s32.totalorder %s133, %s134
      %p146 = scmp.eq.s32.totalorder %s25, 1
      %p147 = por %p145, %p146
      %p149 = scmp.ne.s32.totalorder %s134, %s148
      %p150 = scmp.eq.s32.totalorder %s25, 0
      %p151 = por %p149, %p150
      %s153 = sadd.s32 %s152, 1
      %p156 = scmp.eq.s32.totalorder %s19, 1
      %p157 = scmp.ne.s32.totalorder %s152, %s154
      %p158 = scmp.eq.s32.totalorder %s19, 0
      %p159 = por %p157, %p158
      %p160 = scmp.ne.s32.totalorder %s152, %s154
      %p161 = scmp.eq.s32.totalorder %s24, 1
      %p162 = por %p160, %p161
      %p163 = scmp.ne.s32.totalorder %s154, %s155
      %p164 = scmp.eq.s32.totalorder %s24, 0
      %p165 = por %p163, %p164
      %p166 = scmp.ne.s32.totalorder %s154, %s155
      %p167 = scmp.eq.s32.totalorder %s25, 1
      %p168 = por %p166, %p167
      %p170 = scmp.ne.s32.totalorder %s155, %s169
      %p171 = scmp.eq.s32.totalorder %s25, 0
      %p172 = por %p170, %p171
      %s173 = ssub.s32 %s19, %s26
      %p174 = scmp.eq.s32.totalorder %s173, 0
      %s176 = sadd.s32 %s175, 1
      %s177 = scalar_select %p174, %s175, %s176
      %p180 = pneg %p174
      %p181 = scmp.eq.s32.totalorder %s19, 1
      %p182 = por %p180, %p181
      %p183 = scmp.ne.s32.totalorder %s175, %s178
      %p184 = scmp.eq.s32.totalorder %s19, 0
      %p185 = por %p183, %p184
      %p186 = scmp.ne.s32.totalorder %s175, %s178
      %p187 = scmp.eq.s32.totalorder %s24, 1
      %p188 = por %p186, %p187
      %p189 = scmp.ne.s32.totalorder %s178, %s179
      %p190 = scmp.eq.s32.totalorder %s24, 0
      %p191 = por %p189, %p190
      %p192 = scmp.ne.s32.totalorder %s178, %s179
      %p193 = scmp.eq.s32.totalorder %s25, 1
      %p194 = por %p192, %p193
      %p196 = scmp.ne.s32.totalorder %s179, %s195
      %p197 = scmp.eq.s32.totalorder %s25, 0
      %p198 = por %p196, %p197
      %p199 = scmp.le.s32.totalorder 1, %s19
      %p200 = scmp.lt.s32.totalorder %s19, 3
      %p201 = pnand %p199, %p200
      %p202 = pneg %p201
      // Predicated region
      $region9: #{tpu_custom_call.1} parent=5 // pred_check
        _
      $region10: #{tpu_custom_call.1} parent=5 // pred_check_branch
        %204 = sbr.rel (%p201) target = $region12
      $region11: #{tpu_custom_call.1} parent=5 // pred_region
        %s205 = ssub.s32 %s19, 1
        // Predicated region
        $region13: #{tpu_custom_call.1} parent=11 // pred_check
          %p206 = pneg %p144
        $region14: #{tpu_custom_call.1} parent=11 // pred_check_branch
          %208 = sbr.rel (%p206) target = $region16
        $region15: #{tpu_custom_call.1} parent=11 // pred_region
          %s210 = ssub.s32 1024, 1024
          %211 = vsyncadd [#allocation6], %s210
          %s212 = sshll.u32 [#allocation5], 4
          %s213 = int_to_ptr.vmem [resolvable:$true] %s212
          %218 = dma.hbm_to_vmem [thread:$0]  %s4, 1024, %s213, [#allocation6], 64, 64, 4
        $region16: #{tpu_custom_call.1} parent=11 // pred_fallthru
          _
        // Predicated region
        $region17: #{tpu_custom_call.1} parent=11 // pred_check
          %p219 = pneg %p165
        $region18: #{tpu_custom_call.1} parent=11 // pred_check_branch
          %221 = sbr.rel (%p219) target = $region20
        $region19: #{tpu_custom_call.1} parent=11 // pred_region
          _
        $region20: #{tpu_custom_call.1} parent=11 // pred_fallthru
          _
      $region12: #{tpu_custom_call.1} parent=5 // pred_fallthru
        _
      %p222 = scmp.lt.s32.totalorder %s19, 2
      // Predicated region
      $region21: #{tpu_custom_call.1} parent=5 // pred_check
        %p223 = pneg %p222
      $region22: #{tpu_custom_call.1} parent=5 // pred_check_branch
        %225 = sbr.rel (%p223) target = $region24
      $region23: #{tpu_custom_call.1} parent=5 // pred_region
        // Predicated region
        $region25: #{tpu_custom_call.1} parent=23 // pred_check
          %p226 = pneg %p39
        $region26: #{tpu_custom_call.1} parent=23 // pred_check_branch
          %228 = sbr.rel (%p226) target = $region28
        $region27: #{tpu_custom_call.1} parent=23 // pred_region
          %s229 = smul.u32 2, %s19
          %p230 = scmp.lt.s32.totalorder %s229, 3
          %s231 = scalar_select %p230, %s229, 3
          %s232 = smul.addr %s231, 4
          %s233 = scalar_lea.vmem %s0, %s232
          %s234 = smul.u32 2, %s19
        $region28: #{tpu_custom_call.1} parent=23 // pred_fallthru
          _
        // Predicated region
        $region29: #{tpu_custom_call.1} parent=23 // pred_check
          %p235 = pneg %p65
        $region30: #{tpu_custom_call.1} parent=23 // pred_check_branch
          %237 = sbr.rel (%p235) target = $region32
        $region31: #{tpu_custom_call.1} parent=23 // pred_region
          %s238 = smul.u32 2, %s19
          %p239 = scmp.lt.s32.totalorder %s238, 3
          %s240 = scalar_select %p239, %s238, 3
          %s241 = smul.addr %s240, 4
          %s242 = scalar_lea.vmem %s1, %s241
          %s243 = smul.u32 2, %s19
        $region32: #{tpu_custom_call.1} parent=23 // pred_fallthru
          _
        // Predicated region
        $region33: #{tpu_custom_call.1} parent=23 // pred_check
          %p244 = pneg %p91
        $region34: #{tpu_custom_call.1} parent=23 // pred_check_branch
          %246 = sbr.rel (%p244) target = $region36
        $region35: #{tpu_custom_call.1} parent=23 // pred_region
          %s247 = sand.u32 %s81, 1
          %s248 = scalar_lea.sflag [#allocation3], %s247
          %s249 = sand.u32 %s81, 1
          %s250 = smul.addr %s249, 8
          %s251 = scalar_lea.vmem [#allocation2], %s250
          %s252 = smul.u32 2, %s19
          %s254 = ssub.s32 128, 128
          %255 = vsyncadd %s248, %s254
          %s256 = smul.addr %s252, 64
          %s257 = scalar_lea.hbm %s2, %s256
          %s258 = sshll.u32 %s251, 4
          %s259 = int_to_ptr.vmem [resolvable:$true] %s258
          %264 = dma.hbm_to_vmem [thread:$0]  %s257, 128, %s259, %s248, 64, 64, 4
        $region36: #{tpu_custom_call.1} parent=23 // pred_fallthru
          _
        // Predicated region
        $region37: #{tpu_custom_call.1} parent=23 // pred_check
          %p265 = pneg %p117
        $region38: #{tpu_custom_call.1} parent=23 // pred_check_branch
          %267 = sbr.rel (%p265) target = $region40
        $region39: #{tpu_custom_call.1} parent=23 // pred_region
          %s268 = smul.u32 2, %s19
          %p269 = scmp.lt.s32.totalorder %s268, 3
          %s270 = scalar_select %p269, %s268, 3
          %s271 = smul.addr %s270, 8
          %s272 = scalar_lea.vmem %s3, %s271
          %s273 = smul.u32 2, %s19
        $region40: #{tpu_custom_call.1} parent=23 // pred_fallthru
          _
      $region24: #{tpu_custom_call.1} parent=5 // pred_fallthru
        _
      %p274 = scmp.le.s32.totalorder 1, %s19
      %p275 = scmp.lt.s32.totalorder %s19, 3
      %p276 = pnand %p274, %p275
      %p277 = pneg %p276
      // Predicated region
      $region41: #{tpu_custom_call.1} parent=5 // pred_check
        _
      $region42: #{tpu_custom_call.1} parent=5 // pred_check_branch
        %279 = sbr.rel (%p276) target = $region44
      $region43: #{tpu_custom_call.1} parent=5 // pred_region
        %s280 = ssub.s32 %s19, 1
        %s281 = sand.u32 %s84, 1
        %s282 = scalar_lea.sflag [#allocation3], %s281
        %s283 = sand.u32 %s84, 1
        %s284 = smul.addr %s283, 8
        %s285 = scalar_lea.vmem [#allocation2], %s284
        // Predicated region
        $region45: #{tpu_custom_call.1} parent=43 // pred_check
          %p286 = pneg %p97
        $region46: #{tpu_custom_call.1} parent=43 // pred_check_branch
          %288 = sbr.rel (%p286) target = $region48
        $region47: #{tpu_custom_call.1} parent=43 // pred_region
          %289 = dma.done %s282, 128
        $region48: #{tpu_custom_call.1} parent=43 // pred_fallthru
          _
        // Predicated region
        $region49: #{tpu_custom_call.1} parent=43 // pred_check
          %p290 = pneg %p144
        $region50: #{tpu_custom_call.1} parent=43 // pred_check_branch
          %292 = sbr.rel (%p290) target = $region52
        $region51: #{tpu_custom_call.1} parent=43 // pred_region
          %293 = dma.done [#allocation6], 1024
        $region52: #{tpu_custom_call.1} parent=43 // pred_fallthru
          _
        %s294 = smul.u32 2, %s24
        %p295 = scmp.lt.s32.totalorder %s294, 3
        %s296 = scalar_select %p295, %s294, 3
        %s297 = smul.addr %s296, 4
        %s298 = scalar_lea.vmem %s0, %s297
        %p299 = pneg %p45
        %p300 = pneg %p42
        %s301 = smul.u32 2, %s24
        %p302 = scmp.lt.s32.totalorder %s301, 3
        %s303 = scalar_select %p302, %s301, 3
        %s304 = smul.addr %s303, 4
        %s305 = scalar_lea.vmem %s1, %s304
        %p306 = pneg %p71
        %p307 = pneg %p68
        %s308 = sand.u32 %s84, 1
        %s309 = scalar_lea.sflag [#allocation3], %s308
        %s310 = sand.u32 %s84, 1
        %s311 = smul.addr %s310, 8
        %s312 = scalar_lea.vmem [#allocation2], %s311
        %p313 = pneg %p97
        %p314 = pneg %p94
        %s315 = smul.u32 2, %s24
        %p316 = scmp.lt.s32.totalorder %s315, 3
        %s317 = scalar_select %p316, %s315, 3
        %s318 = smul.addr %s317, 8
        %s319 = scalar_lea.vmem %s3, %s318
        %p320 = pneg %p123
        %p321 = pneg %p120
        %p322 = pneg %p144
        %p323 = pneg %p141
        %p324 = pneg %p165
        %p325 = pneg %p162
        %p326 = pneg %p191
        %p327 = pneg %p188
        %s328 = sand.u32 %s178, 1
        %s329 = scalar_lea.sflag [#allocation4], %s328
        %s330 = sand.u32 %s178, 1
        %s331 = smul.addr %s330, 8
        %s332 = scalar_lea.vmem [#allocation7], %s331
        %s333 = smul.u32 2, %s24
        %p334 = scmp.lt.s32.totalorder %s333, 3
        %s335 = scalar_select %p334, %s333, 3
        %s336 = smul.addr %s335, 4
        %s337 = scalar_lea.vmem %s0, %s336
        %s338 = smul.u32 2, %s24
        %s339 = smul.u32 2, %s24
        %p340 = scmp.lt.s32.totalorder %s339, 3
        %s341 = scalar_select %p340, %s339, 3
        %s342 = smul.addr %s341, 4
        %s343 = scalar_lea.vmem %s1, %s342
        %s344 = smul.u32 2, %s24
        %s345 = smul.u32 2, %s24
        %s346 = smul.u32 2, %s24
        %p347 = scmp.lt.s32.totalorder %s346, 3
        %s348 = scalar_select %p347, %s346, 3
        %s349 = smul.addr %s348, 8
        %s350 = scalar_lea.vmem %s3, %s349
        %s351 = smul.u32 2, %s24
        %s352 = smul.u32 2, %s24
        %v354 = vld [vmem:[#allocation5] sm:$0xf]
        %v355 = vld [vmem:[#allocation5 + $0x4] sm:$0xf]
        %v356 = vld [vmem:[#allocation5 + $0x8] sm:$0xf]
        %v357 = vld [vmem:[#allocation5 + $0xc] sm:$0xf]
        %s358 = scalar_lea.vmem [#allocation5], 16
        %v359 = vld [vmem:[%s358] sm:$0xf]
        %v360 = vld [vmem:[%s358 + $0x4] sm:$0xf]
        %v361 = vld [vmem:[%s358 + $0x8] sm:$0xf]
        %v362 = vld [vmem:[%s358 + $0xc] sm:$0xf]
        %s363 = scalar_lea.vmem [#allocation5], 32
        %v364 = vld [vmem:[%s363] sm:$0xf]
        %v365 = vld [vmem:[%s363 + $0x4] sm:$0xf]
        %v366 = vld [vmem:[%s363 + $0x8] sm:$0xf]
        %v367 = vld [vmem:[%s363 + $0xc] sm:$0xf]
        %s368 = scalar_lea.vmem [#allocation5], 48
        %v369 = vld [vmem:[%s368] sm:$0xf]
        %v370 = vld [vmem:[%s368 + $0x4] sm:$0xf]
        %v371 = vld [vmem:[%s368 + $0x8] sm:$0xf]
        %v372 = vld [vmem:[%s368 + $0xc] sm:$0xf]
        %v373 = vld [vmem:[%s5] sm:$0x1]
        %v374 = vld [vmem:[%s5 + $0x1] sm:$0x1]
        %v375 = vld [vmem:[%s5 + $0x2] sm:$0x1]
        %v376 = vld [vmem:[%s5 + $0x3] sm:$0x1]
        %v377 = vld [vmem:[%s5 + $0x4] sm:$0x1]
        %v378 = vld [vmem:[%s5 + $0x5] sm:$0x1]
        %v379 = vld [vmem:[%s337] sm:$0xf]
        %v380 = vld [vmem:[%s337 + $0x4] sm:$0xf]
        %v381 = vlaneseq
        %v382 = vshrl.u32 %v381, 7
        %v383 = vsub.s32 0, %v382
        %v384 = vrot.slane %v373, %v383
        %v387 = vunpack.c.l.b16 %v379
        %v388 = vunpack.c.l.b16 %v380
        %v389 = vpack.c.b16 %v388, %v387
        %v394 = vunpack.c.l.b16 %v354
        %v395 = vunpack.c.l.b16 %v355
        %v396 = vunpack.c.l.b16 %v356
        %v397 = vunpack.c.l.b16 %v357
        %v398 = vpack.c.b16 %v395, %v394
        %v399 = vpack.c.b16 %v397, %v396
        %vm402 = vcmask 261120
        %v404 = vsel %vm402, %v389, 0
        %406 = vmatprep.subr.bf16.mxu0 0
        %407 = vmatpush1.bf16.msra.mxu0 0
        %408 = vmatprep.subr.bf16.mxu0 0
        %409 = vmatpush1.bf16.msra.mxu0 0
        %410 = vmatprep.subr.bf16.mxu0 0
        %411 = vmatpush1.bf16.msra.mxu0 0
        %412 = vmatprep.subr.bf16.mxu0 0
        %413 = vmatpush1.bf16.msra.mxu0 0
        %414 = vmatprep.subr.bf16.mxu0 0
        %415 = vmatpush1.bf16.msra.mxu0 0
        %416 = vmatprep.subr.bf16.mxu0 0
        %417 = vmatpush1.bf16.msra.mxu0 0
        %418 = vmatprep.subr.bf16.mxu0 0
        %419 = vmatpush1.bf16.msra.mxu0 %v399
        %420 = vmatprep.subr.bf16.mxu0 0
        %421 = vmatpush1.bf16.msra.mxu0 %v398
        %422 = vmatprep.subr.bf16.mxu0 0
        %423 = vmatpush2.bf16.msra.mxu0 0
        %424 = vmatprep.subr.bf16.mxu0 0
        %425 = vmatpush2.bf16.msra.mxu0 0
        %426 = vmatprep.subr.bf16.mxu0 0
        %427 = vmatpush2.bf16.msra.mxu0 0
        %428 = vmatprep.subr.bf16.mxu0 0
        %429 = vmatpush2.bf16.msra.mxu0 0
        %430 = vmatprep.subr.bf16.mxu0 0
        %431 = vmatpush2.bf16.msra.mxu0 0
        %432 = vmatprep.subr.bf16.mxu0 0
        %433 = vmatpush2.bf16.msra.mxu0 0
        %434 = vmatprep.subr.bf16.mxu0 0
        %435 = vmatpush2.bf16.msra.mxu0 0
        %436 = vmatprep.subr.bf16.mxu0 0
        %437 = vmatpush2.bf16.msra.mxu0 0
        %438 = vmatprep.mubr.bf16.mxu0 0
        %439 = vmatmul.mubr.bf16.gmra.mxu0 %v404
        %v440 = vpop.f32.mrf.mxu0
        %v441 = vadd.f32 %v384, %v440
        %v442 = vpop.f32.mrf.mxu0
        %v443 = vpop.f32.mrf.mxu0
        %v444 = vadd.f32 %v384, %v443
        %v445 = vpop.f32.mrf.mxu0
        %446 = vdwg.mxu0
        %v447 = vmul.f32 %v441, 0.35355338
        %v448 = vmul.f32 %v444, 0.35355338
        %v449 = vld [vmem:[%s343] sm:$0xf]
        %v450 = vld [vmem:[%s343 + $0x4] sm:$0xf]
        %v451 = vlaneseq
        %v452 = vshrl.u32 %v451, 7
        %v453 = vsub.s32 0, %v452
        %v454 = vrot.slane %v374, %v453
        %v457 = vunpack.c.l.b16 %v449
        %v458 = vunpack.c.l.b16 %v450
        %v459 = vpack.c.b16 %v458, %v457
        %v464 = vunpack.c.l.b16 %v359
        %v465 = vunpack.c.l.b16 %v360
        %v466 = vunpack.c.l.b16 %v361
        %v467 = vunpack.c.l.b16 %v362
        %v468 = vpack.c.b16 %v465, %v464
        %v469 = vpack.c.b16 %v467, %v466
        %v473 = vsel %vm402, %v459, 0
        %475 = vmatprep.subr.bf16.mxu0 0
        %476 = vmatpush1.bf16.msra.mxu0 0
        %477 = vmatprep.subr.bf16.mxu0 0
        %478 = vmatpush1.bf16.msra.mxu0 0
        %479 = vmatprep.subr.bf16.mxu0 0
        %480 = vmatpush1.bf16.msra.mxu0 0
        %481 = vmatprep.subr.bf16.mxu0 0
        %482 = vmatpush1.bf16.msra.mxu0 0
        %483 = vmatprep.subr.bf16.mxu0 0
        %484 = vmatpush1.bf16.msra.mxu0 0
        %485 = vmatprep.subr.bf16.mxu0 0
        %486 = vmatpush1.bf16.msra.mxu0 0
        %487 = vmatprep.subr.bf16.mxu0 0
        %488 = vmatpush1.bf16.msra.mxu0 %v469
        %489 = vmatprep.subr.bf16.mxu0 0
        %490 = vmatpush1.bf16.msra.mxu0 %v468
        %491 = vmatprep.subr.bf16.mxu0 0
        %492 = vmatpush2.bf16.msra.mxu0 0
        %493 = vmatprep.subr.bf16.mxu0 0
        %494 = vmatpush2.bf16.msra.mxu0 0
        %495 = vmatprep.subr.bf16.mxu0 0
        %496 = vmatpush2.bf16.msra.mxu0 0
        %497 = vmatprep.subr.bf16.mxu0 0
        %498 = vmatpush2.bf16.msra.mxu0 0
        %499 = vmatprep.subr.bf16.mxu0 0
        %500 = vmatpush2.bf16.msra.mxu0 0
        %501 = vmatprep.subr.bf16.mxu0 0
        %502 = vmatpush2.bf16.msra.mxu0 0
        %503 = vmatprep.subr.bf16.mxu0 0
        %504 = vmatpush2.bf16.msra.mxu0 0
        %505 = vmatprep.subr.bf16.mxu0 0
        %506 = vmatpush2.bf16.msra.mxu0 0
        %507 = vmatprep.mubr.bf16.mxu0 0
        %508 = vmatmul.mubr.bf16.gmra.mxu0 %v473
        %v509 = vpop.f32.mrf.mxu0
        %v510 = vadd.f32 %v454, %v509
        %v511 = vpop.f32.mrf.mxu0
        %v512 = vpop.f32.mrf.mxu0
        %v513 = vadd.f32 %v454, %v512
        %v514 = vpop.f32.mrf.mxu0
        %515 = vdwg.mxu0
        %v516 = vld [vmem:[%s285] sm:$0xf]
        %v517 = vld [vmem:[%s285 + $0x4] sm:$0xf]
        %v518 = vlaneseq
        %v519 = vshrl.u32 %v518, 7
        %v520 = vsub.s32 0, %v519
        %v521 = vrot.slane %v375, %v520
        %v524 = vunpack.c.l.b16 %v516
        %v525 = vunpack.c.l.b16 %v517
        %v526 = vpack.c.b16 %v525, %v524
        %v531 = vunpack.c.l.b16 %v364
        %v532 = vunpack.c.l.b16 %v365
        %v533 = vunpack.c.l.b16 %v366
        %v534 = vunpack.c.l.b16 %v367
        %v535 = vpack.c.b16 %v532, %v531
        %v536 = vpack.c.b16 %v534, %v533
        %v540 = vsel %vm402, %v526, 0
        %542 = vmatprep.subr.bf16.mxu0 0
        %543 = vmatpush1.bf16.msra.mxu0 0
        %544 = vmatprep.subr.bf16.mxu0 0
        %545 = vmatpush1.bf16.msra.mxu0 0
        %546 = vmatprep.subr.bf16.mxu0 0
        %547 = vmatpush1.bf16.msra.mxu0 0
        %548 = vmatprep.subr.bf16.mxu0 0
        %549 = vmatpush1.bf16.msra.mxu0 0
        %550 = vmatprep.subr.bf16.mxu0 0
        %551 = vmatpush1.bf16.msra.mxu0 0
        %552 = vmatprep.subr.bf16.mxu0 0
        %553 = vmatpush1.bf16.msra.mxu0 0
        %554 = vmatprep.subr.bf16.mxu0 0
        %555 = vmatpush1.bf16.msra.mxu0 %v536
        %556 = vmatprep.subr.bf16.mxu0 0
        %557 = vmatpush1.bf16.msra.mxu0 %v535
        %558 = vmatprep.subr.bf16.mxu0 0
        %559 = vmatpush2.bf16.msra.mxu0 0
        %560 = vmatprep.subr.bf16.mxu0 0
        %561 = vmatpush2.bf16.msra.mxu0 0
        %562 = vmatprep.subr.bf16.mxu0 0
        %563 = vmatpush2.bf16.msra.mxu0 0
        %564 = vmatprep.subr.bf16.mxu0 0
        %565 = vmatpush2.bf16.msra.mxu0 0
        %566 = vmatprep.subr.bf16.mxu0 0
        %567 = vmatpush2.bf16.msra.mxu0 0
        %568 = vmatprep.subr.bf16.mxu0 0
        %569 = vmatpush2.bf16.msra.mxu0 0
        %570 = vmatprep.subr.bf16.mxu0 0
        %571 = vmatpush2.bf16.msra.mxu0 0
        %572 = vmatprep.subr.bf16.mxu0 0
        %573 = vmatpush2.bf16.msra.mxu0 0
        %574 = vmatprep.mubr.bf16.mxu0 0
        %575 = vmatmul.mubr.bf16.gmra.mxu0 %v540
        %v576 = vpop.f32.mrf.mxu0
        %v577 = vadd.f32 %v521, %v576
        %v578 = vpop.f32.mrf.mxu0
        %v579 = vpop.f32.mrf.mxu0
        %v580 = vadd.f32 %v521, %v579
        %v581 = vpop.f32.mrf.mxu0
        %582 = vdwg.mxu0
        %v583 = vpack.c.bf16 %v447, %v447
        %v584 = vpack.c.bf16 %v448, %v448
        %v585 = vpack.c.bf16 %v510, %v510
        %v586 = vpack.c.bf16 %v513, %v513
        %v587 = vpack.c.bf16 %v577, %v577
        %v588 = vpack.c.bf16 %v580, %v580
        %vm589 = vcmask 64512
        %v591 = vsel %vm589, %v583, 0
        %v594 = vsel %vm589, %v585, 0
        %596 = vmatprep.subr.bf16.mxu0 0
        %597 = vmatpush1.bf16.xpose.msra.mxu0 0
        %598 = vmatprep.subr.bf16.mxu0 0
        %599 = vmatpush1.bf16.xpose.msra.mxu0 0
        %600 = vmatprep.subr.bf16.mxu0 0
        %601 = vmatpush1.bf16.xpose.msra.mxu0 0
        %602 = vmatprep.subr.bf16.mxu0 0
        %603 = vmatpush1.bf16.xpose.msra.mxu0 0
        %604 = vmatprep.subr.bf16.mxu0 0
        %605 = vmatpush1.bf16.xpose.msra.mxu0 0
        %606 = vmatprep.subr.bf16.mxu0 0
        %607 = vmatpush1.bf16.xpose.msra.mxu0 0
        %608 = vmatprep.subr.bf16.mxu0 0
        %609 = vmatpush1.bf16.xpose.msra.mxu0 0
        %610 = vmatprep.subr.bf16.mxu0 0
        %611 = vmatpush1.bf16.xpose.msra.mxu0 %v594
        %612 = vmatprep.subr.bf16.mxu0 0
        %613 = vmatpush2.bf16.xpose.msra.mxu0 0
        %614 = vmatprep.subr.bf16.mxu0 0
        %615 = vmatpush2.bf16.xpose.msra.mxu0 0
        %616 = vmatprep.subr.bf16.mxu0 0
        %617 = vmatpush2.bf16.xpose.msra.mxu0 0
        %618 = vmatprep.subr.bf16.mxu0 0
        %619 = vmatpush2.bf16.xpose.msra.mxu0 0
        %620 = vmatprep.subr.bf16.mxu0 0
        %621 = vmatpush2.bf16.xpose.msra.mxu0 0
        %622 = vmatprep.subr.bf16.mxu0 0
        %623 = vmatpush2.bf16.xpose.msra.mxu0 0
        %624 = vmatprep.subr.bf16.mxu0 0
        %625 = vmatpush2.bf16.xpose.msra.mxu0 0
        %626 = vmatprep.subr.bf16.mxu0 0
        %627 = vmatpush2.bf16.xpose.msra.mxu0 0
        %628 = vmatprep.mubr.bf16.mxu0 0
        %629 = vmatmul.mubr.bf16.gmra.mxu0 %v591
        %v630 = vpop.f32.mrf.mxu0
        %v631 = vadd.f32 0.0, %v630
        %v632 = vpop.f32.mrf.mxu0
        %v633 = vpop.f32.mrf.mxu0
        %v634 = vpop.f32.mrf.mxu0
        %635 = vdwg.mxu0
        %v637 = vsel %vm589, %v584, 0
        %v640 = vsel %vm589, %v586, 0
        %642 = vmatprep.subr.bf16.mxu0 0
        %643 = vmatpush1.bf16.xpose.msra.mxu0 0
        %644 = vmatprep.subr.bf16.mxu0 0
        %645 = vmatpush1.bf16.xpose.msra.mxu0 0
        %646 = vmatprep.subr.bf16.mxu0 0
        %647 = vmatpush1.bf16.xpose.msra.mxu0 0
        %648 = vmatprep.subr.bf16.mxu0 0
        %649 = vmatpush1.bf16.xpose.msra.mxu0 0
        %650 = vmatprep.subr.bf16.mxu0 0
        %651 = vmatpush1.bf16.xpose.msra.mxu0 0
        %652 = vmatprep.subr.bf16.mxu0 0
        %653 = vmatpush1.bf16.xpose.msra.mxu0 0
        %654 = vmatprep.subr.bf16.mxu0 0
        %655 = vmatpush1.bf16.xpose.msra.mxu0 0
        %656 = vmatprep.subr.bf16.mxu0 0
        %657 = vmatpush1.bf16.xpose.msra.mxu0 %v640
        %658 = vmatprep.subr.bf16.mxu0 0
        %659 = vmatpush2.bf16.xpose.msra.mxu0 0
        %660 = vmatprep.subr.bf16.mxu0 0
        %661 = vmatpush2.bf16.xpose.msra.mxu0 0
        %662 = vmatprep.subr.bf16.mxu0 0
        %663 = vmatpush2.bf16.xpose.msra.mxu0 0
        %664 = vmatprep.subr.bf16.mxu0 0
        %665 = vmatpush2.bf16.xpose.msra.mxu0 0
        %666 = vmatprep.subr.bf16.mxu0 0
        %667 = vmatpush2.bf16.xpose.msra.mxu0 0
        %668 = vmatprep.subr.bf16.mxu0 0
        %669 = vmatpush2.bf16.xpose.msra.mxu0 0
        %670 = vmatprep.subr.bf16.mxu0 0
        %671 = vmatpush2.bf16.xpose.msra.mxu0 0
        %672 = vmatprep.subr.bf16.mxu0 0
        %673 = vmatpush2.bf16.xpose.msra.mxu0 0
        %674 = vmatprep.mubr.bf16.mxu0 0
        %675 = vmatmul.mubr.bf16.gmra.mxu0 %v637
        %v676 = vpop.f32.mrf.mxu0
        %v677 = vadd.f32 0.0, %v676
        %v678 = vpop.f32.mrf.mxu0
        %v679 = vpop.f32.mrf.mxu0
        %v680 = vpop.f32.mrf.mxu0
        %681 = vdwg.mxu0
        %v682 = vsel %vm589, %v631, -inf
        %683 = vmax.xlane.f32.xlu0 %v682
        %v684 = vpop.xlane.xlu0 %683
        %v685 = vsel %vm589, %v677, -inf
        %686 = vmax.xlane.f32.xlu0 %v685
        %v687 = vpop.xlane.xlu0 %686
        %v688 = vsub.f32 %v631, %v684
        %v689 = vsub.f32 %v677, %v687
        %v690 = vmul.f32 %v688, 1.442695
        %v691 = vpow.pop %v690
        %v692 = vmul.f32 %v689, 1.442695
        %v693 = vpow.pop %v692
        %v694 = vsel %vm589, %v691, 0.0
        %695 = vadd.xlane.f32.xlu0 %v694
        %v696 = vpop.xlane.xlu0 %695
        %v697 = vsel %vm589, %v693, 0.0
        %698 = vadd.xlane.f32.xlu0 %v697
        %v699 = vpop.xlane.xlu0 %698
        %v700 = vrcp.pop %v696
        %v701 = vrcp.pop %v699
        %v702 = vmul.f32 %v691, %v700
        %v703 = vmul.f32 %v693, %v701
        %v704 = vpack.c.bf16 %v702, %v702
        %v705 = vpack.c.bf16 %v703, %v703
        %v707 = vsel %vm589, %v704, 0
        %vm709 = vcmask 1043456
        %v711 = vsel %vm709, %v587, 0
        %713 = vmatprep.subr.bf16.mxu0 0
        %714 = vmatpush1.bf16.msra.mxu0 0
        %715 = vmatprep.subr.bf16.mxu0 0
        %716 = vmatpush1.bf16.msra.mxu0 0
        %717 = vmatprep.subr.bf16.mxu0 0
        %718 = vmatpush1.bf16.msra.mxu0 0
        %719 = vmatprep.subr.bf16.mxu0 0
        %720 = vmatpush1.bf16.msra.mxu0 0
        %721 = vmatprep.subr.bf16.mxu0 0
        %722 = vmatpush1.bf16.msra.mxu0 0
        %723 = vmatprep.subr.bf16.mxu0 0
        %724 = vmatpush1.bf16.msra.mxu0 0
        %725 = vmatprep.subr.bf16.mxu0 0
        %726 = vmatpush1.bf16.msra.mxu0 0
        %727 = vmatprep.subr.bf16.mxu0 0
        %728 = vmatpush1.bf16.msra.mxu0 %v711
        %729 = vmatprep.subr.bf16.mxu0 0
        %730 = vmatpush2.bf16.msra.mxu0 0
        %731 = vmatprep.subr.bf16.mxu0 0
        %732 = vmatpush2.bf16.msra.mxu0 0
        %733 = vmatprep.subr.bf16.mxu0 0
        %734 = vmatpush2.bf16.msra.mxu0 0
        %735 = vmatprep.subr.bf16.mxu0 0
        %736 = vmatpush2.bf16.msra.mxu0 0
        %737 = vmatprep.subr.bf16.mxu0 0
        %738 = vmatpush2.bf16.msra.mxu0 0
        %739 = vmatprep.subr.bf16.mxu0 0
        %740 = vmatpush2.bf16.msra.mxu0 0
        %741 = vmatprep.subr.bf16.mxu0 0
        %742 = vmatpush2.bf16.msra.mxu0 0
        %743 = vmatprep.subr.bf16.mxu0 0
        %744 = vmatpush2.bf16.msra.mxu0 0
        %745 = vmatprep.mubr.bf16.mxu0 0
        %746 = vmatmul.mubr.bf16.gmra.mxu0 %v707
        %v747 = vpop.f32.mrf.mxu0
        %v748 = vadd.f32 0.0, %v747
        %v749 = vpop.f32.mrf.mxu0
        %v750 = vpop.f32.mrf.mxu0
        %v751 = vpop.f32.mrf.mxu0
        %752 = vdwg.mxu0
        %v754 = vsel %vm589, %v705, 0
        %v757 = vsel %vm709, %v588, 0
        %759 = vmatprep.subr.bf16.mxu0 0
        %760 = vmatpush1.bf16.msra.mxu0 0
        %761 = vmatprep.subr.bf16.mxu0 0
        %762 = vmatpush1.bf16.msra.mxu0 0
        %763 = vmatprep.subr.bf16.mxu0 0
        %764 = vmatpush1.bf16.msra.mxu0 0
        %765 = vmatprep.subr.bf16.mxu0 0
        %766 = vmatpush1.bf16.msra.mxu0 0
        %767 = vmatprep.subr.bf16.mxu0 0
        %768 = vmatpush1.bf16.msra.mxu0 0
        %769 = vmatprep.subr.bf16.mxu0 0
        %770 = vmatpush1.bf16.msra.mxu0 0
        %771 = vmatprep.subr.bf16.mxu0 0
        %772 = vmatpush1.bf16.msra.mxu0 0
        %773 = vmatprep.subr.bf16.mxu0 0
        %774 = vmatpush1.bf16.msra.mxu0 %v757
        %775 = vmatprep.subr.bf16.mxu0 0
        %776 = vmatpush2.bf16.msra.mxu0 0
        %777 = vmatprep.subr.bf16.mxu0 0
        %778 = vmatpush2.bf16.msra.mxu0 0
        %779 = vmatprep.subr.bf16.mxu0 0
        %780 = vmatpush2.bf16.msra.mxu0 0
        %781 = vmatprep.subr.bf16.mxu0 0
        %782 = vmatpush2.bf16.msra.mxu0 0
        %783 = vmatprep.subr.bf16.mxu0 0
        %784 = vmatpush2.bf16.msra.mxu0 0
        %785 = vmatprep.subr.bf16.mxu0 0
        %786 = vmatpush2.bf16.msra.mxu0 0
        %787 = vmatprep.subr.bf16.mxu0 0
        %788 = vmatpush2.bf16.msra.mxu0 0
        %789 = vmatprep.subr.bf16.mxu0 0
        %790 = vmatpush2.bf16.msra.mxu0 0
        %791 = vmatprep.mubr.bf16.mxu0 0
        %792 = vmatmul.mubr.bf16.gmra.mxu0 %v754
        %v793 = vpop.f32.mrf.mxu0
        %v794 = vadd.f32 0.0, %v793
        %v795 = vpop.f32.mrf.mxu0
        %v796 = vpop.f32.mrf.mxu0
        %v797 = vpop.f32.mrf.mxu0
        %798 = vdwg.mxu0
        %800 = vrot.lane.b32.xlu0 %v583, 120
        %v801 = vpop.permute.xlu0 %800
        %803 = vrot.lane.b32.xlu0 %v585, 120
        %v804 = vpop.permute.xlu0 %803
        %v806 = vsel %vm589, %v801, 0
        %v809 = vsel %vm589, %v804, 0
        %811 = vmatprep.subr.bf16.mxu0 0
        %812 = vmatpush1.bf16.xpose.msra.mxu0 0
        %813 = vmatprep.subr.bf16.mxu0 0
        %814 = vmatpush1.bf16.xpose.msra.mxu0 0
        %815 = vmatprep.subr.bf16.mxu0 0
        %816 = vmatpush1.bf16.xpose.msra.mxu0 0
        %817 = vmatprep.subr.bf16.mxu0 0
        %818 = vmatpush1.bf16.xpose.msra.mxu0 0
        %819 = vmatprep.subr.bf16.mxu0 0
        %820 = vmatpush1.bf16.xpose.msra.mxu0 0
        %821 = vmatprep.subr.bf16.mxu0 0
        %822 = vmatpush1.bf16.xpose.msra.mxu0 0
        %823 = vmatprep.subr.bf16.mxu0 0
        %824 = vmatpush1.bf16.xpose.msra.mxu0 0
        %825 = vmatprep.subr.bf16.mxu0 0
        %826 = vmatpush1.bf16.xpose.msra.mxu0 %v809
        %827 = vmatprep.subr.bf16.mxu0 0
        %828 = vmatpush2.bf16.xpose.msra.mxu0 0
        %829 = vmatprep.subr.bf16.mxu0 0
        %830 = vmatpush2.bf16.xpose.msra.mxu0 0
        %831 = vmatprep.subr.bf16.mxu0 0
        %832 = vmatpush2.bf16.xpose.msra.mxu0 0
        %833 = vmatprep.subr.bf16.mxu0 0
        %834 = vmatpush2.bf16.xpose.msra.mxu0 0
        %835 = vmatprep.subr.bf16.mxu0 0
        %836 = vmatpush2.bf16.xpose.msra.mxu0 0
        %837 = vmatprep.subr.bf16.mxu0 0
        %838 = vmatpush2.bf16.xpose.msra.mxu0 0
        %839 = vmatprep.subr.bf16.mxu0 0
        %840 = vmatpush2.bf16.xpose.msra.mxu0 0
        %841 = vmatprep.subr.bf16.mxu0 0
        %842 = vmatpush2.bf16.xpose.msra.mxu0 0
        %843 = vmatprep.mubr.bf16.mxu0 0
        %844 = vmatmul.mubr.bf16.gmra.mxu0 %v806
        %v845 = vpop.f32.mrf.mxu0
        %v846 = vadd.f32 0.0, %v845
        %v847 = vpop.f32.mrf.mxu0
        %v848 = vpop.f32.mrf.mxu0
        %v849 = vpop.f32.mrf.mxu0
        %850 = vdwg.mxu0
        %852 = vrot.lane.b32.xlu0 %v584, 120
        %v853 = vpop.permute.xlu0 %852
        %855 = vrot.lane.b32.xlu0 %v586, 120
        %v856 = vpop.permute.xlu0 %855
        %v858 = vsel %vm589, %v853, 0
        %v861 = vsel %vm589, %v856, 0
        %863 = vmatprep.subr.bf16.mxu0 0
        %864 = vmatpush1.bf16.xpose.msra.mxu0 0
        %865 = vmatprep.subr.bf16.mxu0 0
        %866 = vmatpush1.bf16.xpose.msra.mxu0 0
        %867 = vmatprep.subr.bf16.mxu0 0
        %868 = vmatpush1.bf16.xpose.msra.mxu0 0
        %869 = vmatprep.subr.bf16.mxu0 0
        %870 = vmatpush1.bf16.xpose.msra.mxu0 0
        %871 = vmatprep.subr.bf16.mxu0 0
        %872 = vmatpush1.bf16.xpose.msra.mxu0 0
        %873 = vmatprep.subr.bf16.mxu0 0
        %874 = vmatpush1.bf16.xpose.msra.mxu0 0
        %875 = vmatprep.subr.bf16.mxu0 0
        %876 = vmatpush1.bf16.xpose.msra.mxu0 0
        %877 = vmatprep.subr.bf16.mxu0 0
        %878 = vmatpush1.bf16.xpose.msra.mxu0 %v861
        %879 = vmatprep.subr.bf16.mxu0 0
        %880 = vmatpush2.bf16.xpose.msra.mxu0 0
        %881 = vmatprep.subr.bf16.mxu0 0
        %882 = vmatpush2.bf16.xpose.msra.mxu0 0
        %883 = vmatprep.subr.bf16.mxu0 0
        %884 = vmatpush2.bf16.xpose.msra.mxu0 0
        %885 = vmatprep.subr.bf16.mxu0 0
        %886 = vmatpush2.bf16.xpose.msra.mxu0 0
        %887 = vmatprep.subr.bf16.mxu0 0
        %888 = vmatpush2.bf16.xpose.msra.mxu0 0
        %889 = vmatprep.subr.bf16.mxu0 0
        %890 = vmatpush2.bf16.xpose.msra.mxu0 0
        %891 = vmatprep.subr.bf16.mxu0 0
        %892 = vmatpush2.bf16.xpose.msra.mxu0 0
        %893 = vmatprep.subr.bf16.mxu0 0
        %894 = vmatpush2.bf16.xpose.msra.mxu0 0
        %895 = vmatprep.mubr.bf16.mxu0 0
        %896 = vmatmul.mubr.bf16.gmra.mxu0 %v858
        %v897 = vpop.f32.mrf.mxu0
        %v898 = vadd.f32 0.0, %v897
        %v899 = vpop.f32.mrf.mxu0
        %v900 = vpop.f32.mrf.mxu0
        %v901 = vpop.f32.mrf.mxu0
        %902 = vdwg.mxu0
        %v903 = vsel %vm589, %v846, -inf
        %904 = vmax.xlane.f32.xlu0 %v903
        %v905 = vpop.xlane.xlu0 %904
        %v906 = vsel %vm589, %v898, -inf
        %907 = vmax.xlane.f32.xlu0 %v906
        %v908 = vpop.xlane.xlu0 %907
        %v909 = vsub.f32 %v846, %v905
        %v910 = vsub.f32 %v898, %v908
        %v911 = vmul.f32 %v909, 1.442695
        %v912 = vpow.pop %v911
        %v913 = vmul.f32 %v910, 1.442695
        %v914 = vpow.pop %v913
        %v915 = vsel %vm589, %v912, 0.0
        %916 = vadd.xlane.f32.xlu0 %v915
        %v917 = vpop.xlane.xlu0 %916
        %v918 = vsel %vm589, %v914, 0.0
        %919 = vadd.xlane.f32.xlu0 %v918
        %v920 = vpop.xlane.xlu0 %919
        %v921 = vrcp.pop %v917
        %v922 = vrcp.pop %v920
        %v923 = vmul.f32 %v912, %v921
        %v924 = vmul.f32 %v914, %v922
        %v925 = vpack.c.bf16 %v923, %v923
        %v926 = vpack.c.bf16 %v924, %v924
        %928 = vrot.lane.b32.xlu0 %v587, 120
        %v929 = vpop.permute.xlu0 %928
        %v931 = vsel %vm589, %v925, 0
        %v934 = vsel %vm709, %v929, 0
        %936 = vmatprep.subr.bf16.mxu0 0
        %937 = vmatpush1.bf16.msra.mxu0 0
        %938 = vmatprep.subr.bf16.mxu0 0
        %939 = vmatpush1.bf16.msra.mxu0 0
        %940 = vmatprep.subr.bf16.mxu0 0
        %941 = vmatpush1.bf16.msra.mxu0 0
        %942 = vmatprep.subr.bf16.mxu0 0
        %943 = vmatpush1.bf16.msra.mxu0 0
        %944 = vmatprep.subr.bf16.mxu0 0
        %945 = vmatpush1.bf16.msra.mxu0 0
        %946 = vmatprep.subr.bf16.mxu0 0
        %947 = vmatpush1.bf16.msra.mxu0 0
        %948 = vmatprep.subr.bf16.mxu0 0
        %949 = vmatpush1.bf16.msra.mxu0 0
        %950 = vmatprep.subr.bf16.mxu0 0
        %951 = vmatpush1.bf16.msra.mxu0 %v934
        %952 = vmatprep.subr.bf16.mxu0 0
        %953 = vmatpush2.bf16.msra.mxu0 0
        %954 = vmatprep.subr.bf16.mxu0 0
        %955 = vmatpush2.bf16.msra.mxu0 0
        %956 = vmatprep.subr.bf16.mxu0 0
        %957 = vmatpush2.bf16.msra.mxu0 0
        %958 = vmatprep.subr.bf16.mxu0 0
        %959 = vmatpush2.bf16.msra.mxu0 0
        %960 = vmatprep.subr.bf16.mxu0 0
        %961 = vmatpush2.bf16.msra.mxu0 0
        %962 = vmatprep.subr.bf16.mxu0 0
        %963 = vmatpush2.bf16.msra.mxu0 0
        %964 = vmatprep.subr.bf16.mxu0 0
        %965 = vmatpush2.bf16.msra.mxu0 0
        %966 = vmatprep.subr.bf16.mxu0 0
        %967 = vmatpush2.bf16.msra.mxu0 0
        %968 = vmatprep.mubr.bf16.mxu0 0
        %969 = vmatmul.mubr.bf16.gmra.mxu0 %v931
        %v970 = vpop.f32.mrf.mxu0
        %v971 = vadd.f32 0.0, %v970
        %v972 = vpop.f32.mrf.mxu0
        %v973 = vpop.f32.mrf.mxu0
        %v974 = vpop.f32.mrf.mxu0
        %975 = vdwg.mxu0
        %977 = vrot.lane.b32.xlu0 %v588, 120
        %v978 = vpop.permute.xlu0 %977
        %v980 = vsel %vm589, %v926, 0
        %v983 = vsel %vm709, %v978, 0
        %985 = vmatprep.subr.bf16.mxu0 0
        %986 = vmatpush1.bf16.msra.mxu0 0
        %987 = vmatprep.subr.bf16.mxu0 0
        %988 = vmatpush1.bf16.msra.mxu0 0
        %989 = vmatprep.subr.bf16.mxu0 0
        %990 = vmatpush1.bf16.msra.mxu0 0
        %991 = vmatprep.subr.bf16.mxu0 0
        %992 = vmatpush1.bf16.msra.mxu0 0
        %993 = vmatprep.subr.bf16.mxu0 0
        %994 = vmatpush1.bf16.msra.mxu0 0
        %995 = vmatprep.subr.bf16.mxu0 0
        %996 = vmatpush1.bf16.msra.mxu0 0
        %997 = vmatprep.subr.bf16.mxu0 0
        %998 = vmatpush1.bf16.msra.mxu0 0
        %999 = vmatprep.subr.bf16.mxu0 0
        %1000 = vmatpush1.bf16.msra.mxu0 %v983
        %1001 = vmatprep.subr.bf16.mxu0 0
        %1002 = vmatpush2.bf16.msra.mxu0 0
        %1003 = vmatprep.subr.bf16.mxu0 0
        %1004 = vmatpush2.bf16.msra.mxu0 0
        %1005 = vmatprep.subr.bf16.mxu0 0
        %1006 = vmatpush2.bf16.msra.mxu0 0
        %1007 = vmatprep.subr.bf16.mxu0 0
        %1008 = vmatpush2.bf16.msra.mxu0 0
        %1009 = vmatprep.subr.bf16.mxu0 0
        %1010 = vmatpush2.bf16.msra.mxu0 0
        %1011 = vmatprep.subr.bf16.mxu0 0
        %1012 = vmatpush2.bf16.msra.mxu0 0
        %1013 = vmatprep.subr.bf16.mxu0 0
        %1014 = vmatpush2.bf16.msra.mxu0 0
        %1015 = vmatprep.subr.bf16.mxu0 0
        %1016 = vmatpush2.bf16.msra.mxu0 0
        %1017 = vmatprep.mubr.bf16.mxu0 0
        %1018 = vmatmul.mubr.bf16.gmra.mxu0 %v980
        %v1019 = vpop.f32.mrf.mxu0
        %v1020 = vadd.f32 0.0, %v1019
        %v1021 = vpop.f32.mrf.mxu0
        %v1022 = vpop.f32.mrf.mxu0
        %v1023 = vpop.f32.mrf.mxu0
        %1024 = vdwg.mxu0
        %1025 = vrot.lane.b32.xlu0 %v583, 112
        %v1026 = vpop.permute.xlu0 %1025
        %1027 = vrot.lane.b32.xlu0 %v585, 112
        %v1028 = vpop.permute.xlu0 %1027
        %v1030 = vsel %vm589, %v1026, 0
        %v1033 = vsel %vm589, %v1028, 0
        %1035 = vmatprep.subr.bf16.mxu0 0
        %1036 = vmatpush1.bf16.xpose.msra.mxu0 0
        %1037 = vmatprep.subr.bf16.mxu0 0
        %1038 = vmatpush1.bf16.xpose.msra.mxu0 0
        %1039 = vmatprep.subr.bf16.mxu0 0
        %1040 = vmatpush1.bf16.xpose.msra.mxu0 0
        %1041 = vmatprep.subr.bf16.mxu0 0
        %1042 = vmatpush1.bf16.xpose.msra.mxu0 0
        %1043 = vmatprep.subr.bf16.mxu0 0
        %1044 = vmatpush1.bf16.xpose.msra.mxu0 0
        %1045 = vmatprep.subr.bf16.mxu0 0
        %1046 = vmatpush1.bf16.xpose.msra.mxu0 0
        %1047 = vmatprep.subr.bf16.mxu0 0
        %1048 = vmatpush1.bf16.xpose.msra.mxu0 0
        %1049 = vmatprep.subr.bf16.mxu0 0
        %1050 = vmatpush1.bf16.xpose.msra.mxu0 %v1033
        %1051 = vmatprep.subr.bf16.mxu0 0
        %1052 = vmatpush2.bf16.xpose.msra.mxu0 0
        %1053 = vmatprep.subr.bf16.mxu0 0
        %1054 = vmatpush2.bf16.xpose.msra.mxu0 0
        %1055 = vmatprep.subr.bf16.mxu0 0
        %1056 = vmatpush2.bf16.xpose.msra.mxu0 0
        %1057 = vmatprep.subr.bf16.mxu0 0
        %1058 = vmatpush2.bf16.xpose.msra.mxu0 0
        %1059 = vmatprep.subr.bf16.mxu0 0
        %1060 = vmatpush2.bf16.xpose.msra.mxu0 0
        %1061 = vmatprep.subr.bf16.mxu0 0
        %1062 = vmatpush2.bf16.xpose.msra.mxu0 0
        %1063 = vmatprep.subr.bf16.mxu0 0
        %1064 = vmatpush2.bf16.xpose.msra.mxu0 0
        %1065 = vmatprep.subr.bf16.mxu0 0
        %1066 = vmatpush2.bf16.xpose.msra.mxu0 0
        %1067 = vmatprep.mubr.bf16.mxu0 0
        %1068 = vmatmul.mubr.bf16.gmra.mxu0 %v1030
        %v1069 = vpop.f32.mrf.mxu0
        %v1070 = vadd.f32 0.0, %v1069
        %v1071 = vpop.f32.mrf.mxu0
        %v1072 = vpop.f32.mrf.mxu0
        %v1073 = vpop.f32.mrf.mxu0
        %1074 = vdwg.mxu0
        %1075 = vrot.lane.b32.xlu0 %v584, 112
        %v1076 = vpop.permute.xlu0 %1075
        %1077 = vrot.lane.b32.xlu0 %v586, 112
        %v1078 = vpop.permute.xlu0 %1077
        %v1080 = vsel %vm589, %v1076, 0
        %v1083 = vsel %vm589, %v1078, 0
        %1085 = vmatprep.subr.bf16.mxu0 0
        %1086 = vmatpush1.bf16.xpose.msra.mxu0 0
        %1087 = vmatprep.subr.bf16.mxu0 0
        %1088 = vmatpush1.bf16.xpose.msra.mxu0 0
        %1089 = vmatprep.subr.bf16.mxu0 0
        %1090 = vmatpush1.bf16.xpose.msra.mxu0 0
        %1091 = vmatprep.subr.bf16.mxu0 0
        %1092 = vmatpush1.bf16.xpose.msra.mxu0 0
        %1093 = vmatprep.subr.bf16.mxu0 0
        %1094 = vmatpush1.bf16.xpose.msra.mxu0 0
        %1095 = vmatprep.subr.bf16.mxu0 0
        %1096 = vmatpush1.bf16.xpose.msra.mxu0 0
        %1097 = vmatprep.subr.bf16.mxu0 0
        %1098 = vmatpush1.bf16.xpose.msra.mxu0 0
        %1099 = vmatprep.subr.bf16.mxu0 0
        %1100 = vmatpush1.bf16.xpose.msra.mxu0 %v1083
        %1101 = vmatprep.subr.bf16.mxu0 0
        %1102 = vmatpush2.bf16.xpose.msra.mxu0 0
        %1103 = vmatprep.subr.bf16.mxu0 0
        %1104 = vmatpush2.bf16.xpose.msra.mxu0 0
        %1105 = vmatprep.subr.bf16.mxu0 0
        %1106 = vmatpush2.bf16.xpose.msra.mxu0 0
        %1107 = vmatprep.subr.bf16.mxu0 0
        %1108 = vmatpush2.bf16.xpose.msra.mxu0 0
        %1109 = vmatprep.subr.bf16.mxu0 0
        %1110 = vmatpush2.bf16.xpose.msra.mxu0 0
        %1111 = vmatprep.subr.bf16.mxu0 0
        %1112 = vmatpush2.bf16.xpose.msra.mxu0 0
        %1113 = vmatprep.subr.bf16.mxu0 0
        %1114 = vmatpush2.bf16.xpose.msra.mxu0 0
        %1115 = vmatprep.subr.bf16.mxu0 0
        %1116 = vmatpush2.bf16.xpose.msra.mxu0 0
        %1117 = vmatprep.mubr.bf16.mxu0 0
        %1118 = vmatmul.mubr.bf16.gmra.mxu0 %v1080
        %v1119 = vpop.f32.mrf.mxu0
        %v1120 = vadd.f32 0.0, %v1119
        %v1121 = vpop.f32.mrf.mxu0
        %v1122 = vpop.f32.mrf.mxu0
        %v1123 = vpop.f32.mrf.mxu0
        %1124 = vdwg.mxu0
        %v1125 = vsel %vm589, %v1070, -inf
        %1126 = vmax.xlane.f32.xlu0 %v1125
        %v1127 = vpop.xlane.xlu0 %1126
        %v1128 = vsel %vm589, %v1120, -inf
        %1129 = vmax.xlane.f32.xlu0 %v1128
        %v1130 = vpop.xlane.xlu0 %1129
        %v1131 = vsub.f32 %v1070, %v1127
        %v1132 = vsub.f32 %v1120, %v1130
        %v1133 = vmul.f32 %v1131, 1.442695
        %v1134 = vpow.pop %v1133
        %v1135 = vmul.f32 %v1132, 1.442695
        %v1136 = vpow.pop %v1135
        %v1137 = vsel %vm589, %v1134, 0.0
        %1138 = vadd.xlane.f32.xlu0 %v1137
        %v1139 = vpop.xlane.xlu0 %1138
        %v1140 = vsel %vm589, %v1136, 0.0
        %1141 = vadd.xlane.f32.xlu0 %v1140
        %v1142 = vpop.xlane.xlu0 %1141
        %v1143 = vrcp.pop %v1139
        %v1144 = vrcp.pop %v1142
        %v1145 = vmul.f32 %v1134, %v1143
        %v1146 = vmul.f32 %v1136, %v1144
        %v1147 = vpack.c.bf16 %v1145, %v1145
        %v1148 = vpack.c.bf16 %v1146, %v1146
        %1149 = vrot.lane.b32.xlu0 %v587, 112
        %v1150 = vpop.permute.xlu0 %1149
        %v1152 = vsel %vm589, %v1147, 0
        %v1155 = vsel %vm709, %v1150, 0
        %1157 = vmatprep.subr.bf16.mxu0 0
        %1158 = vmatpush1.bf16.msra.mxu0 0
        %1159 = vmatprep.subr.bf16.mxu0 0
        %1160 = vmatpush1.bf16.msra.mxu0 0
        %1161 = vmatprep.subr.bf16.mxu0 0
        %1162 = vmatpush1.bf16.msra.mxu0 0
        %1163 = vmatprep.subr.bf16.mxu0 0
        %1164 = vmatpush1.bf16.msra.mxu0 0
        %1165 = vmatprep.subr.bf16.mxu0 0
        %1166 = vmatpush1.bf16.msra.mxu0 0
        %1167 = vmatprep.subr.bf16.mxu0 0
        %1168 = vmatpush1.bf16.msra.mxu0 0
        %1169 = vmatprep.subr.bf16.mxu0 0
        %1170 = vmatpush1.bf16.msra.mxu0 0
        %1171 = vmatprep.subr.bf16.mxu0 0
        %1172 = vmatpush1.bf16.msra.mxu0 %v1155
        %1173 = vmatprep.subr.bf16.mxu0 0
        %1174 = vmatpush2.bf16.msra.mxu0 0
        %1175 = vmatprep.subr.bf16.mxu0 0
        %1176 = vmatpush2.bf16.msra.mxu0 0
        %1177 = vmatprep.subr.bf16.mxu0 0
        %1178 = vmatpush2.bf16.msra.mxu0 0
        %1179 = vmatprep.subr.bf16.mxu0 0
        %1180 = vmatpush2.bf16.msra.mxu0 0
        %1181 = vmatprep.subr.bf16.mxu0 0
        %1182 = vmatpush2.bf16.msra.mxu0 0
        %1183 = vmatprep.subr.bf16.mxu0 0
        %1184 = vmatpush2.bf16.msra.mxu0 0
        %1185 = vmatprep.subr.bf16.mxu0 0
        %1186 = vmatpush2.bf16.msra.mxu0 0
        %1187 = vmatprep.subr.bf16.mxu0 0
        %1188 = vmatpush2.bf16.msra.mxu0 0
        %1189 = vmatprep.mubr.bf16.mxu0 0
        %1190 = vmatmul.mubr.bf16.gmra.mxu0 %v1152
        %v1191 = vpop.f32.mrf.mxu0
        %v1192 = vadd.f32 0.0, %v1191
        %v1193 = vpop.f32.mrf.mxu0
        %v1194 = vpop.f32.mrf.mxu0
        %v1195 = vpop.f32.mrf.mxu0
        %1196 = vdwg.mxu0
        %1197 = vrot.lane.b32.xlu0 %v588, 112
        %v1198 = vpop.permute.xlu0 %1197
        %v1200 = vsel %vm589, %v1148, 0
        %v1203 = vsel %vm709, %v1198, 0
        %1205 = vmatprep.subr.bf16.mxu0 0
        %1206 = vmatpush1.bf16.msra.mxu0 0
        %1207 = vmatprep.subr.bf16.mxu0 0
        %1208 = vmatpush1.bf16.msra.mxu0 0
        %1209 = vmatprep.subr.bf16.mxu0 0
        %1210 = vmatpush1.bf16.msra.mxu0 0
        %1211 = vmatprep.subr.bf16.mxu0 0
        %1212 = vmatpush1.bf16.msra.mxu0 0
        %1213 = vmatprep.subr.bf16.mxu0 0
        %1214 = vmatpush1.bf16.msra.mxu0 0
        %1215 = vmatprep.subr.bf16.mxu0 0
        %1216 = vmatpush1.bf16.msra.mxu0 0
        %1217 = vmatprep.subr.bf16.mxu0 0
        %1218 = vmatpush1.bf16.msra.mxu0 0
        %1219 = vmatprep.subr.bf16.mxu0 0
        %1220 = vmatpush1.bf16.msra.mxu0 %v1203
        %1221 = vmatprep.subr.bf16.mxu0 0
        %1222 = vmatpush2.bf16.msra.mxu0 0
        %1223 = vmatprep.subr.bf16.mxu0 0
        %1224 = vmatpush2.bf16.msra.mxu0 0
        %1225 = vmatprep.subr.bf16.mxu0 0
        %1226 = vmatpush2.bf16.msra.mxu0 0
        %1227 = vmatprep.subr.bf16.mxu0 0
        %1228 = vmatpush2.bf16.msra.mxu0 0
        %1229 = vmatprep.subr.bf16.mxu0 0
        %1230 = vmatpush2.bf16.msra.mxu0 0
        %1231 = vmatprep.subr.bf16.mxu0 0
        %1232 = vmatpush2.bf16.msra.mxu0 0
        %1233 = vmatprep.subr.bf16.mxu0 0
        %1234 = vmatpush2.bf16.msra.mxu0 0
        %1235 = vmatprep.subr.bf16.mxu0 0
        %1236 = vmatpush2.bf16.msra.mxu0 0
        %1237 = vmatprep.mubr.bf16.mxu0 0
        %1238 = vmatmul.mubr.bf16.gmra.mxu0 %v1200
        %v1239 = vpop.f32.mrf.mxu0
        %v1240 = vadd.f32 0.0, %v1239
        %v1241 = vpop.f32.mrf.mxu0
        %v1242 = vpop.f32.mrf.mxu0
        %v1243 = vpop.f32.mrf.mxu0
        %1244 = vdwg.mxu0
        %1245 = vrot.lane.b32.xlu0 %v583, 104
        %v1246 = vpop.permute.xlu0 %1245
        %1247 = vrot.lane.b32.xlu0 %v585, 104
        %v1248 = vpop.permute.xlu0 %1247
        %v1250 = vsel %vm589, %v1246, 0
        %v1253 = vsel %vm589, %v1248, 0
        %1255 = vmatprep.subr.bf16.mxu0 0
        %1256 = vmatpush1.bf16.xpose.msra.mxu0 0
        %1257 = vmatprep.subr.bf16.mxu0 0
        %1258 = vmatpush1.bf16.xpose.msra.mxu0 0
        %1259 = vmatprep.subr.bf16.mxu0 0
        %1260 = vmatpush1.bf16.xpose.msra.mxu0 0
        %1261 = vmatprep.subr.bf16.mxu0 0
        %1262 = vmatpush1.bf16.xpose.msra.mxu0 0
        %1263 = vmatprep.subr.bf16.mxu0 0
        %1264 = vmatpush1.bf16.xpose.msra.mxu0 0
        %1265 = vmatprep.subr.bf16.mxu0 0
        %1266 = vmatpush1.bf16.xpose.msra.mxu0 0
        %1267 = vmatprep.subr.bf16.mxu0 0
        %1268 = vmatpush1.bf16.xpose.msra.mxu0 0
        %1269 = vmatprep.subr.bf16.mxu0 0
        %1270 = vmatpush1.bf16.xpose.msra.mxu0 %v1253
        %1271 = vmatprep.subr.bf16.mxu0 0
        %1272 = vmatpush2.bf16.xpose.msra.mxu0 0
        %1273 = vmatprep.subr.bf16.mxu0 0
        %1274 = vmatpush2.bf16.xpose.msra.mxu0 0
        %1275 = vmatprep.subr.bf16.mxu0 0
        %1276 = vmatpush2.bf16.xpose.msra.mxu0 0
        %1277 = vmatprep.subr.bf16.mxu0 0
        %1278 = vmatpush2.bf16.xpose.msra.mxu0 0
        %1279 = vmatprep.subr.bf16.mxu0 0
        %1280 = vmatpush2.bf16.xpose.msra.mxu0 0
        %1281 = vmatprep.subr.bf16.mxu0 0
        %1282 = vmatpush2.bf16.xpose.msra.mxu0 0
        %1283 = vmatprep.subr.bf16.mxu0 0
        %1284 = vmatpush2.bf16.xpose.msra.mxu0 0
        %1285 = vmatprep.subr.bf16.mxu0 0
        %1286 = vmatpush2.bf16.xpose.msra.mxu0 0
        %1287 = vmatprep.mubr.bf16.mxu0 0
        %1288 = vmatmul.mubr.bf16.gmra.mxu0 %v1250
        %v1289 = vpop.f32.mrf.mxu0
        %v1290 = vadd.f32 0.0, %v1289
        %v1291 = vpop.f32.mrf.mxu0
        %v1292 = vpop.f32.mrf.mxu0
        %v1293 = vpop.f32.mrf.mxu0
        %1294 = vdwg.mxu0
        %1295 = vrot.lane.b32.xlu0 %v584, 104
        %v1296 = vpop.permute.xlu0 %1295
        %1297 = vrot.lane.b32.xlu0 %v586, 104
        %v1298 = vpop.permute.xlu0 %1297
        %v1300 = vsel %vm589, %v1296, 0
        %v1303 = vsel %vm589, %v1298, 0
        %1305 = vmatprep.subr.bf16.mxu0 0
        %1306 = vmatpush1.bf16.xpose.msra.mxu0 0
        %1307 = vmatprep.subr.bf16.mxu0 0
        %1308 = vmatpush1.bf16.xpose.msra.mxu0 0
        %1309 = vmatprep.subr.bf16.mxu0 0
        %1310 = vmatpush1.bf16.xpose.msra.mxu0 0
        %1311 = vmatprep.subr.bf16.mxu0 0
        %1312 = vmatpush1.bf16.xpose.msra.mxu0 0
        %1313 = vmatprep.subr.bf16.mxu0 0
        %1314 = vmatpush1.bf16.xpose.msra.mxu0 0
        %1315 = vmatprep.subr.bf16.mxu0 0
        %1316 = vmatpush1.bf16.xpose.msra.mxu0 0
        %1317 = vmatprep.subr.bf16.mxu0 0
        %1318 = vmatpush1.bf16.xpose.msra.mxu0 0
        %1319 = vmatprep.subr.bf16.mxu0 0
        %1320 = vmatpush1.bf16.xpose.msra.mxu0 %v1303
        %1321 = vmatprep.subr.bf16.mxu0 0
        %1322 = vmatpush2.bf16.xpose.msra.mxu0 0
        %1323 = vmatprep.subr.bf16.mxu0 0
        %1324 = vmatpush2.bf16.xpose.msra.mxu0 0
        %1325 = vmatprep.subr.bf16.mxu0 0
        %1326 = vmatpush2.bf16.xpose.msra.mxu0 0
        %1327 = vmatprep.subr.bf16.mxu0 0
        %1328 = vmatpush2.bf16.xpose.msra.mxu0 0
        %1329 = vmatprep.subr.bf16.mxu0 0
        %1330 = vmatpush2.bf16.xpose.msra.mxu0 0
        %1331 = vmatprep.subr.bf16.mxu0 0
        %1332 = vmatpush2.bf16.xpose.msra.mxu0 0
        %1333 = vmatprep.subr.bf16.mxu0 0
        %1334 = vmatpush2.bf16.xpose.msra.mxu0 0
        %1335 = vmatprep.subr.bf16.mxu0 0
        %1336 = vmatpush2.bf16.xpose.msra.mxu0 0
        %1337 = vmatprep.mubr.bf16.mxu0 0
        %1338 = vmatmul.mubr.bf16.gmra.mxu0 %v1300
        %v1339 = vpop.f32.mrf.mxu0
        %v1340 = vadd.f32 0.0, %v1339
        %v1341 = vpop.f32.mrf.mxu0
        %v1342 = vpop.f32.mrf.mxu0
        %v1343 = vpop.f32.mrf.mxu0
        %1344 = vdwg.mxu0
        %v1345 = vsel %vm589, %v1290, -inf
        %1346 = vmax.xlane.f32.xlu0 %v1345
        %v1347 = vpop.xlane.xlu0 %1346
        %v1348 = vsel %vm589, %v1340, -inf
        %1349 = vmax.xlane.f32.xlu0 %v1348
        %v1350 = vpop.xlane.xlu0 %1349
        %v1351 = vsub.f32 %v1290, %v1347
        %v1352 = vsub.f32 %v1340, %v1350
        %v1353 = vmul.f32 %v1351, 1.442695
        %v1354 = vpow.pop %v1353
        %v1355 = vmul.f32 %v1352, 1.442695
        %v1356 = vpow.pop %v1355
        %v1357 = vsel %vm589, %v1354, 0.0
        %1358 = vadd.xlane.f32.xlu0 %v1357
        %v1359 = vpop.xlane.xlu0 %1358
        %v1360 = vsel %vm589, %v1356, 0.0
        %1361 = vadd.xlane.f32.xlu0 %v1360
        %v1362 = vpop.xlane.xlu0 %1361
        %v1363 = vrcp.pop %v1359
        %v1364 = vrcp.pop %v1362
        %v1365 = vmul.f32 %v1354, %v1363
        %v1366 = vmul.f32 %v1356, %v1364
        %v1367 = vpack.c.bf16 %v1365, %v1365
        %v1368 = vpack.c.bf16 %v1366, %v1366
        %1369 = vrot.lane.b32.xlu0 %v587, 104
        %v1370 = vpop.permute.xlu0 %1369
        %v1372 = vsel %vm589, %v1367, 0
        %v1375 = vsel %vm709, %v1370, 0
        %1377 = vmatprep.subr.bf16.mxu0 0
        %1378 = vmatpush1.bf16.msra.mxu0 0
        %1379 = vmatprep.subr.bf16.mxu0 0
        %1380 = vmatpush1.bf16.msra.mxu0 0
        %1381 = vmatprep.subr.bf16.mxu0 0
        %1382 = vmatpush1.bf16.msra.mxu0 0
        %1383 = vmatprep.subr.bf16.mxu0 0
        %1384 = vmatpush1.bf16.msra.mxu0 0
        %1385 = vmatprep.subr.bf16.mxu0 0
        %1386 = vmatpush1.bf16.msra.mxu0 0
        %1387 = vmatprep.subr.bf16.mxu0 0
        %1388 = vmatpush1.bf16.msra.mxu0 0
        %1389 = vmatprep.subr.bf16.mxu0 0
        %1390 = vmatpush1.bf16.msra.mxu0 0
        %1391 = vmatprep.subr.bf16.mxu0 0
        %1392 = vmatpush1.bf16.msra.mxu0 %v1375
        %1393 = vmatprep.subr.bf16.mxu0 0
        %1394 = vmatpush2.bf16.msra.mxu0 0
        %1395 = vmatprep.subr.bf16.mxu0 0
        %1396 = vmatpush2.bf16.msra.mxu0 0
        %1397 = vmatprep.subr.bf16.mxu0 0
        %1398 = vmatpush2.bf16.msra.mxu0 0
        %1399 = vmatprep.subr.bf16.mxu0 0
        %1400 = vmatpush2.bf16.msra.mxu0 0
        %1401 = vmatprep.subr.bf16.mxu0 0
        %1402 = vmatpush2.bf16.msra.mxu0 0
        %1403 = vmatprep.subr.bf16.mxu0 0
        %1404 = vmatpush2.bf16.msra.mxu0 0
        %1405 = vmatprep.subr.bf16.mxu0 0
        %1406 = vmatpush2.bf16.msra.mxu0 0
        %1407 = vmatprep.subr.bf16.mxu0 0
        %1408 = vmatpush2.bf16.msra.mxu0 0
        %1409 = vmatprep.mubr.bf16.mxu0 0
        %1410 = vmatmul.mubr.bf16.gmra.mxu0 %v1372
        %v1411 = vpop.f32.mrf.mxu0
        %v1412 = vadd.f32 0.0, %v1411
        %v1413 = vpop.f32.mrf.mxu0
        %v1414 = vpop.f32.mrf.mxu0
        %v1415 = vpop.f32.mrf.mxu0
        %1416 = vdwg.mxu0
        %1417 = vrot.lane.b32.xlu0 %v588, 104
        %v1418 = vpop.permute.xlu0 %1417
        %v1420 = vsel %vm589, %v1368, 0
        %v1423 = vsel %vm709, %v1418, 0
        %1425 = vmatprep.subr.bf16.mxu0 0
        %1426 = vmatpush1.bf16.msra.mxu0 0
        %1427 = vmatprep.subr.bf16.mxu0 0
        %1428 = vmatpush1.bf16.msra.mxu0 0
        %1429 = vmatprep.subr.bf16.mxu0 0
        %1430 = vmatpush1.bf16.msra.mxu0 0
        %1431 = vmatprep.subr.bf16.mxu0 0
        %1432 = vmatpush1.bf16.msra.mxu0 0
        %1433 = vmatprep.subr.bf16.mxu0 0
        %1434 = vmatpush1.bf16.msra.mxu0 0
        %1435 = vmatprep.subr.bf16.mxu0 0
        %1436 = vmatpush1.bf16.msra.mxu0 0
        %1437 = vmatprep.subr.bf16.mxu0 0
        %1438 = vmatpush1.bf16.msra.mxu0 0
        %1439 = vmatprep.subr.bf16.mxu0 0
        %1440 = vmatpush1.bf16.msra.mxu0 %v1423
        %1441 = vmatprep.subr.bf16.mxu0 0
        %1442 = vmatpush2.bf16.msra.mxu0 0
        %1443 = vmatprep.subr.bf16.mxu0 0
        %1444 = vmatpush2.bf16.msra.mxu0 0
        %1445 = vmatprep.subr.bf16.mxu0 0
        %1446 = vmatpush2.bf16.msra.mxu0 0
        %1447 = vmatprep.subr.bf16.mxu0 0
        %1448 = vmatpush2.bf16.msra.mxu0 0
        %1449 = vmatprep.subr.bf16.mxu0 0
        %1450 = vmatpush2.bf16.msra.mxu0 0
        %1451 = vmatprep.subr.bf16.mxu0 0
        %1452 = vmatpush2.bf16.msra.mxu0 0
        %1453 = vmatprep.subr.bf16.mxu0 0
        %1454 = vmatpush2.bf16.msra.mxu0 0
        %1455 = vmatprep.subr.bf16.mxu0 0
        %1456 = vmatpush2.bf16.msra.mxu0 0
        %1457 = vmatprep.mubr.bf16.mxu0 0
        %1458 = vmatmul.mubr.bf16.gmra.mxu0 %v1420
        %v1459 = vpop.f32.mrf.mxu0
        %v1460 = vadd.f32 0.0, %v1459
        %v1461 = vpop.f32.mrf.mxu0
        %v1462 = vpop.f32.mrf.mxu0
        %v1463 = vpop.f32.mrf.mxu0
        %1464 = vdwg.mxu0
        %1467 = vrot.lane.b32.xlu0 %v971, 8
        %v1468 = vpop.permute.xlu0 %1467
        %1469 = vrot.lane.b32.xlu0 %v1020, 8
        %v1470 = vpop.permute.xlu0 %1469
        %1475 = vrot.lane.b32.xlu0 %v1192, 16
        %v1476 = vpop.permute.xlu0 %1475
        %1477 = vrot.lane.b32.xlu0 %v1240, 16
        %v1478 = vpop.permute.xlu0 %1477
        %1483 = vrot.lane.b32.xlu0 %v1412, 24
        %v1484 = vpop.permute.xlu0 %1483
        %1485 = vrot.lane.b32.xlu0 %v1460, 24
        %v1486 = vpop.permute.xlu0 %1485
        %v1489 = vsel %vm589, %v748, %v1468
        %v1490 = vsel %vm589, %v794, %v1470
        %vm1491 = vcmask 130048
        %v1492 = vsel %vm1491, %v1489, %v1476
        %v1493 = vsel %vm1491, %v1490, %v1478
        %vm1494 = vcmask 195584
        %v1495 = vsel %vm1494, %v1492, %v1484
        %v1496 = vsel %vm1494, %v1493, %v1486
        %v1497 = vld [vmem:[%s350] sm:$0xff]
        %v1498 = vld [vmem:[%s350 + $0x8] sm:$0xff]
        %vm1499 = vcmp.eq.f32.partialorder %v1497, 0.0
        %vm1500 = vcmp.eq.f32.partialorder %v1498, 0.0
        %v1501 = vsel %vm1499, 1, 0
        %v1502 = vsel %vm1500, 1, 0
        %1503 = vset.pattern.permute.xlu0 0
        %1504 = vperm.xlu0 %1503, %v1501
        %v1505 = vpop.permute.xlu0 %1504
        %1506 = vset.pattern.permute.xlu0 0
        %1507 = vperm.xlu0 %1506, %v1502
        %v1508 = vpop.permute.xlu0 %1507
        %vm1509 = vcmp.eq.s32.totalorder %v1505, 1
        %vm1510 = vcmp.eq.s32.totalorder %v1508, 1
        %v1511 = vsel %vm1509, 0.0, %v1495
        %v1512 = vsel %vm1510, 0.0, %v1496
        %v1513 = vpack.c.bf16 %v1512, %v1511
        %v1514 = vlaneseq
        %v1515 = vshrl.u32 %v1514, 7
        %v1516 = vsub.s32 0, %v1515
        %v1517 = vrot.slane %v376, %v1516
        %v1522 = vunpack.c.l.b16 %v369
        %v1523 = vunpack.c.l.b16 %v370
        %v1524 = vunpack.c.l.b16 %v371
        %v1525 = vunpack.c.l.b16 %v372
        %v1526 = vpack.c.b16 %v1523, %v1522
        %v1527 = vpack.c.b16 %v1525, %v1524
        %v1531 = vsel %vm402, %v1513, 0
        %1533 = vmatprep.subr.bf16.mxu0 0
        %1534 = vmatpush1.bf16.msra.mxu0 0
        %1535 = vmatprep.subr.bf16.mxu0 0
        %1536 = vmatpush1.bf16.msra.mxu0 0
        %1537 = vmatprep.subr.bf16.mxu0 0
        %1538 = vmatpush1.bf16.msra.mxu0 0
        %1539 = vmatprep.subr.bf16.mxu0 0
        %1540 = vmatpush1.bf16.msra.mxu0 0
        %1541 = vmatprep.subr.bf16.mxu0 0
        %1542 = vmatpush1.bf16.msra.mxu0 0
        %1543 = vmatprep.subr.bf16.mxu0 0
        %1544 = vmatpush1.bf16.msra.mxu0 0
        %1545 = vmatprep.subr.bf16.mxu0 0
        %1546 = vmatpush1.bf16.msra.mxu0 %v1527
        %1547 = vmatprep.subr.bf16.mxu0 0
        %1548 = vmatpush1.bf16.msra.mxu0 %v1526
        %1549 = vmatprep.subr.bf16.mxu0 0
        %1550 = vmatpush2.bf16.msra.mxu0 0
        %1551 = vmatprep.subr.bf16.mxu0 0
        %1552 = vmatpush2.bf16.msra.mxu0 0
        %1553 = vmatprep.subr.bf16.mxu0 0
        %1554 = vmatpush2.bf16.msra.mxu0 0
        %1555 = vmatprep.subr.bf16.mxu0 0
        %1556 = vmatpush2.bf16.msra.mxu0 0
        %1557 = vmatprep.subr.bf16.mxu0 0
        %1558 = vmatpush2.bf16.msra.mxu0 0
        %1559 = vmatprep.subr.bf16.mxu0 0
        %1560 = vmatpush2.bf16.msra.mxu0 0
        %1561 = vmatprep.subr.bf16.mxu0 0
        %1562 = vmatpush2.bf16.msra.mxu0 0
        %1563 = vmatprep.subr.bf16.mxu0 0
        %1564 = vmatpush2.bf16.msra.mxu0 0
        %1565 = vmatprep.mubr.bf16.mxu0 0
        %1566 = vmatmul.mubr.bf16.gmra.mxu0 %v1531
        %v1567 = vpop.f32.mrf.mxu0
        %v1568 = vadd.f32 %v1517, %v1567
        %v1569 = vpop.f32.mrf.mxu0
        %v1570 = vpop.f32.mrf.mxu0
        %v1571 = vadd.f32 %v1517, %v1570
        %v1572 = vpop.f32.mrf.mxu0
        %1573 = vdwg.mxu0
        %v1574 = vsel %vm402, %v1568, 0.0
        %1575 = vadd.xlane.f32.xlu0 %v1574
        %v1576 = vpop.xlane.xlu0 %1575
        %v1577 = vsel %vm402, %v1571, 0.0
        %1578 = vadd.xlane.f32.xlu0 %v1577
        %v1579 = vpop.xlane.xlu0 %1578
        %v1580 = vrcp.pop 32.0
        %v1581 = vmul.f32 %v1576, %v1580
        %v1582 = vmul.f32 %v1579, %v1580
        %v1583 = vsub.f32 %v1568, %v1581
        %v1584 = vsub.f32 %v1571, %v1582
        %v1585 = vmul.f32 %v1583, %v1583
        %v1586 = vmul.f32 %v1584, %v1584
        %v1587 = vsel %vm402, %v1585, 0.0
        %1588 = vadd.xlane.f32.xlu0 %v1587
        %v1589 = vpop.xlane.xlu0 %1588
        %v1590 = vsel %vm402, %v1586, 0.0
        %1591 = vadd.xlane.f32.xlu0 %v1590
        %v1592 = vpop.xlane.xlu0 %1591
        %v1593 = vmul.f32 %v1589, %v1580
        %v1594 = vmul.f32 %v1592, %v1580
        %v1595 = vadd.f32 %v1593, 1e-05
        %v1596 = vadd.f32 %v1594, 1e-05
        %v1597 = vrsqrt.pop %v1595
        %v1598 = vrsqrt.pop %v1596
        %v1599 = vmul.f32 %v1583, %v1597
        %v1600 = vmul.f32 %v1584, %v1598
        %v1601 = vlaneseq
        %v1602 = vshrl.u32 %v1601, 7
        %v1603 = vsub.s32 0, %v1602
        %v1604 = vrot.slane %v377, %v1603
        %v1605 = vmul.f32 %v1599, %v1604
        %v1606 = vmul.f32 %v1600, %v1604
        %v1607 = vlaneseq
        %v1608 = vshrl.u32 %v1607, 7
        %v1609 = vsub.s32 0, %v1608
        %v1610 = vrot.slane %v378, %v1609
        %v1611 = vadd.f32 %v1605, %v1610
        %v1612 = vadd.f32 %v1606, %v1610
        %v1613 = vpack.c.bf16 %v1612, %v1611
        %v1615 = vunpack.c.l.b16 %v1613
        %v1616 = vunpack.c.h.b16 %v1613
        %v1617 = vpack.c.b16 %v1615, %v1615
        %v1618 = vpack.c.b16 %v1616, %v1616
        %vm1621 = vcmask 257024
        %1622 = vst.msk [vmem:[%s332] sm:$0xf] %vm1621, %v1617
        %1623 = vst.msk [vmem:[%s332 + $0x4] sm:$0xf] %vm1621, %v1618
        %s1624 = sand.u32 %s178, 1
        %s1625 = scalar_lea.sflag [#allocation4], %s1624
        %s1626 = sand.u32 %s178, 1
        %s1627 = smul.addr %s1626, 8
        %s1628 = scalar_lea.vmem [#allocation7], %s1627
        // Predicated region
        $region53: #{tpu_custom_call.1} parent=43 // pred_check
          %p1629 = pneg %p188
        $region54: #{tpu_custom_call.1} parent=43 // pred_check_branch
          %1631 = sbr.rel (%p1629) target = $region56
        $region55: #{tpu_custom_call.1} parent=43 // pred_region
          %s1632 = smul.u32 2, %s24
          %s1634 = ssub.s32 128, 128
          %1635 = vsyncadd %s1625, %s1634
          %s1636 = smul.addr %s1632, 64
          %s1637 = scalar_lea.hbm %s6, %s1636
          %s1638 = sshll.u32 %s1628, 4
          %s1639 = int_to_ptr.vmem [resolvable:$true] %s1638
          %1644 = dma.vmem_to_hbm [thread:$0]  %s1639, 128, %s1637, %s1625, 64, 64, 4
        $region56: #{tpu_custom_call.1} parent=43 // pred_fallthru
          _
      $region44: #{tpu_custom_call.1} parent=5 // pred_fallthru
        _
      %p1645 = scmp.le.s32.totalorder 2, %s19
      // Predicated region
      $region57: #{tpu_custom_call.1} parent=5 // pred_check
        %p1646 = pneg %p1645
      $region58: #{tpu_custom_call.1} parent=5 // pred_check_branch
        %1648 = sbr.rel (%p1646) target = $region60
      $region59: #{tpu_custom_call.1} parent=5 // pred_region
        %s1649 = ssub.s32 %s19, 2
        // Predicated region
        $region61: #{tpu_custom_call.1} parent=59 // pred_check
          %p1650 = pneg %p194
        $region62: #{tpu_custom_call.1} parent=59 // pred_check_branch
          %1652 = sbr.rel (%p1650) target = $region64
        $region63: #{tpu_custom_call.1} parent=59 // pred_region
          %s1653 = sand.u32 %s179, 1
          %s1654 = scalar_lea.sflag [#allocation4], %s1653
          %s1655 = sand.u32 %s179, 1
          %s1656 = smul.addr %s1655, 8
          %s1657 = scalar_lea.vmem [#allocation7], %s1656
          %1658 = dma.done %s1654, 128
        $region64: #{tpu_custom_call.1} parent=59 // pred_fallthru
          _
      $region60: #{tpu_custom_call.1} parent=5 // pred_fallthru
        _
    $region6: #{tpu_custom_call.1} parent=1 // loop_footer
      %s23 = sadd.s32 1, %s19
    $region7: #{tpu_custom_call.1} parent=1 // loop_footer_branch
      %18 = sbr.rel target = $region3
    $region8: #{tpu_custom_call.1} parent=1 // loop_exit
      _
    %1659 = vsyncpa [#allocation3], 1
    %s1660 = scalar_lea.sflag [#allocation3], 1
    %1661 = vsyncpa %s1660, 1
    %1662 = vsyncpa [#allocation6], 1
    %1663 = vsyncpa [#allocation4], 1
    %s1664 = scalar_lea.sflag [#allocation4], 1
    %1665 = vsyncpa %s1664, 1

// kernel: tpu_custom_call.1
$region0: #{tpu_custom_call.1}
  #allocation0 [shape = 'u32[]', space=smem, size = 0x4, offset = 0x4, fixed_abs, tag = 'smem constant byte address 0x4 - core index']
  #allocation1 [shape = 'u32[144,128]{1,0:T(1,128)}', space=vmem, size = 0x12000, scoped, tag = 'internal scratch']
  %s0 = inlined_call_operand.vmem [shape: bf16[32,32], index: 0, kind: input, shape index: {}]
  %s1 = inlined_call_operand.vmem [shape: bf16[32,32], index: 1, kind: input, shape index: {}]
  %s2 = inlined_call_operand.hbm [shape: bf16[32,32], index: 2, kind: input, shape index: {}]
  %s3 = inlined_call_operand.vmem [shape: f32[32,1], index: 3, kind: input, shape index: {}]
  %s4 = inlined_call_operand.hbm [shape: bf16[4,32,32], index: 4, kind: input, shape index: {}]
  %s5 = inlined_call_operand.vmem [shape: f32[6,32], index: 5, kind: input, shape index: {}]
  %s6 = inlined_call_operand.hbm [shape: bf16[32,32], index: 6, kind: output, shape index: {}]
  %s7 = sld [smem:[#allocation0]]
  $region65: #{tpu_custom_call.1} parent=0
    _
  %s9 = ssub.s32 1, %s7
  %s10 = scalar_select 0, %s9, %s7
  $region1: #{tpu_custom_call.1} parent=0
    #allocation2 [shape = 'u8[8192]{0}', space=vmem, size = 0x2000, scoped, tag = 'input window, operand 2']
    #allocation3 [shape = 's32[2]{0}', space=sflag, size = 0x8, scoped, tag = 'scoped memory for tpu_custom_call.1']
    #allocation4 [shape = 's32[2]{0}', space=sflag, size = 0x8, scoped, tag = 'scoped memory for tpu_custom_call.1']
    #allocation5 [shape = 'u8[32768]{0}', space=vmem, size = 0x8000, scoped, tag = 'input window, operand 4, single buffered']
    #allocation6 [shape = 's32[1]{0}', space=sflag, size = 0x4, scoped, tag = 'scoped memory for tpu_custom_call.1']
    #allocation7 [shape = 'u8[8192]{0}', space=vmem, size = 0x2000, scoped, tag = 'output window, operand 0']
    %11 = vsyncpa [#allocation3], 0
    %s12 = scalar_lea.sflag [#allocation3], 1
    %13 = vsyncpa %s12, 0
    %14 = vsyncpa [#allocation6], 0
    %15 = vsyncpa [#allocation4], 0
    %s16 = scalar_lea.sflag [#allocation4], 1
    %17 = vsyncpa %s16, 0
    loop: start=0, step=1, limit=4
    $region2: #{tpu_custom_call.1} parent=1 // loop_pre_header
      _
    $region3: #{tpu_custom_call.1} parent=1 // loop_header
      %s19 = sphi 0, %s23
      %p20 = scmp.ge.s32.totalorder %s19, 4
      %s29 = sphi 0, %s31
      %s32 = sphi 0, %s29
      %s33 = sphi 0, %s32
      %s49 = sphi 0, %s33
      %s55 = sphi 0, %s57
      %s58 = sphi 0, %s55
      %s59 = sphi 0, %s58
      %s75 = sphi 0, %s59
      %s81 = sphi 0, %s83
      %s84 = sphi 0, %s81
      %s85 = sphi 0, %s84
      %s101 = sphi 0, %s85
      %s107 = sphi 0, %s109
      %s110 = sphi 0, %s107
      %s111 = sphi 0, %s110
      %s127 = sphi 0, %s111
      %s131 = sphi 0, %s131
      %s133 = sphi 0, %s131
      %s134 = sphi 0, %s133
      %s148 = sphi 0, %s134
      %s152 = sphi 0, %s152
      %s154 = sphi 0, %s152
      %s155 = sphi 0, %s154
      %s169 = sphi 0, %s155
      %s175 = sphi 0, %s177
      %s178 = sphi 0, %s175
      %s179 = sphi 0, %s178
      %s195 = sphi 0, %s179
    $region4: #{tpu_custom_call.1} parent=1 // loop_header_branch
      %22 = sbr.rel (%p20) target = $region8
    $region5: #{tpu_custom_call.1} parent=1 // loop_body
      %s24 = ssub.s32 %s19, 1
      %s25 = ssub.s32 %s19, 2
      %s26 = sadd.s32 %s19, 1
      %s27 = ssub.s32 %s19, %s26
      %p28 = scmp.eq.s32.totalorder %s27, 0
      %s30 = sadd.s32 %s29, 1
      %s31 = scalar_select %p28, %s29, %s30
      %p34 = pneg %p28
      %p35 = scmp.eq.s32.totalorder %s19, 1
      %p36 = por %p34, %p35
      %p37 = scmp.ne.s32.totalorder %s29, %s32
      %p38 = scmp.eq.s32.totalorder %s19, 0
      %p39 = por %p37, %p38
      %p40 = scmp.ne.s32.totalorder %s29, %s32
      %p41 = scmp.eq.s32.totalorder %s24, 1
      %p42 = por %p40, %p41
      %p43 = scmp.ne.s32.totalorder %s32, %s33
      %p44 = scmp.eq.s32.totalorder %s24, 0
      %p45 = por %p43, %p44
      %p46 = scmp.ne.s32.totalorder %s32, %s33
      %p47 = scmp.eq.s32.totalorder %s25, 1
      %p48 = por %p46, %p47
      %p50 = scmp.ne.s32.totalorder %s33, %s49
      %p51 = scmp.eq.s32.totalorder %s25, 0
      %p52 = por %p50, %p51
      %s53 = ssub.s32 %s19, %s26
      %p54 = scmp.eq.s32.totalorder %s53, 0
      %s56 = sadd.s32 %s55, 1
      %s57 = scalar_select %p54, %s55, %s56
      %p60 = pneg %p54
      %p61 = scmp.eq.s32.totalorder %s19, 1
      %p62 = por %p60, %p61
      %p63 = scmp.ne.s32.totalorder %s55, %s58
      %p64 = scmp.eq.s32.totalorder %s19, 0
      %p65 = por %p63, %p64
      %p66 = scmp.ne.s32.totalorder %s55, %s58
      %p67 = scmp.eq.s32.totalorder %s24, 1
      %p68 = por %p66, %p67
      %p69 = scmp.ne.s32.totalorder %s58, %s59
      %p70 = scmp.eq.s32.totalorder %s24, 0
      %p71 = por %p69, %p70
      %p72 = scmp.ne.s32.totalorder %s58, %s59
      %p73 = scmp.eq.s32.totalorder %s25, 1
      %p74 = por %p72, %p73
      %p76 = scmp.ne.s32.totalorder %s59, %s75
      %p77 = scmp.eq.s32.totalorder %s25, 0
      %p78 = por %p76, %p77
      %s79 = ssub.s32 %s19, %s26
      %p80 = scmp.eq.s32.totalorder %s79, 0
      %s82 = sadd.s32 %s81, 1
      %s83 = scalar_select %p80, %s81, %s82
      %p86 = pneg %p80
      %p87 = scmp.eq.s32.totalorder %s19, 1
      %p88 = por %p86, %p87
      %p89 = scmp.ne.s32.totalorder %s81, %s84
      %p90 = scmp.eq.s32.totalorder %s19, 0
      %p91 = por %p89, %p90
      %p92 = scmp.ne.s32.totalorder %s81, %s84
      %p93 = scmp.eq.s32.totalorder %s24, 1
      %p94 = por %p92, %p93
      %p95 = scmp.ne.s32.totalorder %s84, %s85
      %p96 = scmp.eq.s32.totalorder %s24, 0
      %p97 = por %p95, %p96
      %p98 = scmp.ne.s32.totalorder %s84, %s85
      %p99 = scmp.eq.s32.totalorder %s25, 1
      %p100 = por %p98, %p99
      %p102 = scmp.ne.s32.totalorder %s85, %s101
      %p103 = scmp.eq.s32.totalorder %s25, 0
      %p104 = por %p102, %p103
      %s105 = ssub.s32 %s19, %s26
      %p106 = scmp.eq.s32.totalorder %s105, 0
      %s108 = sadd.s32 %s107, 1
      %s109 = scalar_select %p106, %s107, %s108
      %p112 = pneg %p106
      %p113 = scmp.eq.s32.totalorder %s19, 1
      %p114 = por %p112, %p113
      %p115 = scmp.ne.s32.totalorder %s107, %s110
      %p116 = scmp.eq.s32.totalorder %s19, 0
      %p117 = por %p115, %p116
      %p118 = scmp.ne.s32.totalorder %s107, %s110
      %p119 = scmp.eq.s32.totalorder %s24, 1
      %p120 = por %p118, %p119
      %p121 = scmp.ne.s32.totalorder %s110, %s111
      %p122 = scmp.eq.s32.totalorder %s24, 0
      %p123 = por %p121, %p122
      %p124 = scmp.ne.s32.totalorder %s110, %s111
      %p125 = scmp.eq.s32.totalorder %s25, 1
      %p126 = por %p124, %p125
      %p128 = scmp.ne.s32.totalorder %s111, %s127
      %p129 = scmp.eq.s32.totalorder %s25, 0
      %p130 = por %p128, %p129
      %s132 = sadd.s32 %s131, 1
      %p135 = scmp.eq.s32.totalorder %s19, 1
      %p136 = scmp.ne.s32.totalorder %s131, %s133
      %p137 = scmp.eq.s32.totalorder %s19, 0
      %p138 = por %p136, %p137
      %p139 = scmp.ne.s32.totalorder %s131, %s133
      %p140 = scmp.eq.s32.totalorder %s24, 1
      %p141 = por %p139, %p140
      %p142 = scmp.ne.s32.totalorder %s133, %s134
      %p143 = scmp.eq.s32.totalorder %s24, 0
      %p144 = por %p142, %p143
      %p145 = scmp.ne.s32.totalorder %s133, %s134
      %p146 = scmp.eq.s32.totalorder %s25, 1
      %p147 = por %p145, %p146
      %p149 = scmp.ne.s32.totalorder %s134, %s148
      %p150 = scmp.eq.s32.totalorder %s25, 0
      %p151 = por %p149, %p150
      %s153 = sadd.s32 %s152, 1
      %p156 = scmp.eq.s32.totalorder %s19, 1
      %p157 = scmp.ne.s32.totalorder %s152, %s154
      %p158 = scmp.eq.s32.totalorder %s19, 0
      %p159 = por %p157, %p158
      %p160 = scmp.ne.s32.totalorder %s152, %s154
      %p161 = scmp.eq.s32.totalorder %s24, 1
      %p162 = por %p160, %p161
      %p163 = scmp.ne.s32.totalorder %s154, %s155
      %p164 = scmp.eq.s32.totalorder %s24, 0
      %p165 = por %p163, %p164
      %p166 = scmp.ne.s32.totalorder %s154, %s155
      %p167 = scmp.eq.s32.totalorder %s25, 1
      %p168 = por %p166, %p167
      %p170 = scmp.ne.s32.totalorder %s155, %s169
      %p171 = scmp.eq.s32.totalorder %s25, 0
      %p172 = por %p170, %p171
      %s173 = ssub.s32 %s19, %s26
      %p174 = scmp.eq.s32.totalorder %s173, 0
      %s176 = sadd.s32 %s175, 1
      %s177 = scalar_select %p174, %s175, %s176
      %p180 = pneg %p174
      %p181 = scmp.eq.s32.totalorder %s19, 1
      %p182 = por %p180, %p181
      %p183 = scmp.ne.s32.totalorder %s175, %s178
      %p184 = scmp.eq.s32.totalorder %s19, 0
      %p185 = por %p183, %p184
      %p186 = scmp.ne.s32.totalorder %s175, %s178
      %p187 = scmp.eq.s32.totalorder %s24, 1
      %p188 = por %p186, %p187
      %p189 = scmp.ne.s32.totalorder %s178, %s179
      %p190 = scmp.eq.s32.totalorder %s24, 0
      %p191 = por %p189, %p190
      %p192 = scmp.ne.s32.totalorder %s178, %s179
      %p193 = scmp.eq.s32.totalorder %s25, 1
      %p194 = por %p192, %p193
      %p196 = scmp.ne.s32.totalorder %s179, %s195
      %p197 = scmp.eq.s32.totalorder %s25, 0
      %p198 = por %p196, %p197
      %p199 = scmp.le.s32.totalorder 1, %s19
      %p200 = scmp.lt.s32.totalorder %s19, 3
      %p201 = pnand %p199, %p200
      %p202 = pneg %p201
      // Predicated region
      $region9: #{tpu_custom_call.1} parent=5 // pred_check
        _
      $region10: #{tpu_custom_call.1} parent=5 // pred_check_branch
        %204 = sbr.rel (%p201) target = $region12
      $region11: #{tpu_custom_call.1} parent=5 // pred_region
        %s205 = ssub.s32 %s19, 1
        // Predicated region
        $region13: #{tpu_custom_call.1} parent=11 // pred_check
          %p206 = pneg %p144
        $region14: #{tpu_custom_call.1} parent=11 // pred_check_branch
          %208 = sbr.rel (%p206) target = $region16
        $region15: #{tpu_custom_call.1} parent=11 // pred_region
          %s210 = ssub.s32 1024, 1024
          %211 = vsyncadd [#allocation6], %s210
          %s212 = sshll.u32 [#allocation5], 4
          %s213 = int_to_ptr.vmem [resolvable:$true] %s212
          %218 = dma.hbm_to_vmem [thread:$0]  %s4, 1024, %s213, [#allocation6], 64, 64, 4
        $region16: #{tpu_custom_call.1} parent=11 // pred_fallthru
          _
        // Predicated region
        $region17: #{tpu_custom_call.1} parent=11 // pred_check
          %p219 = pneg %p165
        $region18: #{tpu_custom_call.1} parent=11 // pred_check_branch
          %221 = sbr.rel (%p219) target = $region20
        $region19: #{tpu_custom_call.1} parent=11 // pred_region
          _
        $region20: #{tpu_custom_call.1} parent=11 // pred_fallthru
          _
      $region12: #{tpu_custom_call.1} parent=5 // pred_fallthru
        _
      %p222 = scmp.lt.s32.totalorder %s19, 2
      // Predicated region
      $region21: #{tpu_custom_call.1} parent=5 // pred_check
        %p223 = pneg %p222
      $region22: #{tpu_custom_call.1} parent=5 // pred_check_branch
        %225 = sbr.rel (%p223) target = $region24
      $region23: #{tpu_custom_call.1} parent=5 // pred_region
        // Predicated region
        $region25: #{tpu_custom_call.1} parent=23 // pred_check
          %p226 = pneg %p39
        $region26: #{tpu_custom_call.1} parent=23 // pred_check_branch
          %228 = sbr.rel (%p226) target = $region28
        $region27: #{tpu_custom_call.1} parent=23 // pred_region
          %s229 = smul.u32 2, %s19
          %p230 = scmp.lt.s32.totalorder %s229, 3
          %s231 = scalar_select %p230, %s229, 3
          %s232 = smul.addr %s231, 4
          %s233 = scalar_lea.vmem %s0, %s232
          %s234 = smul.u32 2, %s19
        $region28: #{tpu_custom_call.1} parent=23 // pred_fallthru
          _
        // Predicated region
        $region29: #{tpu_custom_call.1} parent=23 // pred_check
          %p235 = pneg %p65
        $region30: #{tpu_custom_call.1} parent=23 // pred_check_branch
          %237 = sbr.rel (%p235) target = $region32
        $region31: #{tpu_custom_call.1} parent=23 // pred_region
          %s238 = smul.u32 2, %s19
          %p239 = scmp.lt.s32.totalorder %s238, 3
          %s240 = scalar_select %p239, %s238, 3
          %s241 = smul.addr %s240, 4
          %s242 = scalar_lea.vmem %s1, %s241
          %s243 = smul.u32 2, %s19
        $region32: #{tpu_custom_call.1} parent=23 // pred_fallthru
          _
        // Predicated region
        $region33: #{tpu_custom_call.1} parent=23 // pred_check
          %p244 = pneg %p91
        $region34: #{tpu_custom_call.1} parent=23 // pred_check_branch
          %246 = sbr.rel (%p244) target = $region36
        $region35: #{tpu_custom_call.1} parent=23 // pred_region
          %s247 = sand.u32 %s81, 1
          %s248 = scalar_lea.sflag [#allocation3], %s247
          %s249 = sand.u32 %s81, 1
          %s250 = smul.addr %s249, 8
          %s251 = scalar_lea.vmem [#allocation2], %s250
          %s252 = smul.u32 2, %s19
          %s254 = ssub.s32 128, 128
          %255 = vsyncadd %s248, %s254
          %s256 = smul.addr %s252, 64
          %s257 = scalar_lea.hbm %s2, %s256
          %s258 = sshll.u32 %s251, 4
          %s259 = int_to_ptr.vmem [resolvable:$true] %s258
          %264 = dma.hbm_to_vmem [thread:$0]  %s257, 128, %s259, %s248, 64, 64, 4
        $region36: #{tpu_custom_call.1} parent=23 // pred_fallthru
          _
        // Predicated region
        $region37: #{tpu_custom_call.1} parent=23 // pred_check
          %p265 = pneg %p117
        $region38: #{tpu_custom_call.1} parent=23 // pred_check_branch
          %267 = sbr.rel (%p265) target = $region40
        $region39: #{tpu_custom_call.1} parent=23 // pred_region
          %s268 = smul.u32 2, %s19
          %p269 = scmp.lt.s32.totalorder %s268, 3
          %s270 = scalar_select %p269, %s268, 3
          %s271 = smul.addr %s270, 8
          %s272 = scalar_lea.vmem %s3, %s271
          %s273 = smul.u32 2, %s19
        $region40: #{tpu_custom_call.1} parent=23 // pred_fallthru
          _
      $region24: #{tpu_custom_call.1} parent=5 // pred_fallthru
        _
      %p274 = scmp.le.s32.totalorder 1, %s19
      %p275 = scmp.lt.s32.totalorder %s19, 3
      %p276 = pnand %p274, %p275
      %p277 = pneg %p276
      // Predicated region
      $region41: #{tpu_custom_call.1} parent=5 // pred_check
        _
      $region42: #{tpu_custom_call.1} parent=5 // pred_check_branch
        %279 = sbr.rel (%p276) target = $region44
      $region43: #{tpu_custom_call.1} parent=5 // pred_region
        %s280 = ssub.s32 %s19, 1
        %s281 = sand.u32 %s84, 1
        %s282 = scalar_lea.sflag [#allocation3], %s281
        %s283 = sand.u32 %s84, 1
        %s284 = smul.addr %s283, 8
        %s285 = scalar_lea.vmem [#allocation2], %s284
        // Predicated region
        $region45: #{tpu_custom_call.1} parent=43 // pred_check
          %p286 = pneg %p97
        $region46: #{tpu_custom_call.1} parent=43 // pred_check_branch
          %288 = sbr.rel (%p286) target = $region48
        $region47: #{tpu_custom_call.1} parent=43 // pred_region
          %289 = dma.done %s282, 128
        $region48: #{tpu_custom_call.1} parent=43 // pred_fallthru
          _
        // Predicated region
        $region49: #{tpu_custom_call.1} parent=43 // pred_check
          %p290 = pneg %p144
        $region50: #{tpu_custom_call.1} parent=43 // pred_check_branch
          %292 = sbr.rel (%p290) target = $region52
        $region51: #{tpu_custom_call.1} parent=43 // pred_region
          %293 = dma.done [#allocation6], 1024
        $region52: #{tpu_custom_call.1} parent=43 // pred_fallthru
          _
        %s294 = smul.u32 2, %s24
        %p295 = scmp.lt.s32.totalorder %s294, 3
        %s296 = scalar_select %p295, %s294, 3
        %s297 = smul.addr %s296, 4
        %s298 = scalar_lea.vmem %s0, %s297
        %p299 = pneg %p45
        %p300 = pneg %p42
        %s301 = smul.u32 2, %s24
        %p302 = scmp.lt.s32.totalorder %s301, 3
        %s303 = scalar_select %p302, %s301, 3
        %s304 = smul.addr %s303, 4
        %s305 = scalar_lea.vmem %s1, %s304
        %p306 = pneg %p71
        %p307 = pneg %p68
        %s308 = sand.u32 %s84, 1
        %s309 = scalar_lea.sflag [#allocation3], %s308
        %s310 = sand.u32 %s84, 1
        %s311 = smul.addr %s310, 8
        %s312 = scalar_lea.vmem [#allocation2], %s311
        %p313 = pneg %p97
        %p314 = pneg %p94
        %s315 = smul.u32 2, %s24
        %p316 = scmp.lt.s32.totalorder %s315, 3
        %s317 = scalar_select %p316, %s315, 3
        %s318 = smul.addr %s317, 8
        %s319 = scalar_lea.vmem %s3, %s318
        %p320 = pneg %p123
        %p321 = pneg %p120
        %p322 = pneg %p144
        %p323 = pneg %p141
        %p324 = pneg %p165
        %p325 = pneg %p162
        %p326 = pneg %p191
        %p327 = pneg %p188
        %s328 = sand.u32 %s178, 1
        %s329 = scalar_lea.sflag [#allocation4], %s328
        %s330 = sand.u32 %s178, 1
        %s331 = smul.addr %s330, 8
        %s332 = scalar_lea.vmem [#allocation7], %s331
        %s333 = smul.u32 2, %s24
        %p334 = scmp.lt.s32.totalorder %s333, 3
        %s335 = scalar_select %p334, %s333, 3
        %s336 = smul.addr %s335, 4
        %s337 = scalar_lea.vmem %s0, %s336
        %s338 = smul.u32 2, %s24
        %s339 = smul.u32 2, %s24
        %p340 = scmp.lt.s32.totalorder %s339, 3
        %s341 = scalar_select %p340, %s339, 3
        %s342 = smul.addr %s341, 4
        %s343 = scalar_lea.vmem %s1, %s342
        %s344 = smul.u32 2, %s24
        %s345 = smul.u32 2, %s24
        %s346 = smul.u32 2, %s24
        %p347 = scmp.lt.s32.totalorder %s346, 3
        %s348 = scalar_select %p347, %s346, 3
        %s349 = smul.addr %s348, 8
        %s350 = scalar_lea.vmem %s3, %s349
        %s351 = smul.u32 2, %s24
        %s352 = smul.u32 2, %s24
        %v354 = vld [vmem:[#allocation5] sm:$0xf]
        %v355 = vld [vmem:[#allocation5 + $0x4] sm:$0xf]
        %v356 = vld [vmem:[#allocation5 + $0x8] sm:$0xf]
        %v357 = vld [vmem:[#allocation5 + $0xc] sm:$0xf]
        %s358 = scalar_lea.vmem [#allocation5], 16
        %v359 = vld [vmem:[%s358] sm:$0xf]
        %v360 = vld [vmem:[%s358 + $0x4] sm:$0xf]
        %v361 = vld [vmem:[%s358 + $0x8] sm:$0xf]
        %v362 = vld [vmem:[%s358 + $0xc] sm:$0xf]
        %s363 = scalar_lea.vmem [#allocation5], 32
        %v364 = vld [vmem:[%s363] sm:$0xf]
        %v365 = vld [vmem:[%s363 + $0x4] sm:$0xf]
        %v366 = vld [vmem:[%s363 + $0x8] sm:$0xf]
        %v367 = vld [vmem:[%s363 + $0xc] sm:$0xf]
        %s368 = scalar_lea.vmem [#allocation5], 48
        %v369 = vld [vmem:[%s368] sm:$0xf]
        %v370 = vld [vmem:[%s368 + $0x4] sm:$0xf]
        %v371 = vld [vmem:[%s368 + $0x8] sm:$0xf]
        %v372 = vld [vmem:[%s368 + $0xc] sm:$0xf]
        %v373 = vld [vmem:[%s5] sm:$0x1]
        %v374 = vld [vmem:[%s5 + $0x1] sm:$0x1]
        %v375 = vld [vmem:[%s5 + $0x2] sm:$0x1]
        %v376 = vld [vmem:[%s5 + $0x3] sm:$0x1]
        %v377 = vld [vmem:[%s5 + $0x4] sm:$0x1]
        %v378 = vld [vmem:[%s5 + $0x5] sm:$0x1]
        %v379 = vld [vmem:[%s337] sm:$0xf]
        %v380 = vld [vmem:[%s337 + $0x4] sm:$0xf]
        %v381 = vlaneseq
        %v382 = vshrl.u32 %v381, 7
        %v383 = vsub.s32 0, %v382
        %v384 = vrot.slane %v373, %v383
        %v387 = vunpack.c.l.b16 %v379
        %v388 = vunpack.c.l.b16 %v380
        %v389 = vpack.c.b16 %v388, %v387
        %v394 = vunpack.c.l.b16 %v354
        %v395 = vunpack.c.l.b16 %v355
        %v396 = vunpack.c.l.b16 %v356
        %v397 = vunpack.c.l.b16 %v357
        %v398 = vpack.c.b16 %v395, %v394
        %v399 = vpack.c.b16 %v397, %v396
        %vm402 = vcmask 261120
        %v404 = vsel %vm402, %v389, 0
        %406 = vmatprep.subr.bf16.mxu0 0
        %407 = vmatpush1.bf16.msra.mxu0 0
        %408 = vmatprep.subr.bf16.mxu0 0
        %409 = vmatpush1.bf16.msra.mxu0 0
        %410 = vmatprep.subr.bf16.mxu0 0
        %411 = vmatpush1.bf16.msra.mxu0 0
        %412 = vmatprep.subr.bf16.mxu0 0
        %413 = vmatpush1.bf16.msra.mxu0 0
        %414 = vmatprep.subr.bf16.mxu0 0
        %415 = vmatpush1.bf16.msra.mxu0 0
        %416 = vmatprep.subr.bf16.mxu0 0
        %417 = vmatpush1.bf16.msra.mxu0 0
        %418 = vmatprep.subr.bf16.mxu0 0
        %419 = vmatpush1.bf16.msra.mxu0 %v399
        %420 = vmatprep.subr.bf16.mxu0 0
        %421 = vmatpush1.bf16.msra.mxu0 %v398
        %422 = vmatprep.subr.bf16.mxu0 0
        %423 = vmatpush2.bf16.msra.mxu0 0
        %424 = vmatprep.subr.bf16.mxu0 0
        %425 = vmatpush2.bf16.msra.mxu0 0
        %426 = vmatprep.subr.bf16.mxu0 0
        %427 = vmatpush2.bf16.msra.mxu0 0
        %428 = vmatprep.subr.bf16.mxu0 0
        %429 = vmatpush2.bf16.msra.mxu0 0
        %430 = vmatprep.subr.bf16.mxu0 0
        %431 = vmatpush2.bf16.msra.mxu0 0
        %432 = vmatprep.subr.bf16.mxu0 0
        %433 = vmatpush2.bf16.msra.mxu0 0
        %434 = vmatprep.subr.bf16.mxu0 0
        %435 = vmatpush2.bf16.msra.mxu0 0
        %436 = vmatprep.subr.bf16.mxu0 0
        %437 = vmatpush2.bf16.msra.mxu0 0
        %438 = vmatprep.mubr.bf16.mxu0 0
        %439 = vmatmul.mubr.bf16.gmra.mxu0 %v404
        %v440 = vpop.f32.mrf.mxu0
        %v441 = vadd.f32 %v384, %v440
        %v442 = vpop.f32.mrf.mxu0
        %v443 = vpop.f32.mrf.mxu0
        %v444 = vadd.f32 %v384, %v443
        %v445 = vpop.f32.mrf.mxu0
        %446 = vdwg.mxu0
        %v447 = vmul.f32 %v441, 0.35355338
        %v448 = vmul.f32 %v444, 0.35355338
        %v449 = vld [vmem:[%s343] sm:$0xf]
        %v450 = vld [vmem:[%s343 + $0x4] sm:$0xf]
        %v451 = vlaneseq
        %v452 = vshrl.u32 %v451, 7
        %v453 = vsub.s32 0, %v452
        %v454 = vrot.slane %v374, %v453
        %v457 = vunpack.c.l.b16 %v449
        %v458 = vunpack.c.l.b16 %v450
        %v459 = vpack.c.b16 %v458, %v457
        %v464 = vunpack.c.l.b16 %v359
        %v465 = vunpack.c.l.b16 %v360
        %v466 = vunpack.c.l.b16 %v361
        %v467 = vunpack.c.l.b16 %v362
        %v468 = vpack.c.b16 %v465, %v464
        %v469 = vpack.c.b16 %v467, %v466
        %v473 = vsel %vm402, %v459, 0
        %475 = vmatprep.subr.bf16.mxu0 0
        %476 = vmatpush1.bf16.msra.mxu0 0
        %477 = vmatprep.subr.bf16.mxu0 0
        %478 = vmatpush1.bf16.msra.mxu0 0
        %479 = vmatprep.subr.bf16.mxu0 0
        %480 = vmatpush1.bf16.msra.mxu0 0
        %481 = vmatprep.subr.bf16.mxu0 0
        %482 = vmatpush1.bf16.msra.mxu0 0
        %483 = vmatprep.subr.bf16.mxu0 0
        %484 = vmatpush1.bf16.msra.mxu0 0
        %485 = vmatprep.subr.bf16.mxu0 0
        %486 = vmatpush1.bf16.msra.mxu0 0
        %487 = vmatprep.subr.bf16.mxu0 0
        %488 = vmatpush1.bf16.msra.mxu0 %v469
        %489 = vmatprep.subr.bf16.mxu0 0
        %490 = vmatpush1.bf16.msra.mxu0 %v468
        %491 = vmatprep.subr.bf16.mxu0 0
        %492 = vmatpush2.bf16.msra.mxu0 0
        %493 = vmatprep.subr.bf16.mxu0 0
        %494 = vmatpush2.bf16.msra.mxu0 0
        %495 = vmatprep.subr.bf16.mxu0 0
        %496 = vmatpush2.bf16.msra.mxu0 0
        %497 = vmatprep.subr.bf16.mxu0 0
        %498 = vmatpush2.bf16.msra.mxu0 0
        %499 = vmatprep.subr.bf16.mxu0 0
        %500 = vmatpush2.bf16.msra.mxu0 0
        %501 = vmatprep.subr.bf16.mxu0 0
        %502 = vmatpush2.bf16.msra.mxu0 0
        %503 = vmatprep.subr.bf16.mxu0 0
        %504 = vmatpush2.bf16.msra.mxu0 0
        %505 = vmatprep.subr.bf16.mxu0 0
        %506 = vmatpush2.bf16.msra.mxu0 0
        %507 = vmatprep.mubr.bf16.mxu0 0
        %508 = vmatmul.mubr.bf16.gmra.mxu0 %v473
        %v509 = vpop.f32.mrf.mxu0
        %v510 = vadd.f32 %v454, %v509
        %v511 = vpop.f32.mrf.mxu0
        %v512 = vpop.f32.mrf.mxu0
        %v513 = vadd.f32 %v454, %v512
        %v514 = vpop.f32.mrf.mxu0
        %515 = vdwg.mxu0
        %v516 = vld [vmem:[%s285] sm:$0xf]
        %v517 = vld [vmem:[%s285 + $0x4] sm:$0xf]
        %v518 = vlaneseq
        %v519 = vshrl.u32 %v518, 7
        %v520 = vsub.s32 0, %v519
        %v521 = vrot.slane %v375, %v520
        %v524 = vunpack.c.l.b16 %v516
        %v525 = vunpack.c.l.b16 %v517
        %v526 = vpack.c.b16 %v525, %v524
        %v531 = vunpack.c.l.b16 %v364
        %v532 = vunpack.c.l.b16 %v365
        %v533 = vunpack.c.l.b16 %v366
        %v534 = vunpack.c.l.b16 %v367
        %v535 = vpack.c.b16 %v532, %v531
        %v536 = vpack.c.b16 %v534, %v533
        %v540 = vsel %vm402, %v526, 0
        %542 = vmatprep.subr.bf16.mxu0 0
        %543 = vmatpush1.bf16.msra.mxu0 0
        %544 = vmatprep.subr.bf16.mxu0 0
        %545 = vmatpush1.bf16.msra.mxu0 0
        %546 = vmatprep.subr.bf16.mxu0 0
        %547 = vmatpush1.bf16.msra.mxu0 0
        %548 = vmatprep.subr.bf16.mxu0 0
        %549 = vmatpush1.bf16.msra.mxu0 0
        %550 = vmatprep.subr.bf16.mxu0 0
        %551 = vmatpush1.bf16.msra.mxu0 0
        %552 = vmatprep.subr.bf16.mxu0 0
        %553 = vmatpush1.bf16.msra.mxu0 0
        %554 = vmatprep.subr.bf16.mxu0 0
        %555 = vmatpush1.bf16.msra.mxu0 %v536
        %556 = vmatprep.subr.bf16.mxu0 0
        %557 = vmatpush1.bf16.msra.mxu0 %v535
        %558 = vmatprep.subr.bf16.mxu0 0
        %559 = vmatpush2.bf16.msra.mxu0 0
        %560 = vmatprep.subr.bf16.mxu0 0
        %561 = vmatpush2.bf16.msra.mxu0 0
        %562 = vmatprep.subr.bf16.mxu0 0
        %563 = vmatpush2.bf16.msra.mxu0 0
        %564 = vmatprep.subr.bf16.mxu0 0
        %565 = vmatpush2.bf16.msra.mxu0 0
        %566 = vmatprep.subr.bf16.mxu0 0
        %567 = vmatpush2.bf16.msra.mxu0 0
        %568 = vmatprep.subr.bf16.mxu0 0
        %569 = vmatpush2.bf16.msra.mxu0 0
        %570 = vmatprep.subr.bf16.mxu0 0
        %571 = vmatpush2.bf16.msra.mxu0 0
        %572 = vmatprep.subr.bf16.mxu0 0
        %573 = vmatpush2.bf16.msra.mxu0 0
        %574 = vmatprep.mubr.bf16.mxu0 0
        %575 = vmatmul.mubr.bf16.gmra.mxu0 %v540
        %v576 = vpop.f32.mrf.mxu0
        %v577 = vadd.f32 %v521, %v576
        %v578 = vpop.f32.mrf.mxu0
        %v579 = vpop.f32.mrf.mxu0
        %v580 = vadd.f32 %v521, %v579
        %v581 = vpop.f32.mrf.mxu0
        %582 = vdwg.mxu0
        %v583 = vpack.c.bf16 %v447, %v447
        %v584 = vpack.c.bf16 %v448, %v448
        %v585 = vpack.c.bf16 %v510, %v510
        %v586 = vpack.c.bf16 %v513, %v513
        %v587 = vpack.c.bf16 %v577, %v577
        %v588 = vpack.c.bf16 %v580, %v580
        %vm589 = vcmask 64512
        %v591 = vsel %vm589, %v583, 0
        %v594 = vsel %vm589, %v585, 0
        %596 = vmatprep.subr.bf16.mxu0 0
        %597 = vmatpush1.bf16.xpose.msra.mxu0 0
        %598 = vmatprep.subr.bf16.mxu0 0
        %599 = vmatpush1.bf16.xpose.msra.mxu0 0
        %600 = vmatprep.subr.bf16.mxu0 0
        %601 = vmatpush1.bf16.xpose.msra.mxu0 0
        %602 = vmatprep.subr.bf16.mxu0 0
        %603 = vmatpush1.bf16.xpose.msra.mxu0 0
        %604 = vmatprep.subr.bf16.mxu0 0
        %605 = vmatpush1.bf16.xpose.msra.mxu0 0
        %606 = vmatprep.subr.bf16.mxu0 0
        %607 = vmatpush1.bf16.xpose.msra.mxu0 0
        %608 = vmatprep.subr.bf16.mxu0 0
        %609 = vmatpush1.bf16.xpose.msra.mxu0 0
        %610 = vmatprep.subr.bf16.mxu0 0
        %611 = vmatpush1.bf16.xpose.msra.mxu0 %v594
        %612 = vmatprep.subr.bf16.mxu0 0
        %613 = vmatpush2.bf16.xpose.msra.mxu0 0
        %614 = vmatprep.subr.bf16.mxu0 0
        %615 = vmatpush2.bf16.xpose.msra.mxu0 0
        %616 = vmatprep.subr.bf16.mxu0 0
        %617 = vmatpush2.bf16.xpose.msra.mxu0 0
        %618 = vmatprep.subr.bf16.mxu0 0
        %619 = vmatpush2.bf16.xpose.msra.mxu0 0
        %620 = vmatprep.subr.bf16.mxu0 0
        %621 = vmatpush2.bf16.xpose.msra.mxu0 0
        %622 = vmatprep.subr.bf16.mxu0 0
        %623 = vmatpush2.bf16.xpose.msra.mxu0 0
        %624 = vmatprep.subr.bf16.mxu0 0
        %625 = vmatpush2.bf16.xpose.msra.mxu0 0
        %626 = vmatprep.subr.bf16.mxu0 0
        %627 = vmatpush2.bf16.xpose.msra.mxu0 0
        %628 = vmatprep.mubr.bf16.mxu0 0
        %629 = vmatmul.mubr.bf16.gmra.mxu0 %v591
        %v630 = vpop.f32.mrf.mxu0
        %v631 = vadd.f32 0.0, %v630
        %v632 = vpop.f32.mrf.mxu0
        %v633 = vpop.f32.mrf.mxu0
        %v634 = vpop.f32.mrf.mxu0
        %635 = vdwg.mxu0
        %v637 = vsel %vm589, %v584, 0
        %v640 = vsel %vm589, %v586, 0
        %642 = vmatprep.subr.bf16.mxu0 0
        %643 = vmatpush1.bf16.xpose.msra.mxu0 0
        %644 = vmatprep.subr.bf16.mxu0 0
        %645 = vmatpush1.bf16.xpose.msra.mxu0 0
        %646 = vmatprep.subr.bf16.mxu0 0
        %647 = vmatpush1.bf16.xpose.msra.mxu0 0
        %648 = vmatprep.subr.bf16.mxu0 0
        %649 = vmatpush1.bf16.xpose.msra.mxu0 0
        %650 = vmatprep.subr.bf16.mxu0 0
        %651 = vmatpush1.bf16.xpose.msra.mxu0 0
        %652 = vmatprep.subr.bf16.mxu0 0
        %653 = vmatpush1.bf16.xpose.msra.mxu0 0
        %654 = vmatprep.subr.bf16.mxu0 0
        %655 = vmatpush1.bf16.xpose.msra.mxu0 0
        %656 = vmatprep.subr.bf16.mxu0 0
        %657 = vmatpush1.bf16.xpose.msra.mxu0 %v640
        %658 = vmatprep.subr.bf16.mxu0 0
        %659 = vmatpush2.bf16.xpose.msra.mxu0 0
        %660 = vmatprep.subr.bf16.mxu0 0
        %661 = vmatpush2.bf16.xpose.msra.mxu0 0
        %662 = vmatprep.subr.bf16.mxu0 0
        %663 = vmatpush2.bf16.xpose.msra.mxu0 0
        %664 = vmatprep.subr.bf16.mxu0 0
        %665 = vmatpush2.bf16.xpose.msra.mxu0 0
        %666 = vmatprep.subr.bf16.mxu0 0
        %667 = vmatpush2.bf16.xpose.msra.mxu0 0
        %668 = vmatprep.subr.bf16.mxu0 0
        %669 = vmatpush2.bf16.xpose.msra.mxu0 0
        %670 = vmatprep.subr.bf16.mxu0 0
        %671 = vmatpush2.bf16.xpose.msra.mxu0 0
        %672 = vmatprep.subr.bf16.mxu0 0
        %673 = vmatpush2.bf16.xpose.msra.mxu0 0
        %674 = vmatprep.mubr.bf16.mxu0 0
        %675 = vmatmul.mubr.bf16.gmra.mxu0 %v637
        %v676 = vpop.f32.mrf.mxu0
        %v677 = vadd.f32 0.0, %v676
        %v678 = vpop.f32.mrf.mxu0
        %v679 = vpop.f32.mrf.mxu0
        %v680 = vpop.f32.mrf.mxu0
        %681 = vdwg.mxu0
        %v682 = vsel %vm589, %v631, -inf
        %683 = vmax.xlane.f32.xlu0 %v682
        %v684 = vpop.xlane.xlu0 %683
        %v685 = vsel %vm589, %v677, -inf
        %686 = vmax.xlane.f32.xlu0 %v685
        %v687 = vpop.xlane.xlu0 %686
        %v688 = vsub.f32 %v631, %v684
        %v689 = vsub.f32 %v677, %v687
        %v690 = vmul.f32 %v688, 1.442695
        %v691 = vpow.pop %v690
        %v692 = vmul.f32 %v689, 1.442695
        %v693 = vpow.pop %v692
        %v694 = vsel %vm589, %v691, 0.0
        %695 = vadd.xlane.f32.xlu0 %v694
        %v696 = vpop.xlane.xlu0 %695
        %v697 = vsel %vm589, %v693, 0.0
        %698 = vadd.xlane.f32.xlu0 %v697
        %v699 = vpop.xlane.xlu0 %698
        %v700 = vrcp.pop %v696
        %v701 = vrcp.pop %v699
        %v702 = vmul.f32 %v691, %v700
        %v703 = vmul.f32 %v693, %v701
        %v704 = vpack.c.bf16 %v702, %v702
        %v705 = vpack.c.bf16 %v703, %v703
        %v707 = vsel %vm589, %v704, 0
        %vm709 = vcmask 1043456
        %v711 = vsel %vm709, %v587, 0
        %713 = vmatprep.subr.bf16.mxu0 0
        %714 = vmatpush1.bf16.msra.mxu0 0
        %715 = vmatprep.subr.bf16.mxu0 0
        %716 = vmatpush1.bf16.msra.mxu0 0
        %717 = vmatprep.subr.bf16.mxu0 0
        %718 = vmatpush1.bf16.msra.mxu0 0
        %719 = vmatprep.subr.bf16.mxu0 0
        %720 = vmatpush1.bf16.msra.mxu0 0
        %721 = vmatprep.subr.bf16.mxu0 0
        %722 = vmatpush1.bf16.msra.mxu0 0
        %723 = vmatprep.subr.bf16.mxu0 0
        %724 = vmatpush1.bf16.msra.mxu0 0
        %725 = vmatprep.subr.bf16.mxu0 0
        %726 = vmatpush1.bf16.msra.mxu0 0
        %727 = vmatprep.subr.bf16.mxu0 0
        %728 = vmatpush1.bf16.msra.mxu0 %v711
        %729 = vmatprep.subr.bf16.mxu0 0
        %730 = vmatpush2.bf16.msra.mxu0 0
        %731 = vmatprep.subr.bf16.mxu0 0
        %732 = vmatpush2.bf16.msra.mxu0 0
        %733 = vmatprep.subr.bf16.mxu0 0
        %734 = vmatpush2.bf16.msra.mxu0 0
        %735 = vmatprep.subr.bf16.mxu0 0
        %736 = vmatpush2.bf16.msra.mxu0 0
        %737 = vmatprep.subr.bf16.mxu0 0
        %738 = vmatpush2.bf16.msra.mxu0 0
        %739 = vmatprep.subr.bf16.mxu0 0
        %740 = vmatpush2.bf16.msra.mxu0 0
        %741 = vmatprep.subr.bf16.mxu0 0
        %742 = vmatpush2.bf16.msra.mxu0 0
        %743 = vmatprep.subr.bf16.mxu0 0
        %744 = vmatpush2.bf16.msra.mxu0 0
        %745 = vmatprep.mubr.bf16.mxu0 0
        %746 = vmatmul.mubr.bf16.gmra.mxu0 %v707
        %v747 = vpop.f32.mrf.mxu0
        %v748 = vadd.f32 0.0, %v747
        %v749 = vpop.f32.mrf.mxu0
        %v750 = vpop.f32.mrf.mxu0
        %v751 = vpop.f32.mrf.mxu0
        %752 = vdwg.mxu0
        %v754 = vsel %vm589, %v705, 0
        %v757 = vsel %vm709, %v588, 0
        %759 = vmatprep.subr.bf16.mxu0 0
        %760 = vmatpush1.bf16.msra.mxu0 0
        %761 = vmatprep.subr.bf16.mxu0 0
        %762 = vmatpush1.bf16.msra.mxu0 0
        %763 = vmatprep.subr.bf16.mxu0 0
        %764 = vmatpush1.bf16.msra.mxu0 0
        %765 = vmatprep.subr.bf16.mxu0 0
        %766 = vmatpush1.bf16.msra.mxu0 0
        %767 = vmatprep.subr.bf16.mxu0 0
        %768 = vmatpush1.bf16.msra.mxu0 0
        %769 = vmatprep.subr.bf16.mxu0 0
        %770 = vmatpush1.bf16.msra.mxu0 0
        %771 = vmatprep.subr.bf16.mxu0 0
        %772 = vmatpush1.bf16.msra.mxu0 0
        %773 = vmatprep.subr.bf16.mxu0 0
        %774 = vmatpush1.bf16.msra.mxu0 %v757
        %775 = vmatprep.subr.bf16.mxu0 0
        %776 = vmatpush2.bf16.msra.mxu0 0
        %777 = vmatprep.subr.bf16.mxu0 0
        %778 = vmatpush2.bf16.msra.mxu0 0
        %779 = vmatprep.subr.bf16.mxu0 0
        %780 = vmatpush2.bf16.msra.mxu0 0
        %781 = vmatprep.subr.bf16.mxu0 0
        %782 = vmatpush2.bf16.msra.mxu0 0
        %783 = vmatprep.subr.bf16.mxu0 0
        %784 = vmatpush2.bf16.msra.mxu0 0
        %785 = vmatprep.subr.bf16.mxu0 0
        %786 = vmatpush2.bf16.msra.mxu0 0
        %787 = vmatprep.subr.bf16.mxu0 0
        %788 = vmatpush2.bf16.msra.mxu0 0
        %789 = vmatprep.subr.bf16.mxu0 0
        %790 = vmatpush2.bf16.msra.mxu0 0
        %791 = vmatprep.mubr.bf16.mxu0 0
        %792 = vmatmul.mubr.bf16.gmra.mxu0 %v754
        %v793 = vpop.f32.mrf.mxu0
        %v794 = vadd.f32 0.0, %v793
        %v795 = vpop.f32.mrf.mxu0
        %v796 = vpop.f32.mrf.mxu0
        %v797 = vpop.f32.mrf.mxu0
        %798 = vdwg.mxu0
        %800 = vrot.lane.b32.xlu0 %v583, 120
        %v801 = vpop.permute.xlu0 %800
        %803 = vrot.lane.b32.xlu0 %v585, 120
        %v804 = vpop.permute.xlu0 %803
        %v806 = vsel %vm589, %v801, 0
        %v809 = vsel %vm589, %v804, 0
        %811 = vmatprep.subr.bf16.mxu0 0
        %812 = vmatpush1.bf16.xpose.msra.mxu0 0
        %813 = vmatprep.subr.bf16.mxu0 0
        %814 = vmatpush1.bf16.xpose.msra.mxu0 0
        %815 = vmatprep.subr.bf16.mxu0 0
        %816 = vmatpush1.bf16.xpose.msra.mxu0 0
        %817 = vmatprep.subr.bf16.mxu0 0
        %818 = vmatpush1.bf16.xpose.msra.mxu0 0
        %819 = vmatprep.subr.bf16.mxu0 0
        %820 = vmatpush1.bf16.xpose.msra.mxu0 0
        %821 = vmatprep.subr.bf16.mxu0 0
        %822 = vmatpush1.bf16.xpose.msra.mxu0 0
        %823 = vmatprep.subr.bf16.mxu0 0
        %824 = vmatpush1.bf16.xpose.msra.mxu0 0
        %825 = vmatprep.subr.bf16.mxu0 0
        %826 = vmatpush1.bf16.xpose.msra.mxu0 %v809
        %827 = vmatprep.subr.bf16.mxu0 0
        %828 = vmatpush2.bf16.xpose.msra.mxu0 0
        %829 = vmatprep.subr.bf16.mxu0 0
        %830 = vmatpush2.bf16.xpose.msra.mxu0 0
        %831 = vmatprep.subr.bf16.mxu0 0
        %832 = vmatpush2.bf16.xpose.msra.mxu0 0
        %833 = vmatprep.subr.bf16.mxu0 0
        %834 = vmatpush2.bf16.xpose.msra.mxu0 0
        %835 = vmatprep.subr.bf16.mxu0 0
        %836 = vmatpush2.bf16.xpose.msra.mxu0 0
        %837 = vmatprep.subr.bf16.mxu0 0
        %838 = vmatpush2.bf16.xpose.msra.mxu0 0
        %839 = vmatprep.subr.bf16.mxu0 0
        %840 = vmatpush2.bf16.xpose.msra.mxu0 0
        %841 = vmatprep.subr.bf16.mxu0 0
        %842 = vmatpush2.bf16.xpose.msra.mxu0 0
        %843 = vmatprep.mubr.bf16.mxu0 0
        %844 = vmatmul.mubr.bf16.gmra.mxu0 %v806
        %v845 = vpop.f32.mrf.mxu0
        %v846 = vadd.f32 0.0, %v845
        %v847 = vpop.f32.mrf.mxu0
        %v848 = vpop.f32.mrf.mxu0
        %v849 = vpop.f32.mrf.mxu0
        %850 = vdwg.mxu0
        %852 = vrot.lane.b32.xlu0 %v584, 120
        %v853 = vpop.permute.xlu0 %852
        %855 = vrot.lane.b32.xlu0 %v586, 120
        %v856 = vpop.permute.xlu0 %855
        %v858 = vsel %vm589, %v853, 0
        %v861 = vsel %vm589, %v856, 0
        %863 = vmatprep.subr.bf16.mxu0 0
        %864 = vmatpush1.bf16.xpose.msra.mxu0 0
        %865 = vmatprep.subr.bf16.mxu0 0
        %866 = vmatpush1.bf16.xpose.msra.mxu0 0
        %867 = vmatprep.subr.bf16.mxu0 0
        %868 = vmatpush1.bf16.xpose.msra.mxu0 0
        %869 = vmatprep.subr.bf16.mxu0 0
        %870 = vmatpush1.bf16.xpose.msra.mxu0 0
        %871 = vmatprep.subr.bf16.mxu0 0
        %872 = vmatpush1.bf16.xpose.msra.mxu0 0
        %873 = vmatprep.subr.bf16.mxu0 0
        %874 = vmatpush1.bf16.xpose.msra.mxu0 0
        %875 = vmatprep.subr.bf16.mxu0 0
        %876 = vmatpush1.bf16.xpose.msra.mxu0 0
        %877 = vmatprep.subr.bf16.mxu0 0
        %878 = vmatpush1.bf16.xpose.msra.mxu0 %v861
        %879 = vmatprep.subr.bf16.mxu0 0
        %880 = vmatpush2.bf16.xpose.msra.mxu0 0
        %881 = vmatprep.subr.bf16.mxu0 0
        %882 = vmatpush2.bf16.xpose.msra.mxu0 0
        %883 = vmatprep.subr.bf16.mxu0 0
        %884 = vmatpush2.bf16.xpose.msra.mxu0 0
        %885 = vmatprep.subr.bf16.mxu0 0
        %886 = vmatpush2.bf16.xpose.msra.mxu0 0
        %887 = vmatprep.subr.bf16.mxu0 0
        %888 = vmatpush2.bf16.xpose.msra.mxu0 0
        %889 = vmatprep.subr.bf16.mxu0 0
        %890 = vmatpush2.bf16.xpose.msra.mxu0 0
        %891 = vmatprep.subr.bf16.mxu0 0
        %892 = vmatpush2.bf16.xpose.msra.mxu0 0
        %893 = vmatprep.subr.bf16.mxu0 0
        %894 = vmatpush2.bf16.xpose.msra.mxu0 0
        %895 = vmatprep.mubr.bf16.mxu0 0
        %896 = vmatmul.mubr.bf16.gmra.mxu0 %v858
        %v897 = vpop.f32.mrf.mxu0
        %v898 = vadd.f32 0.0, %v897
        %v899 = vpop.f32.mrf.mxu0
        %v900 = vpop.f32.mrf.mxu0
        %v901 = vpop.f32.mrf.mxu0
        %902 = vdwg.mxu0
        %v903 = vsel %vm589, %v846, -inf
        %904 = vmax.xlane.f32.xlu0 %v903
        %v905 = vpop.xlane.xlu0 %904
        %v906 = vsel %vm589, %v898, -inf
        %907 = vmax.xlane.f32.xlu0 %v906
        %v908 = vpop.xlane.xlu0 %907
        %v909 = vsub.f32 %v846, %v905
        %v910 = vsub.f32 %v898, %v908
        %v911 = vmul.f32 %v909, 1.442695
        %v912 = vpow.pop %v911
        %v913 = vmul.f32 %v910, 1.442695
        %v914 = vpow.pop %v913
        %v915 = vsel %vm589, %v912, 0.0
        %916 = vadd.xlane.f32.xlu0 %v915
        %v917 = vpop.xlane.xlu0 %916
        %v918 = vsel %vm589, %v914, 0.0
        %919 = vadd.xlane.f32.xlu0 %v918
        %v920 = vpop.xlane.xlu0 %919
        %v921 = vrcp.pop %v917
        %v922 = vrcp.pop %v920
        %v923 = vmul.f32 %v912, %v921
        %v924 = vmul.f32 %v914, %v922
        %v925 = vpack.c.bf16 %v923, %v923
        %v926 = vpack.c.bf16 %v924, %v924
        %928 = vrot.lane.b32.xlu0 %v587, 120
        %v929 = vpop.permute.xlu0 %928
        %v931 = vsel %vm589, %v925, 0
        %v934 = vsel %vm709, %v929, 0
        %936 = vmatprep.subr.bf16.mxu0 0
        %937 = vmatpush1.bf16.msra.mxu0 0
        %938 = vmatprep.subr.bf16.mxu0 0
        %939 = vmatpush1.bf16.msra.mxu0 0
        %940 = vmatprep.subr.bf16.mxu0 0
        %941 = vmatpush1.bf16.msra.mxu0 0
        %942 = vmatprep.subr.bf16.mxu0 0
        %943 = vmatpush1.bf16.msra.mxu0 0
        %944 = vmatprep.subr.bf16.mxu0 0
        %945 = vmatpush1.bf16.msra.mxu0 0
        %946 = vmatprep.subr.bf16.mxu0 0
        %947 = vmatpush1.bf16.msra.mxu0 0
        %948 = vmatprep.subr.bf16.mxu0 0
        %949 = vmatpush1.bf16.msra.mxu0 0
        %950 = vmatprep.subr.bf16.mxu0 0
        %951 = vmatpush1.bf16.msra.mxu0 %v934
        %952 = vmatprep.subr.bf16.mxu0 0
        %953 = vmatpush2.bf16.msra.mxu0 0
        %954 = vmatprep.subr.bf16.mxu0 0
        %955 = vmatpush2.bf16.msra.mxu0 0
        %956 = vmatprep.subr.bf16.mxu0 0
        %957 = vmatpush2.bf16.msra.mxu0 0
        %958 = vmatprep.subr.bf16.mxu0 0
        %959 = vmatpush2.bf16.msra.mxu0 0
        %960 = vmatprep.subr.bf16.mxu0 0
        %961 = vmatpush2.bf16.msra.mxu0 0
        %962 = vmatprep.subr.bf16.mxu0 0
        %963 = vmatpush2.bf16.msra.mxu0 0
        %964 = vmatprep.subr.bf16.mxu0 0
        %965 = vmatpush2.bf16.msra.mxu0 0
        %966 = vmatprep.subr.bf16.mxu0 0
        %967 = vmatpush2.bf16.msra.mxu0 0
        %968 = vmatprep.mubr.bf16.mxu0 0
        %969 = vmatmul.mubr.bf16.gmra.mxu0 %v931
        %v970 = vpop.f32.mrf.mxu0
        %v971 = vadd.f32 0.0, %v970
        %v972 = vpop.f32.mrf.mxu0
        %v973 = vpop.f32.mrf.mxu0
        %v974 = vpop.f32.mrf.mxu0
        %975 = vdwg.mxu0
        %977 = vrot.lane.b32.xlu0 %v588, 120
        %v978 = vpop.permute.xlu0 %977
        %v980 = vsel %vm589, %v926, 0
        %v983 = vsel %vm709, %v978, 0
        %985 = vmatprep.subr.bf16.mxu0 0
        %986 = vmatpush1.bf16.msra.mxu0 0
        %987 = vmatprep.subr.bf16.mxu0 0
        %988 = vmatpush1.bf16.msra.mxu0 0
        %989 = vmatprep.subr.bf16.mxu0 0
        %990 = vmatpush1.bf16.msra.mxu0 0
        %991 = vmatprep.subr.bf16.mxu0 0
        %992 = vmatpush1.bf16.msra.mxu0 0
        %993 = vmatprep.subr.bf16.mxu0 0
        %994 = vmatpush1.bf16.msra.mxu0 0
        %995 = vmatprep.subr.bf16.mxu0 0
        %996 = vmatpush1.bf16.msra.mxu0 0
        %997 = vmatprep.subr.bf16.mxu0 0
        %998 = vmatpush1.bf16.msra.mxu0 0
        %999 = vmatprep.subr.bf16.mxu0 0
        %1000 = vmatpush1.bf16.msra.mxu0 %v983
        %1001 = vmatprep.subr.bf16.mxu0 0
        %1002 = vmatpush2.bf16.msra.mxu0 0
        %1003 = vmatprep.subr.bf16.mxu0 0
        %1004 = vmatpush2.bf16.msra.mxu0 0
        %1005 = vmatprep.subr.bf16.mxu0 0
        %1006 = vmatpush2.bf16.msra.mxu0 0
        %1007 = vmatprep.subr.bf16.mxu0 0
        %1008 = vmatpush2.bf16.msra.mxu0 0
        %1009 = vmatprep.subr.bf16.mxu0 0
        %1010 = vmatpush2.bf16.msra.mxu0 0
        %1011 = vmatprep.subr.bf16.mxu0 0
        %1012 = vmatpush2.bf16.msra.mxu0 0
        %1013 = vmatprep.subr.bf16.mxu0 0
        %1014 = vmatpush2.bf16.msra.mxu0 0
        %1015 = vmatprep.subr.bf16.mxu0 0
        %1016 = vmatpush2.bf16.msra.mxu0 0
        %1017 = vmatprep.mubr.bf16.mxu0 0
        %1018 = vmatmul.mubr.bf16.gmra.mxu0 %v980
        %v1019 = vpop.f32.mrf.mxu0
        %v1020 = vadd.f32 0.0, %v1019
        %v1021 = vpop.f32.mrf.mxu0
        %v1022 = vpop.f32.mrf.mxu0
        %v1023 = vpop.f32.mrf.mxu0
        %1024 = vdwg.mxu0
        %1025 = vrot.lane.b32.xlu0 %v583, 112
        %v1026 = vpop.permute.xlu0 %1025
        %1027 = vrot.lane.b32.xlu0 %v585, 112
        %v1028 = vpop.permute.xlu0 %1027
        %v1030 = vsel %vm589, %v1026, 0
        %v1033 = vsel %vm589, %v1028, 0
        %1035 = vmatprep.subr.bf16.mxu0 0
        %1036 = vmatpush1.bf16.xpose.msra.mxu0 0
        %1037 = vmatprep.subr.bf16.mxu0 0
        %1038 = vmatpush1.bf16.xpose.msra.mxu0 0
        %1039 = vmatprep.subr.bf16.mxu0 0
        %1040 = vmatpush1.bf16.xpose.msra.mxu0 0
        %1041 = vmatprep.subr.bf16.mxu0 0
        %1042 = vmatpush1.bf16.xpose.msra.mxu0 0
        %1043 = vmatprep.subr.bf16.mxu0 0
        %1044 = vmatpush1.bf16.xpose.msra.mxu0 0
        %1045 = vmatprep.subr.bf16.mxu0 0
        %1046 = vmatpush1.bf16.xpose.msra.mxu0 0
        %1047 = vmatprep.subr.bf16.mxu0 0
        %1048 = vmatpush1.bf16.xpose.msra.mxu0 0
        %1049 = vmatprep.subr.bf16.mxu0 0
        %1050 = vmatpush1.bf16.xpose.msra.mxu0 %v1033
        %1051 = vmatprep.subr.bf16.mxu0 0
        %1052 = vmatpush2.bf16.xpose.msra.mxu0 0
        %1053 = vmatprep.subr.bf16.mxu0 0
        %1054 = vmatpush2.bf16.xpose.msra.mxu0 0
        %1055 = vmatprep.subr.bf16.mxu0 0
        %1056 = vmatpush2.bf16.xpose.msra.mxu0 0
        %1057 = vmatprep.subr.bf16.mxu0 0
        %1058 = vmatpush2.bf16.xpose.msra.mxu0 0
        %1059 = vmatprep.subr.bf16.mxu0 0
        %1060 = vmatpush2.bf16.xpose.msra.mxu0 0
        %1061 = vmatprep.subr.bf16.mxu0 0
        %1062 = vmatpush2.bf16.xpose.msra.mxu0 0
        %1063 = vmatprep.subr.bf16.mxu0 0
        %1064 = vmatpush2.bf16.xpose.msra.mxu0 0
        %1065 = vmatprep.subr.bf16.mxu0 0
        %1066 = vmatpush2.bf16.xpose.msra.mxu0 0
        %1067 = vmatprep.mubr.bf16.mxu0 0
        %1068 = vmatmul.mubr.bf16.gmra.mxu0 %v1030
        %v1069 = vpop.f32.mrf.mxu0
        %v1070 = vadd.f32 0.0, %v1069
        %v1071 = vpop.f32.mrf.mxu0
        %v1072 = vpop.f32.mrf.mxu0
        %v1073 = vpop.f32.mrf.mxu0
        %1074 = vdwg.mxu0
        %1075 = vrot.lane.b32.xlu0 %v584, 112
        %v1076 = vpop.permute.xlu0 %1075
        %1077 = vrot.lane.b32.xlu0 %v586, 112
        %v1078 = vpop.permute.xlu0 %1077
        %v1080 = vsel %vm589, %v1076, 0
        %v1083 = vsel %vm589, %v1078, 0
        %1085 = vmatprep.subr.bf16.mxu0 0
        %1086 = vmatpush1.bf16.xpose.msra.mxu0 0
        %1087 = vmatprep.subr.bf16.mxu0 0
        %1088 = vmatpush1.bf16.xpose.msra.mxu0 0
        %1089 = vmatprep.subr.bf16.mxu0 0
        %1090 = vmatpush1.bf16.xpose.msra.mxu0 0
        %1091 = vmatprep.subr.bf16.mxu0 0
        %1092 = vmatpush1.bf16.xpose.msra.mxu0 0
        %1093 = vmatprep.subr.bf16.mxu0 0
        %1094 = vmatpush1.bf16.xpose.msra.mxu0 0
        %1095 = vmatprep.subr.bf16.mxu0 0
        %1096 = vmatpush1.bf16.xpose.msra.mxu0 0
        %1097 = vmatprep.subr.bf16.mxu0 0
        %1098 = vmatpush1.bf16.xpose.msra.mxu0 0
        %1099 = vmatprep.subr.bf16.mxu0 0
        %1100 = vmatpush1.bf16.xpose.msra.mxu0 %v1083
        %1101 = vmatprep.subr.bf16.mxu0 0
        %1102 = vmatpush2.bf16.xpose.msra.mxu0 0
        %1103 = vmatprep.subr.bf16.mxu0 0
        %1104 = vmatpush2.bf16.xpose.msra.mxu0 0
        %1105 = vmatprep.subr.bf16.mxu0 0
        %1106 = vmatpush2.bf16.xpose.msra.mxu0 0
        %1107 = vmatprep.subr.bf16.mxu0 0
        %1108 = vmatpush2.bf16.xpose.msra.mxu0 0
        %1109 = vmatprep.subr.bf16.mxu0 0
        %1110 = vmatpush2.bf16.xpose.msra.mxu0 0
        %1111 = vmatprep.subr.bf16.mxu0 0
        %1112 = vmatpush2.bf16.xpose.msra.mxu0 0
        %1113 = vmatprep.subr.bf16.mxu0 0
        %1114 = vmatpush2.bf16.xpose.msra.mxu0 0
        %1115 = vmatprep.subr.bf16.mxu0 0
        %1116 = vmatpush2.bf16.xpose.msra.mxu0 0
        %1117 = vmatprep.mubr.bf16.mxu0 0
        %1118 = vmatmul.mubr.bf16.gmra.mxu0 %v1080
        %v1119 = vpop.f32.mrf.mxu0
        %v1120 = vadd.f32 0.0, %v1119
        %v1121 = vpop.f32.mrf.mxu0
        %v1122 = vpop.f32.mrf.mxu0
        %v1123 = vpop.f32.mrf.mxu0
        %1124 = vdwg.mxu0
        %v1125 = vsel %vm589, %v1070, -inf
        %1126 = vmax.xlane.f32.xlu0 %v1125
        %v1127 = vpop.xlane.xlu0 %1126
        %v1128 = vsel %vm589, %v1120, -inf
        %1129 = vmax.xlane.f32.xlu0 %v1128
        %v1130 = vpop.xlane.xlu0 %1129
        %v1131 = vsub.f32 %v1070, %v1127
        %v1132 = vsub.f32 %v1120, %v1130
        %v1133 = vmul.f32 %v1131, 1.442695
        %v1134 = vpow.pop %v1133
        %v1135 = vmul.f32 %v1132, 1.442695
        %v1136 = vpow.pop %v1135
        %v1137 = vsel %vm589, %v1134, 0.0
        %1138 = vadd.xlane.f32.xlu0 %v1137
        %v1139 = vpop.xlane.xlu0 %1138
        %v1140 = vsel %vm589, %v1136, 0.0
        %1141 = vadd.xlane.f32.xlu0 %v1140
        %v1142 = vpop.xlane.xlu0 %1141
        %v1143 = vrcp.pop %v1139
        %v1144 = vrcp.pop %v1142
        %v1145 = vmul.f32 %v1134, %v1143
        %v1146 = vmul.f32 %v1136, %v1144
        %v1147 = vpack.c.bf16 %v1145, %v1145
        %v1148 = vpack.c.bf16 %v1146, %v1146
        %1149 = vrot.lane.b32.xlu0 %v587, 112
        %v1150 = vpop.permute.xlu0 %1149
        %v1152 = vsel %vm589, %v1147, 0
        %v1155 = vsel %vm709, %v1150, 0
        %1157 = vmatprep.subr.bf16.mxu0 0
        %1158 = vmatpush1.bf16.msra.mxu0 0
        %1159 = vmatprep.subr.bf16.mxu0 0
        %1160 = vmatpush1.bf16.msra.mxu0 0
        %1161 = vmatprep.subr.bf16.mxu0 0
        %1162 = vmatpush1.bf16.msra.mxu0 0
        %1163 = vmatprep.subr.bf16.mxu0 0
        %1164 = vmatpush1.bf16.msra.mxu0 0
        %1165 = vmatprep.subr.bf16.mxu0 0
        %1166 = vmatpush1.bf16.msra.mxu0 0
        %1167 = vmatprep.subr.bf16.mxu0 0
        %1168 = vmatpush1.bf16.msra.mxu0 0
        %1169 = vmatprep.subr.bf16.mxu0 0
        %1170 = vmatpush1.bf16.msra.mxu0 0
        %1171 = vmatprep.subr.bf16.mxu0 0
        %1172 = vmatpush1.bf16.msra.mxu0 %v1155
        %1173 = vmatprep.subr.bf16.mxu0 0
        %1174 = vmatpush2.bf16.msra.mxu0 0
        %1175 = vmatprep.subr.bf16.mxu0 0
        %1176 = vmatpush2.bf16.msra.mxu0 0
        %1177 = vmatprep.subr.bf16.mxu0 0
        %1178 = vmatpush2.bf16.msra.mxu0 0
        %1179 = vmatprep.subr.bf16.mxu0 0
        %1180 = vmatpush2.bf16.msra.mxu0 0
        %1181 = vmatprep.subr.bf16.mxu0 0
        %1182 = vmatpush2.bf16.msra.mxu0 0
        %1183 = vmatprep.subr.bf16.mxu0 0
        %1184 = vmatpush2.bf16.msra.mxu0 0
        %1185 = vmatprep.subr.bf16.mxu0 0
        %1186 = vmatpush2.bf16.msra.mxu0 0
        %1187 = vmatprep.subr.bf16.mxu0 0
        %1188 = vmatpush2.bf16.msra.mxu0 0
        %1189 = vmatprep.mubr.bf16.mxu0 0
        %1190 = vmatmul.mubr.bf16.gmra.mxu0 %v1152
        %v1191 = vpop.f32.mrf.mxu0
        %v1192 = vadd.f32 0.0, %v1191
        %v1193 = vpop.f32.mrf.mxu0
        %v1194 = vpop.f32.mrf.mxu0
        %v1195 = vpop.f32.mrf.mxu0
        %1196 = vdwg.mxu0
        %1197 = vrot.lane.b32.xlu0 %v588, 112
        %v1198 = vpop.permute.xlu0 %1197
        %v1200 = vsel %vm589, %v1148, 0
        %v1203 = vsel %vm709, %v1198, 0
        %1205 = vmatprep.subr.bf16.mxu0 0
        %1206 = vmatpush1.bf16.msra.mxu0 0
        %1207 = vmatprep.subr.bf16.mxu0 0
        %1208 = vmatpush1.bf16.msra.mxu0 0
        %1209 = vmatprep.subr.bf16.mxu0 0
        %1210 = vmatpush1.bf16.msra.mxu0 0
        %1211 = vmatprep.subr.bf16.mxu0 0
        %1212 = vmatpush1.bf16.msra.mxu0 0
        %1213 = vmatprep.subr.bf16.mxu0 0
        %1214 = vmatpush1.bf16.msra.mxu0 0
        %1215 = vmatprep.subr.bf16.mxu0 0
        %1216 = vmatpush1.bf16.msra.mxu0 0
        %1217 = vmatprep.subr.bf16.mxu0 0
        %1218 = vmatpush1.bf16.msra.mxu0 0
        %1219 = vmatprep.subr.bf16.mxu0 0
        %1220 = vmatpush1.bf16.msra.mxu0 %v1203
        %1221 = vmatprep.subr.bf16.mxu0 0
        %1222 = vmatpush2.bf16.msra.mxu0 0
        %1223 = vmatprep.subr.bf16.mxu0 0
        %1224 = vmatpush2.bf16.msra.mxu0 0
        %1225 = vmatprep.subr.bf16.mxu0 0
        %1226 = vmatpush2.bf16.msra.mxu0 0
        %1227 = vmatprep.subr.bf16.mxu0 0
        %1228 = vmatpush2.bf16.msra.mxu0 0
        %1229 = vmatprep.subr.bf16.mxu0 0
        %1230 = vmatpush2.bf16.msra.mxu0 0
        %1231 = vmatprep.subr.bf16.mxu0 0
        %1232 = vmatpush2.bf16.msra.mxu0 0
        %1233 = vmatprep.subr.bf16.mxu0 0
        %1234 = vmatpush2.bf16.msra.mxu0 0
        %1235 = vmatprep.subr.bf16.mxu0 0
        %1236 = vmatpush2.bf16.msra.mxu0 0
        %1237 = vmatprep.mubr.bf16.mxu0 0
        %1238 = vmatmul.mubr.bf16.gmra.mxu0 %v1200
        %v1239 = vpop.f32.mrf.mxu0
        %v1240 = vadd.f32 0.0, %v1239
        %v1241 = vpop.f32.mrf.mxu0
        %v1242 = vpop.f32.mrf.mxu0
        %v1243 = vpop.f32.mrf.mxu0
        %1244 = vdwg.mxu0
        %1245 = vrot.lane.b32.xlu0 %v583, 104
        %v1246 = vpop.permute.xlu0 %1245
        %1247 = vrot.lane.b32.xlu0 %v585, 104
        %v1248 = vpop.permute.xlu0 %1247
        %v1250 = vsel %vm589, %v1246, 0
        %v1253 = vsel %vm589, %v1248, 0
        %1255 = vmatprep.subr.bf16.mxu0 0
        %1256 = vmatpush1.bf16.xpose.msra.mxu0 0
        %1257 = vmatprep.subr.bf16.mxu0 0
        %1258 = vmatpush1.bf16.xpose.msra.mxu0 0
        %1259 = vmatprep.subr.bf16.mxu0 0
        %1260 = vmatpush1.bf16.xpose.msra.mxu0 0
        %1261 = vmatprep.subr.bf16.mxu0 0
        %1262 = vmatpush1.bf16.xpose.msra.mxu0 0
        %1263 = vmatprep.subr.bf16.mxu0 0
        %1264 = vmatpush1.bf16.xpose.msra.mxu0 0
        %1265 = vmatprep.subr.bf16.mxu0 0
        %1266 = vmatpush1.bf16.xpose.msra.mxu0 0
        %1267 = vmatprep.subr.bf16.mxu0 0
        %1268 = vmatpush1.bf16.xpose.msra.mxu0 0
        %1269 = vmatprep.subr.bf16.mxu0 0
        %1270 = vmatpush1.bf16.xpose.msra.mxu0 %v1253
        %1271 = vmatprep.subr.bf16.mxu0 0
        %1272 = vmatpush2.bf16.xpose.msra.mxu0 0
        %1273 = vmatprep.subr.bf16.mxu0 0
        %1274 = vmatpush2.bf16.xpose.msra.mxu0 0
        %1275 = vmatprep.subr.bf16.mxu0 0
        %1276 = vmatpush2.bf16.xpose.msra.mxu0 0
        %1277 = vmatprep.subr.bf16.mxu0 0
        %1278 = vmatpush2.bf16.xpose.msra.mxu0 0
        %1279 = vmatprep.subr.bf16.mxu0 0
        %1280 = vmatpush2.bf16.xpose.msra.mxu0 0
        %1281 = vmatprep.subr.bf16.mxu0 0
        %1282 = vmatpush2.bf16.xpose.msra.mxu0 0
        %1283 = vmatprep.subr.bf16.mxu0 0
        %1284 = vmatpush2.bf16.xpose.msra.mxu0 0
        %1285 = vmatprep.subr.bf16.mxu0 0
        %1286 = vmatpush2.bf16.xpose.msra.mxu0 0
        %1287 = vmatprep.mubr.bf16.mxu0 0
        %1288 = vmatmul.mubr.bf16.gmra.mxu0 %v1250
        %v1289 = vpop.f32.mrf.mxu0
        %v1290 = vadd.f32 0.0, %v1289
        %v1291 = vpop.f32.mrf.mxu0
        %v1292 = vpop.f32.mrf.mxu0
        %v1293 = vpop.f32.mrf.mxu0
        %1294 = vdwg.mxu0
        %1295 = vrot.lane.b32.xlu0 %v584, 104
        %v1296 = vpop.permute.xlu0 %1295
        %1297 = vrot.lane.b32.xlu0 %v586, 104
        %v1298 = vpop.permute.xlu0 %1297
        %v1300 = vsel %vm589, %v1296, 0
        %v1303 = vsel %vm589, %v1298, 0
        %1305 = vmatprep.subr.bf16.mxu0 0
        %1306 = vmatpush1.bf16.xpose.msra.mxu0 0
        %1307 = vmatprep.subr.bf16.mxu0 0
        %1308 = vmatpush1.bf16.xpose.msra.mxu0 0
        %1309 = vmatprep.subr.bf16.mxu0 0
        %1310 = vmatpush1.bf16.xpose.msra.mxu0 0
        %1311 = vmatprep.subr.bf16.mxu0 0
        %1312 = vmatpush1.bf16.xpose.msra.mxu0 0
        %1313 = vmatprep.subr.bf16.mxu0 0
        %1314 = vmatpush1.bf16.xpose.msra.mxu0 0
        %1315 = vmatprep.subr.bf16.mxu0 0
        %1316 = vmatpush1.bf16.xpose.msra.mxu0 0
        %1317 = vmatprep.subr.bf16.mxu0 0
        %1318 = vmatpush1.bf16.xpose.msra.mxu0 0
        %1319 = vmatprep.subr.bf16.mxu0 0
        %1320 = vmatpush1.bf16.xpose.msra.mxu0 %v1303
        %1321 = vmatprep.subr.bf16.mxu0 0
        %1322 = vmatpush2.bf16.xpose.msra.mxu0 0
        %1323 = vmatprep.subr.bf16.mxu0 0
        %1324 = vmatpush2.bf16.xpose.msra.mxu0 0
        %1325 = vmatprep.subr.bf16.mxu0 0
        %1326 = vmatpush2.bf16.xpose.msra.mxu0 0
        %1327 = vmatprep.subr.bf16.mxu0 0
        %1328 = vmatpush2.bf16.xpose.msra.mxu0 0
        %1329 = vmatprep.subr.bf16.mxu0 0
        %1330 = vmatpush2.bf16.xpose.msra.mxu0 0
        %1331 = vmatprep.subr.bf16.mxu0 0
        %1332 = vmatpush2.bf16.xpose.msra.mxu0 0
        %1333 = vmatprep.subr.bf16.mxu0 0
        %1334 = vmatpush2.bf16.xpose.msra.mxu0 0
        %1335 = vmatprep.subr.bf16.mxu0 0
        %1336 = vmatpush2.bf16.xpose.msra.mxu0 0
        %1337 = vmatprep.mubr.bf16.mxu0 0
        %1338 = vmatmul.mubr.bf16.gmra.mxu0 %v1300
        %v1339 = vpop.f32.mrf.mxu0
        %v1340 = vadd.f32 0.0, %v1339
        %v1341 = vpop.f32.mrf.mxu0
        %v1342 = vpop.f32.mrf.mxu0
        %v1343 = vpop.f32.mrf.mxu0
        %1344 = vdwg.mxu0
        %v1345 = vsel %vm589, %v1290, -inf
        %1346 = vmax.xlane.f32.xlu0 %v1345
        %v1347 = vpop.xlane.xlu0 %1346
        %v1348 = vsel %vm589, %v1340, -inf
        %1349 = vmax.xlane.f32.xlu0 %v1348
        %v1350 = vpop.xlane.xlu0 %1349
        %v1351 = vsub.f32 %v1290, %v1347
        %v1352 = vsub.f32 %v1340, %v1350
        %v1353 = vmul.f32 %v1351, 1.442695
        %v1354 = vpow.pop %v1353
        %v1355 = vmul.f32 %v1352, 1.442695
        %v1356 = vpow.pop %v1355
        %v1357 = vsel %vm589, %v1354, 0.0
        %1358 = vadd.xlane.f32.xlu0 %v1357
        %v1359 = vpop.xlane.xlu0 %1358
        %v1360 = vsel %vm589, %v1356, 0.0
        %1361 = vadd.xlane.f32.xlu0 %v1360
        %v1362 = vpop.xlane.xlu0 %1361
        %v1363 = vrcp.pop %v1359
        %v1364 = vrcp.pop %v1362
        %v1365 = vmul.f32 %v1354, %v1363
        %v1366 = vmul.f32 %v1356, %v1364
        %v1367 = vpack.c.bf16 %v1365, %v1365
        %v1368 = vpack.c.bf16 %v1366, %v1366
        %1369 = vrot.lane.b32.xlu0 %v587, 104
        %v1370 = vpop.permute.xlu0 %1369
        %v1372 = vsel %vm589, %v1367, 0
        %v1375 = vsel %vm709, %v1370, 0
        %1377 = vmatprep.subr.bf16.mxu0 0
        %1378 = vmatpush1.bf16.msra.mxu0 0
        %1379 = vmatprep.subr.bf16.mxu0 0
        %1380 = vmatpush1.bf16.msra.mxu0 0
        %1381 = vmatprep.subr.bf16.mxu0 0
        %1382 = vmatpush1.bf16.msra.mxu0 0
        %1383 = vmatprep.subr.bf16.mxu0 0
        %1384 = vmatpush1.bf16.msra.mxu0 0
        %1385 = vmatprep.subr.bf16.mxu0 0
        %1386 = vmatpush1.bf16.msra.mxu0 0
        %1387 = vmatprep.subr.bf16.mxu0 0
        %1388 = vmatpush1.bf16.msra.mxu0 0
        %1389 = vmatprep.subr.bf16.mxu0 0
        %1390 = vmatpush1.bf16.msra.mxu0 0
        %1391 = vmatprep.subr.bf16.mxu0 0
        %1392 = vmatpush1.bf16.msra.mxu0 %v1375
        %1393 = vmatprep.subr.bf16.mxu0 0
        %1394 = vmatpush2.bf16.msra.mxu0 0
        %1395 = vmatprep.subr.bf16.mxu0 0
        %1396 = vmatpush2.bf16.msra.mxu0 0
        %1397 = vmatprep.subr.bf16.mxu0 0
        %1398 = vmatpush2.bf16.msra.mxu0 0
        %1399 = vmatprep.subr.bf16.mxu0 0
        %1400 = vmatpush2.bf16.msra.mxu0 0
        %1401 = vmatprep.subr.bf16.mxu0 0
        %1402 = vmatpush2.bf16.msra.mxu0 0
        %1403 = vmatprep.subr.bf16.mxu0 0
        %1404 = vmatpush2.bf16.msra.mxu0 0
        %1405 = vmatprep.subr.bf16.mxu0 0
        %1406 = vmatpush2.bf16.msra.mxu0 0
        %1407 = vmatprep.subr.bf16.mxu0 0
        %1408 = vmatpush2.bf16.msra.mxu0 0
        %1409 = vmatprep.mubr.bf16.mxu0 0
        %1410 = vmatmul.mubr.bf16.gmra.mxu0 %v1372
        %v1411 = vpop.f32.mrf.mxu0
        %v1412 = vadd.f32 0.0, %v1411
        %v1413 = vpop.f32.mrf.mxu0
        %v1414 = vpop.f32.mrf.mxu0
        %v1415 = vpop.f32.mrf.mxu0
        %1416 = vdwg.mxu0
        %1417 = vrot.lane.b32.xlu0 %v588, 104
        %v1418 = vpop.permute.xlu0 %1417
        %v1420 = vsel %vm589, %v1368, 0
        %v1423 = vsel %vm709, %v1418, 0
        %1425 = vmatprep.subr.bf16.mxu0 0
        %1426 = vmatpush1.bf16.msra.mxu0 0
        %1427 = vmatprep.subr.bf16.mxu0 0
        %1428 = vmatpush1.bf16.msra.mxu0 0
        %1429 = vmatprep.subr.bf16.mxu0 0
        %1430 = vmatpush1.bf16.msra.mxu0 0
        %1431 = vmatprep.subr.bf16.mxu0 0
        %1432 = vmatpush1.bf16.msra.mxu0 0
        %1433 = vmatprep.subr.bf16.mxu0 0
        %1434 = vmatpush1.bf16.msra.mxu0 0
        %1435 = vmatprep.subr.bf16.mxu0 0
        %1436 = vmatpush1.bf16.msra.mxu0 0
        %1437 = vmatprep.subr.bf16.mxu0 0
        %1438 = vmatpush1.bf16.msra.mxu0 0
        %1439 = vmatprep.subr.bf16.mxu0 0
        %1440 = vmatpush1.bf16.msra.mxu0 %v1423
        %1441 = vmatprep.subr.bf16.mxu0 0
        %1442 = vmatpush2.bf16.msra.mxu0 0
        %1443 = vmatprep.subr.bf16.mxu0 0
        %1444 = vmatpush2.bf16.msra.mxu0 0
        %1445 = vmatprep.subr.bf16.mxu0 0
        %1446 = vmatpush2.bf16.msra.mxu0 0
        %1447 = vmatprep.subr.bf16.mxu0 0
        %1448 = vmatpush2.bf16.msra.mxu0 0
        %1449 = vmatprep.subr.bf16.mxu0 0
        %1450 = vmatpush2.bf16.msra.mxu0 0
        %1451 = vmatprep.subr.bf16.mxu0 0
        %1452 = vmatpush2.bf16.msra.mxu0 0
        %1453 = vmatprep.subr.bf16.mxu0 0
        %1454 = vmatpush2.bf16.msra.mxu0 0
        %1455 = vmatprep.subr.bf16.mxu0 0
        %1456 = vmatpush2.bf16.msra.mxu0 0
        %1457 = vmatprep.mubr.bf16.mxu0 0
        %1458 = vmatmul.mubr.bf16.gmra.mxu0 %v1420
        %v1459 = vpop.f32.mrf.mxu0
        %v1460 = vadd.f32 0.0, %v1459
        %v1461 = vpop.f32.mrf.mxu0
        %v1462 = vpop.f32.mrf.mxu0
        %v1463 = vpop.f32.mrf.mxu0
        %1464 = vdwg.mxu0
        %1467 = vrot.lane.b32.xlu0 %v971, 8
        %v1468 = vpop.permute.xlu0 %1467
        %1469 = vrot.lane.b32.xlu0 %v1020, 8
        %v1470 = vpop.permute.xlu0 %1469
        %1475 = vrot.lane.b32.xlu0 %v1192, 16
        %v1476 = vpop.permute.xlu0 %1475
        %1477 = vrot.lane.b32.xlu0 %v1240, 16
        %v1478 = vpop.permute.xlu0 %1477
        %1483 = vrot.lane.b32.xlu0 %v1412, 24
        %v1484 = vpop.permute.xlu0 %1483
        %1485 = vrot.lane.b32.xlu0 %v1460, 24
        %v1486 = vpop.permute.xlu0 %1485
        %v1489 = vsel %vm589, %v748, %v1468
        %v1490 = vsel %vm589, %v794, %v1470
        %vm1491 = vcmask 130048
        %v1492 = vsel %vm1491, %v1489, %v1476
        %v1493 = vsel %vm1491, %v1490, %v1478
        %vm1494 = vcmask 195584
        %v1495 = vsel %vm1494, %v1492, %v1484
        %v1496 = vsel %vm1494, %v1493, %v1486
        %v1497 = vld [vmem:[%s350] sm:$0xff]
        %v1498 = vld [vmem:[%s350 + $0x8] sm:$0xff]
        %vm1499 = vcmp.eq.f32.partialorder %v1497, 0.0
        %vm1500 = vcmp.eq.f32.partialorder %v1498, 0.0
        %v1501 = vsel %vm1499, 1, 0
        %v1502 = vsel %vm1500, 1, 0
        %1503 = vset.pattern.permute.xlu0 0
        %1504 = vperm.xlu0 %1503, %v1501
        %v1505 = vpop.permute.xlu0 %1504
        %1506 = vset.pattern.permute.xlu0 0
        %1507 = vperm.xlu0 %1506, %v1502
        %v1508 = vpop.permute.xlu0 %1507
        %vm1509 = vcmp.eq.s32.totalorder %v1505, 1
        %vm1510 = vcmp.eq.s32.totalorder %v1508, 1
        %v1511 = vsel %vm1509, 0.0, %v1495
        %v1512 = vsel %vm1510, 0.0, %v1496
        %v1513 = vpack.c.bf16 %v1512, %v1511
        %v1514 = vlaneseq
        %v1515 = vshrl.u32 %v1514, 7
        %v1516 = vsub.s32 0, %v1515
        %v1517 = vrot.slane %v376, %v1516
        %v1522 = vunpack.c.l.b16 %v369
        %v1523 = vunpack.c.l.b16 %v370
        %v1524 = vunpack.c.l.b16 %v371
        %v1525 = vunpack.c.l.b16 %v372
        %v1526 = vpack.c.b16 %v1523, %v1522
        %v1527 = vpack.c.b16 %v1525, %v1524
        %v1531 = vsel %vm402, %v1513, 0
        %1533 = vmatprep.subr.bf16.mxu0 0
        %1534 = vmatpush1.bf16.msra.mxu0 0
        %1535 = vmatprep.subr.bf16.mxu0 0
        %1536 = vmatpush1.bf16.msra.mxu0 0
        %1537 = vmatprep.subr.bf16.mxu0 0
        %1538 = vmatpush1.bf16.msra.mxu0 0
        %1539 = vmatprep.subr.bf16.mxu0 0
        %1540 = vmatpush1.bf16.msra.mxu0 0
        %1541 = vmatprep.subr.bf16.mxu0 0
        %1542 = vmatpush1.bf16.msra.mxu0 0
        %1543 = vmatprep.subr.bf16.mxu0 0
        %1544 = vmatpush1.bf16.msra.mxu0 0
        %1545 = vmatprep.subr.bf16.mxu0 0
        %1546 = vmatpush1.bf16.msra.mxu0 %v1527
        %1547 = vmatprep.subr.bf16.mxu0 0
        %1548 = vmatpush1.bf16.msra.mxu0 %v1526
        %1549 = vmatprep.subr.bf16.mxu0 0
        %1550 = vmatpush2.bf16.msra.mxu0 0
        %1551 = vmatprep.subr.bf16.mxu0 0
        %1552 = vmatpush2.bf16.msra.mxu0 0
        %1553 = vmatprep.subr.bf16.mxu0 0
        %1554 = vmatpush2.bf16.msra.mxu0 0
        %1555 = vmatprep.subr.bf16.mxu0 0
        %1556 = vmatpush2.bf16.msra.mxu0 0
        %1557 = vmatprep.subr.bf16.mxu0 0
        %1558 = vmatpush2.bf16.msra.mxu0 0
        %1559 = vmatprep.subr.bf16.mxu0 0
        %1560 = vmatpush2.bf16.msra.mxu0 0
        %1561 = vmatprep.subr.bf16.mxu0 0
        %1562 = vmatpush2.bf16.msra.mxu0 0
        %1563 = vmatprep.subr.bf16.mxu0 0
        %1564 = vmatpush2.bf16.msra.mxu0 0
        %1565 = vmatprep.mubr.bf16.mxu0 0
        %1566 = vmatmul.mubr.bf16.gmra.mxu0 %v1531
        %v1567 = vpop.f32.mrf.mxu0
        %v1568 = vadd.f32 %v1517, %v1567
        %v1569 = vpop.f32.mrf.mxu0
        %v1570 = vpop.f32.mrf.mxu0
        %v1571 = vadd.f32 %v1517, %v1570
        %v1572 = vpop.f32.mrf.mxu0
        %1573 = vdwg.mxu0
        %v1574 = vsel %vm402, %v1568, 0.0
        %1575 = vadd.xlane.f32.xlu0 %v1574
        %v1576 = vpop.xlane.xlu0 %1575
        %v1577 = vsel %vm402, %v1571, 0.0
        %1578 = vadd.xlane.f32.xlu0 %v1577
        %v1579 = vpop.xlane.xlu0 %1578
        %v1580 = vrcp.pop 32.0
        %v1581 = vmul.f32 %v1576, %v1580
        %v1582 = vmul.f32 %v1579, %v1580
        %v1583 = vsub.f32 %v1568, %v1581
        %v1584 = vsub.f32 %v1571, %v1582
        %v1585 = vmul.f32 %v1583, %v1583
        %v1586 = vmul.f32 %v1584, %v1584
        %v1587 = vsel %vm402, %v1585, 0.0
        %1588 = vadd.xlane.f32.xlu0 %v1587
        %v1589 = vpop.xlane.xlu0 %1588
        %v1590 = vsel %vm402, %v1586, 0.0
        %1591 = vadd.xlane.f32.xlu0 %v1590
        %v1592 = vpop.xlane.xlu0 %1591
        %v1593 = vmul.f32 %v1589, %v1580
        %v1594 = vmul.f32 %v1592, %v1580
        %v1595 = vadd.f32 %v1593, 1e-05
        %v1596 = vadd.f32 %v1594, 1e-05
        %v1597 = vrsqrt.pop %v1595
        %v1598 = vrsqrt.pop %v1596
        %v1599 = vmul.f32 %v1583, %v1597
        %v1600 = vmul.f32 %v1584, %v1598
        %v1601 = vlaneseq
        %v1602 = vshrl.u32 %v1601, 7
        %v1603 = vsub.s32 0, %v1602
        %v1604 = vrot.slane %v377, %v1603
        %v1605 = vmul.f32 %v1599, %v1604
        %v1606 = vmul.f32 %v1600, %v1604
        %v1607 = vlaneseq
        %v1608 = vshrl.u32 %v1607, 7
        %v1609 = vsub.s32 0, %v1608
        %v1610 = vrot.slane %v378, %v1609
        %v1611 = vadd.f32 %v1605, %v1610
        %v1612 = vadd.f32 %v1606, %v1610
        %v1613 = vpack.c.bf16 %v1612, %v1611
        %v1615 = vunpack.c.l.b16 %v1613
        %v1616 = vunpack.c.h.b16 %v1613
        %v1617 = vpack.c.b16 %v1615, %v1615
        %v1618 = vpack.c.b16 %v1616, %v1616
        %vm1621 = vcmask 257024
        %1622 = vst.msk [vmem:[%s332] sm:$0xf] %vm1621, %v1617
        %1623 = vst.msk [vmem:[%s332 + $0x4] sm:$0xf] %vm1621, %v1618
        %s1624 = sand.u32 %s178, 1
        %s1625 = scalar_lea.sflag [#allocation4], %s1624
        %s1626 = sand.u32 %s178, 1
        %s1627 = smul.addr %s1626, 8
        %s1628 = scalar_lea.vmem [#allocation7], %s1627
        // Predicated region
        $region53: #{tpu_custom_call.1} parent=43 // pred_check
          %p1629 = pneg %p188
        $region54: #{tpu_custom_call.1} parent=43 // pred_check_branch
          %1631 = sbr.rel (%p1629) target = $region56
        $region55: #{tpu_custom_call.1} parent=43 // pred_region
          %s1632 = smul.u32 2, %s24
          %s1634 = ssub.s32 128, 128
          %1635 = vsyncadd %s1625, %s1634
          %s1636 = smul.addr %s1632, 64
          %s1637 = scalar_lea.hbm %s6, %s1636
          %s1638 = sshll.u32 %s1628, 4
          %s1639 = int_to_ptr.vmem [resolvable:$true] %s1638
          %1644 = dma.vmem_to_hbm [thread:$0]  %s1639, 128, %s1637, %s1625, 64, 64, 4
        $region56: #{tpu_custom_call.1} parent=43 // pred_fallthru
          _
      $region44: #{tpu_custom_call.1} parent=5 // pred_fallthru
        _
      %p1645 = scmp.le.s32.totalorder 2, %s19
      // Predicated region
      $region57: #{tpu_custom_call.1} parent=5 // pred_check
        %p1646 = pneg %p1645
      $region58: #{tpu_custom_call.1} parent=5 // pred_check_branch
        %1648 = sbr.rel (%p1646) target = $region60
      $region59: #{tpu_custom_call.1} parent=5 // pred_region
        %s1649 = ssub.s32 %s19, 2
        // Predicated region
        $region61: #{tpu_custom_call.1} parent=59 // pred_check
          %p1650 = pneg %p194
        $region62: #{tpu_custom_call.1} parent=59 // pred_check_branch
          %1652 = sbr.rel (%p1650) target = $region64
        $region63: #{tpu_custom_call.1} parent=59 // pred_region
          %s1653 = sand.u32 %s179, 1
          %s1654 = scalar_lea.sflag [#allocation4], %s1653
          %s1655 = sand.u32 %s179, 1
          %s1656 = smul.addr %s1655, 8
          %s1657 = scalar_lea.vmem [#allocation7], %s1656
          %1658 = dma.done %s1654, 128
        $region64: #{tpu_custom_call.1} parent=59 // pred_fallthru
          _
      $region60: #{tpu_custom_call.1} parent=5 // pred_fallthru
        _
    $region6: #{tpu_custom_call.1} parent=1 // loop_footer
      %s23 = sadd.s32 1, %s19
    $region7: #{tpu_custom_call.1} parent=1 // loop_footer_branch
      %18 = sbr.rel target = $region3
    $region8: #{tpu_custom_call.1} parent=1 // loop_exit
      _
    %1659 = vsyncpa [#allocation3], 1
    %s1660 = scalar_lea.sflag [#allocation3], 1
    %1661 = vsyncpa %s1660, 1
    %1662 = vsyncpa [#allocation6], 1
    %1663 = vsyncpa [#allocation4], 1
    %s1664 = scalar_lea.sflag [#allocation4], 1
    %1665 = vsyncpa %s1664, 1

</llo_original>
